<compile_context>
chip_gen: v7x
topology: tpu7x:2x2x1
jax: 0.10.0
libtpu: 0.0.40
codegen_flags: <defaults>
</compile_context>

<pallas_src>
import functools

import jax
import jax.numpy as jnp
from jax.experimental import pallas as pl
from jax.experimental.pallas import tpu as pltpu

cfgs = {
    "vgg11": [64, "M", 128, "M", 256, 256, "M", 512, 512, "M", 512, 512, "M"],
    "vgg13": [64, 64, "M", 128, 128, "M", 256, 256, "M", 512, 512, "M", 512, 512, "M"],
    "vgg16": [64, 64, "M", 128, 128, "M", 256, 256, 256, "M", 512, 512, 512, "M",
              512, 512, 512, "M"],
    "vgg19": [64, 64, "M", 128, 128, "M", 256, 256, 256, 256, "M", 512, 512, 512, 512,
              "M", 512, 512, 512, 512, "M"],
}

_VMEM_LIMIT = 32 * 1024 * 1024  # works on v5e / v6e (128MiB phys) and v7x (64MiB phys)


def _round_up(x, m):
    return (x + m - 1) // m * m


def _largest_divisor(n, limit, multiple):
    """Largest d <= limit with n % d == 0 and d % multiple == 0, else None."""
    for d in range(min(limit, n), 0, -1):
        if n % d == 0 and d % multiple == 0:
            return d
    return None


# ----------------------------------------------------------------------------
# Tiled matmul + bias (+ ReLU) kernels: hot path for convs and linears.
# Operands are bf16, accumulation is f32 on the MXU, bias add in f32.
# ----------------------------------------------------------------------------
def _matmul_bias_kernel_direct(a_ref, b_ref, bias_ref, o_ref, *, apply_relu):
    acc = jnp.dot(a_ref[...], b_ref[...], preferred_element_type=jnp.float32)
    acc = acc + bias_ref[...]
    if apply_relu:
        acc = jnp.maximum(acc, 0.0)
    o_ref[...] = acc.astype(o_ref.dtype)


def _matmul_bias_kernel_acc(a_ref, b_ref, bias_ref, o_ref, acc_ref, *, apply_relu):
    @pl.when(pl.program_id(2) == 0)
    def _():
        acc_ref[...] = jnp.zeros_like(acc_ref)

    acc_ref[...] += jnp.dot(a_ref[...], b_ref[...],
                            preferred_element_type=jnp.float32)

    @pl.when(pl.program_id(2) == pl.num_programs(2) - 1)
    def _():
        r = acc_ref[...] + bias_ref[...]
        if apply_relu:
            r = jnp.maximum(r, 0.0)
        o_ref[...] = r.astype(o_ref.dtype)


def matmul_bias(a, b, bias, *, relu, out_dtype=jnp.bfloat16):
    """a: (M, K) bf16, b: (K, N) bf16, bias: (N,) f32 -> (M, N) out_dtype."""
    M, K = a.shape
    K2, N = b.shape
    assert K == K2

    # --- tile selection: exact divisors so no padding copies are needed ------
    if N <= 512:
        tn = N                                    # convs & small heads: N untiled
    else:
        tn = _largest_divisor(N, 512, 128) or 512
    if K <= 4608:
        tk = K                                    # conv weights fully resident
    else:
        tk = _largest_divisor(K, 4096, 128) or 2048
    # M tile: target ~2MB bf16 A blocks, exact divisor, multiple of 8.
    limit = max(256, min(4096, (2 * 1024 * 1024) // max(2 * K, 1)))
    if M <= max(512, limit):
        tm = M
    else:
        tm = _largest_divisor(M, limit, 8) or min(M, 512)

    Mp, Kp, Np = _round_up(M, tm), _round_up(K, tk), _round_up(N, tn)
    a_p = a if (Mp == M and Kp == K) else jnp.pad(a, ((0, Mp - M), (0, Kp - K)))
    b_p = b if (Kp == K and Np == N) else jnp.pad(b, ((0, Kp - K), (0, Np - N)))
    bias2d = bias.reshape(1, N).astype(jnp.float32)
    bias_p = bias2d if Np == N else jnp.pad(bias2d, ((0, 0), (0, Np - N)))

    n_i, n_j, n_k = Mp // tm, Np // tn, Kp // tk

    if n_k == 1:
        kernel = functools.partial(_matmul_bias_kernel_direct, apply_relu=relu)
        out = pl.pallas_call(
            kernel,
            out_shape=jax.ShapeDtypeStruct((Mp, Np), out_dtype),
            grid=(n_i, n_j),
            in_specs=[
                pl.BlockSpec((tm, tk), lambda i, j: (i, 0)),
                pl.BlockSpec((tk, tn), lambda i, j: (0, j)),  # weight resident
                pl.BlockSpec((1, tn), lambda i, j: (0, j)),
            ],
            out_specs=pl.BlockSpec((tm, tn), lambda i, j: (i, j)),
            compiler_params=pltpu.CompilerParams(
                dimension_semantics=("parallel", "parallel"),
                vmem_limit_bytes=_VMEM_LIMIT),
        )(a_p, b_p, bias_p)
    else:
        kernel = functools.partial(_matmul_bias_kernel_acc, apply_relu=relu)
        out = pl.pallas_call(
            kernel,
            out_shape=jax.ShapeDtypeStruct((Mp, Np), out_dtype),
            grid=(n_i, n_j, n_k),
            in_specs=[
                pl.BlockSpec((tm, tk), lambda i, j, k: (i, k)),
                pl.BlockSpec((tk, tn), lambda i, j, k: (k, j)),
                pl.BlockSpec((1, tn), lambda i, j, k: (0, j)),
            ],
            out_specs=pl.BlockSpec((tm, tn), lambda i, j, k: (i, j)),
            scratch_shapes=[pltpu.VMEM((tm, tn), jnp.float32)],
            compiler_params=pltpu.CompilerParams(
                dimension_semantics=("parallel", "parallel", "arbitrary"),
                vmem_limit_bytes=_VMEM_LIMIT),
        )(a_p, b_p, bias_p)

    if Mp != M or Np != N:
        out = out[:M, :N]
    return out


# ----------------------------------------------------------------------------
# 2x2 / stride-2 max-pool kernel.
# Input is pre-reshaped (free) to (N*Ho, 2, Wo, 2*C): the 2x W neighbours are
# lane-packed, so the kernel needs only a major-dim max and static lane slices.
# ----------------------------------------------------------------------------
def _maxpool_kernel(x_ref, o_ref):
    x = x_ref[...]                       # (bh, 2, Wo, 2*C)
    hm = jnp.max(x, axis=1)              # max over the H pair -> (bh, Wo, 2*C)
    c = o_ref.shape[-1]
    o_ref[...] = jnp.maximum(hm[:, :, :c], hm[:, :, c:])   # max over the W pair


def maxpool2x2(x):
    """x: (N, H, W, C) -> (N, H//2, W//2, C)  (MaxPool2d(kernel=2, stride=2))."""
    N, H, W, C = x.shape
    Ho, Wo = H // 2, W // 2
    rows = N * Ho
    xr = x.reshape(rows, 2, Wo, 2 * C)   # metadata-only reshape
    row_bytes = 2 * Wo * 2 * C * x.dtype.itemsize
    limit = max(1, (2 * 1024 * 1024) // row_bytes)
    bh = _largest_divisor(rows, limit, 1) or 1
    out = pl.pallas_call(
        _maxpool_kernel,
        out_shape=jax.ShapeDtypeStruct((rows, Wo, C), x.dtype),
        grid=(rows // bh,),
        in_specs=[pl.BlockSpec((bh, 2, Wo, 2 * C), lambda i: (i, 0, 0, 0))],
        out_specs=pl.BlockSpec((bh, Wo, C), lambda i: (i, 0, 0)),
        compiler_params=pltpu.CompilerParams(
            dimension_semantics=("parallel",),
            vmem_limit_bytes=_VMEM_LIMIT),
    )(xr)
    return out.reshape(N, Ho, Wo, C)


# ----------------------------------------------------------------------------
# 3x3 stride-1 pad-1 conv + ReLU = bf16 im2col (glue) + Pallas MXU matmul with
# the full (9*Cin, Cout) weight resident in VMEM.
# TODO(synk): a fully fused conv (no im2col materialization) needs overlapping
# halo block reads; kept as XLA glue here for portability/robustness.
# ----------------------------------------------------------------------------
def conv3x3_relu(x, w2d, bias):
    """x: (N,H,W,Cin) bf16; w2d: (9*Cin, Cout) bf16; bias: (Cout,) f32."""
    N, H, W, Cin = x.shape
    Cout = w2d.shape[1]
    xp = jnp.pad(x, ((0, 0), (1, 1), (1, 1), (0, 0)))
    patches = [xp[:, dh:dh + H, dw:dw + W, :] for dh in range(3) for dw in range(3)]
    cols = jnp.concatenate(patches, axis=-1).reshape(N * H * W, 9 * Cin)
    y = matmul_bias(cols, w2d, bias, relu=True, out_dtype=jnp.bfloat16)
    return y.reshape(N, H, W, Cout)


# ----------------------------------------------------------------------------
# Parameters & forward pass (mirrors VGGnet.__init__/forward).
# ----------------------------------------------------------------------------
def init_params(key, class_num, struct):
    conv_params = []
    inc = 3
    for v in cfgs[struct]:
        if v == "M":
            continue
        key, kw, kb = jax.random.split(key, 3)
        w = jax.random.normal(kw, (v, inc, 3, 3), jnp.float32) * jnp.sqrt(2.0 / (inc * 9))
        b = jax.random.normal(kb, (v,), jnp.float32) * 0.01
        conv_params.append((w, b))
        inc = v
    fcs = []
    for fout, fin in [(4096, 512 * 7 * 7), (4096, 4096), (class_num, 4096)]:
        key, kw, kb = jax.random.split(key, 3)
        w = jax.random.normal(kw, (fout, fin), jnp.float32) * jnp.sqrt(2.0 / fin)
        b = jax.random.normal(kb, (fout,), jnp.float32) * 0.01
        fcs.append((w, b))
    return {"conv": conv_params, "fc": fcs}


def prepare_params(params):
    """One-time layout/dtype transform to kernel-friendly bf16 weights."""
    conv = []
    for w, b in params["conv"]:
        cout, cin = w.shape[0], w.shape[1]
        # (Cout,Cin,3,3) -> (dh,dw,Cin,Cout) -> (9*Cin, Cout), matching im2col order.
        w2d = jnp.transpose(w, (2, 3, 1, 0)).reshape(9 * cin, cout).astype(jnp.bfloat16)
        conv.append((w2d, b.astype(jnp.float32)))
    fc = []
    for w, b in params["fc"]:
        fc.append((jnp.transpose(w).astype(jnp.bfloat16), b.astype(jnp.float32)))
    return {"conv": conv, "fc": fc}


def vgg_forward(x_nchw, fparams, struct):
    x = jnp.transpose(x_nchw, (0, 2, 3, 1)).astype(jnp.bfloat16)  # NCHW -> NHWC, bf16
    ci = 0
    for v in cfgs[struct]:
        if v == "M":
            x = maxpool2x2(x)
        else:
            w2d, b = fparams["conv"][ci]
            ci += 1
            x = conv3x3_relu(x, w2d, b)
    n = x.shape[0]
    # nn.Flatten() flattens the NCHW tensor -> permute back before flattening.
    x = jnp.transpose(x, (0, 3, 1, 2)).reshape(n, -1)  # (N, 512*7*7)
    # TODO(synk): nn.Dropout(p=0.5) is stochastic; treated as identity (eval semantics).
    (w1, b1), (w2, b2), (w3, b3) = fparams["fc"]
    x = matmul_bias(x, w1, b1, relu=True, out_dtype=jnp.bfloat16)
    x = matmul_bias(x, w2, b2, relu=True, out_dtype=jnp.bfloat16)
    x = matmul_bias(x, w3, b3, relu=False, out_dtype=jnp.float32)
    return x


if __name__ == "__main__":
    key = jax.random.PRNGKey(0)
    kx, kp = jax.random.split(key)
    class_num, struct = 10, "vgg11"
    # 224x224 is required so the flatten matches Linear(in_features=512*7*7).
    x = jax.random.normal(kx, (2, 3, 224, 224), jnp.float32)
    params = init_params(kp, class_num, struct)
    fparams = prepare_params(params)
    out = vgg_forward(x, fparams, struct)
    out = jax.block_until_ready(out)
    assert out.shape == (2, class_num), out.shape
    print("KERNEL_OK")
</pallas_src>

<mosaic_0001>
module attributes {stable_mosaic.version = 11 : i64} {
  func.func @_matmul_bias_kernel_direct(%arg0: i32, %arg1: i32, %arg2: memref<3584x27xbf16, #tpu.memory_space<vmem>>, %arg3: memref<27x64xbf16, #tpu.memory_space<vmem>>, %arg4: memref<1x64xf32, #tpu.memory_space<vmem>>, %arg5: memref<3584x64xbf16, #tpu.memory_space<vmem>>) attributes {dimension_semantics = [#tpu.dimension_semantics<parallel>, #tpu.dimension_semantics<parallel>], iteration_bounds = array<i64: 28, 1>, scalar_prefetch = 0 : i64, scratch_operands = 0 : i64, tpu.core_type = #tpu.core_type<tc>, window_params = [{transform_indices = @transform_0, window_bounds = array<i64: 3584, 27>}, {transform_indices = @transform_1, window_bounds = array<i64: 27, 64>}, {transform_indices = @transform_2, window_bounds = array<i64: 1, 64>}, {transform_indices = @transform_3, window_bounds = array<i64: 3584, 64>}]} {
    %c0 = arith.constant 0 : index
    %c0_0 = arith.constant 0 : index
    %0 = vector.load %arg2[%c0, %c0_0] : memref<3584x27xbf16, #tpu.memory_space<vmem>>, vector<3584x27xbf16>
    %c0_1 = arith.constant 0 : index
    %c0_2 = arith.constant 0 : index
    %1 = vector.load %arg3[%c0_1, %c0_2] : memref<27x64xbf16, #tpu.memory_space<vmem>>, vector<27x64xbf16>
    %cst = arith.constant dense<0.000000e+00> : vector<3584x64xf32>
    %2 = tpu.matmul %0, %1, %cst {dimension_numbers = #tpu.dot_dimension_numbers<[1], [0], [0], [1], [0, 0, 1, 1], [], []>} : vector<3584x27xbf16>, vector<27x64xbf16>, vector<3584x64xf32> -> vector<3584x64xf32>
    %c0_3 = arith.constant 0 : index
    %c0_4 = arith.constant 0 : index
    %3 = vector.load %arg4[%c0_3, %c0_4] : memref<1x64xf32, #tpu.memory_space<vmem>>, vector<1x64xf32>
    %4 = vector.broadcast %3 : vector<1x64xf32> to vector<3584x64xf32>
    %5 = arith.addf %2, %4 : vector<3584x64xf32>
    %cst_5 = arith.constant 0.000000e+00 : f32
    %6 = vector.broadcast %cst_5 : f32 to vector<3584x64xf32>
    %7 = arith.maximumf %5, %6 : vector<3584x64xf32>
    %8 = arith.truncf %7 : vector<3584x64xf32> to vector<3584x64xbf16>
    %c0_6 = arith.constant 0 : index
    %c0_7 = arith.constant 0 : index
    %9 = vector.load %arg5[%c0_6, %c0_7] : memref<3584x64xbf16, #tpu.memory_space<vmem>>, vector<3584x64xbf16>
    tpu.vector_store %arg5[%c0_6, %c0_7], %8 {strides = array<i32>} : memref<3584x64xbf16, #tpu.memory_space<vmem>>, vector<3584x64xbf16>,
    return
  }
  func.func @transform_0(%arg0: i32, %arg1: i32) -> (i32, i32) {
    %c0_i32 = arith.constant 0 : i32
    %c0_i32_0 = arith.constant 0 : i32
    return %arg0, %c0_i32 : i32, i32
  }
  func.func @transform_1(%arg0: i32, %arg1: i32) -> (i32, i32) {
    %c0_i32 = arith.constant 0 : i32
    %c0_i32_0 = arith.constant 0 : i32
    return %c0_i32, %arg1 : i32, i32
  }
  func.func @transform_2(%arg0: i32, %arg1: i32) -> (i32, i32) {
    %c0_i32 = arith.constant 0 : i32
    %c0_i32_0 = arith.constant 0 : i32
    return %c0_i32, %arg1 : i32, i32
  }
  func.func @transform_3(%arg0: i32, %arg1: i32) -> (i32, i32) {
    %c0_i32 = arith.constant 0 : i32
    return %arg0, %arg1 : i32, i32
  }
}

</mosaic_0001>

<llo_original>
// kernel: tpu_custom_call.1
$region0: #{tpu_custom_call.1}
  #allocation0 [shape = 'u32[]', space=smem, size = 0x4, offset = 0x4, fixed_abs, tag = 'smem constant byte address 0x4 - core index']
  #allocation1 [shape = 'u32[144,128]{1,0:T(1,128)}', space=vmem, size = 0x12000, scoped, tag = 'internal scratch']
  %s0 = inlined_call_operand.hbm [shape: bf16[100352,27], index: 0, kind: input, shape index: {}]
  %s1 = inlined_call_operand.vmem [shape: bf16[27,64], index: 1, kind: input, shape index: {}]
  %s2 = inlined_call_operand.vmem [shape: f32[1,64], index: 2, kind: input, shape index: {}]
  %s3 = inlined_call_operand.vmem [shape: bf16[100352,64], index: 3, kind: output, shape index: {}]
  %s4 = sld [smem:[#allocation0]]
  $region49: #{tpu_custom_call.1} parent=0
    _
  %s6 = ssub.s32 1, %s4
  %s7 = scalar_select 0, %s6, %s4
  $region1: #{tpu_custom_call.1} parent=0
    #allocation2 [shape = 'u8[1835008]{0}', space=vmem, size = 0x1c0000, scoped, tag = 'input window, operand 0']
    #allocation3 [shape = 's32[2]{0}', space=sflag, size = 0x8, scoped, tag = 'scoped memory for tpu_custom_call.1']
    %8 = vsyncpa [#allocation3], 0
    %s9 = scalar_lea.sflag [#allocation3], 1
    %10 = vsyncpa %s9, 0
    loop: start=0, step=1, limit=30
    $region2: #{tpu_custom_call.1} parent=1 // loop_pre_header
      _
    $region3: #{tpu_custom_call.1} parent=1 // loop_header
      %s12 = sphi 0, %s16
      %p13 = scmp.ge.s32.totalorder %s12, 30
      %s19 = sphi 0, %s31
      %s20 = sphi 0, %s27
      %s21 = sphi 0, %s19
      %s22 = sphi 0, %s20
      %s23 = sphi 0, %s21
      %s24 = sphi 0, %s22
      %s34 = sphi 0, %s36
      %s37 = sphi 0, %s34
      %s38 = sphi 0, %s37
      %s54 = sphi 0, %s38
      %s60 = sphi 0, %s62
      %s63 = sphi 0, %s60
      %s64 = sphi 0, %s63
      %s80 = sphi 0, %s64
      %s86 = sphi 0, %s88
      %s89 = sphi 0, %s86
      %s90 = sphi 0, %s89
      %s106 = sphi 0, %s90
      %s114 = sphi 0, %s116
      %s117 = sphi 0, %s114
      %s118 = sphi 0, %s117
      %s134 = sphi 0, %s118
    $region4: #{tpu_custom_call.1} parent=1 // loop_header_branch
      %15 = sbr.rel (%p13) target = $region8
    $region5: #{tpu_custom_call.1} parent=1 // loop_body
      %s17 = ssub.s32 %s12, 1
      %s18 = ssub.s32 %s12, 2
      %s25 = sadd.s32 1, %s20
      %p26 = scmp.ge.s32.totalorder %s25, 1
      %s27 = scalar_select %p26, 0, %s25
      %s28 = sadd.s32 1, %s19
      %s29 = scalar_select %p26, %s28, %s19
      %p30 = scmp.ge.s32.totalorder %s29, 28
      %s31 = scalar_select %p30, 0, %s29
      %s32 = ssub.s32 %s19, %s31
      %p33 = scmp.eq.s32.totalorder %s32, 0
      %s35 = sadd.s32 %s34, 1
      %s36 = scalar_select %p33, %s34, %s35
      %p39 = pneg %p33
      %p40 = scmp.eq.s32.totalorder %s12, 27
      %p41 = por %p39, %p40
      %p42 = scmp.ne.s32.totalorder %s34, %s37
      %p43 = scmp.eq.s32.totalorder %s12, 0
      %p44 = por %p42, %p43
      %p45 = scmp.ne.s32.totalorder %s34, %s37
      %p46 = scmp.eq.s32.totalorder %s17, 27
      %p47 = por %p45, %p46
      %p48 = scmp.ne.s32.totalorder %s37, %s38
      %p49 = scmp.eq.s32.totalorder %s17, 0
      %p50 = por %p48, %p49
      %p51 = scmp.ne.s32.totalorder %s37, %s38
      %p52 = scmp.eq.s32.totalorder %s18, 27
      %p53 = por %p51, %p52
      %p55 = scmp.ne.s32.totalorder %s38, %s54
      %p56 = scmp.eq.s32.totalorder %s18, 0
      %p57 = por %p55, %p56
      %s58 = ssub.s32 %s20, %s27
      %p59 = scmp.eq.s32.totalorder %s58, 0
      %s61 = sadd.s32 %s60, 1
      %s62 = scalar_select %p59, %s60, %s61
      %p65 = pneg %p59
      %p66 = scmp.eq.s32.totalorder %s12, 27
      %p67 = por %p65, %p66
      %p68 = scmp.ne.s32.totalorder %s60, %s63
      %p69 = scmp.eq.s32.totalorder %s12, 0
      %p70 = por %p68, %p69
      %p71 = scmp.ne.s32.totalorder %s60, %s63
      %p72 = scmp.eq.s32.totalorder %s17, 27
      %p73 = por %p71, %p72
      %p74 = scmp.ne.s32.totalorder %s63, %s64
      %p75 = scmp.eq.s32.totalorder %s17, 0
      %p76 = por %p74, %p75
      %p77 = scmp.ne.s32.totalorder %s63, %s64
      %p78 = scmp.eq.s32.totalorder %s18, 27
      %p79 = por %p77, %p78
      %p81 = scmp.ne.s32.totalorder %s64, %s80
      %p82 = scmp.eq.s32.totalorder %s18, 0
      %p83 = por %p81, %p82
      %s84 = ssub.s32 %s20, %s27
      %p85 = scmp.eq.s32.totalorder %s84, 0
      %s87 = sadd.s32 %s86, 1
      %s88 = scalar_select %p85, %s86, %s87
      %p91 = pneg %p85
      %p92 = scmp.eq.s32.totalorder %s12, 27
      %p93 = por %p91, %p92
      %p94 = scmp.ne.s32.totalorder %s86, %s89
      %p95 = scmp.eq.s32.totalorder %s12, 0
      %p96 = por %p94, %p95
      %p97 = scmp.ne.s32.totalorder %s86, %s89
      %p98 = scmp.eq.s32.totalorder %s17, 27
      %p99 = por %p97, %p98
      %p100 = scmp.ne.s32.totalorder %s89, %s90
      %p101 = scmp.eq.s32.totalorder %s17, 0
      %p102 = por %p100, %p101
      %p103 = scmp.ne.s32.totalorder %s89, %s90
      %p104 = scmp.eq.s32.totalorder %s18, 27
      %p105 = por %p103, %p104
      %p107 = scmp.ne.s32.totalorder %s90, %s106
      %p108 = scmp.eq.s32.totalorder %s18, 0
      %p109 = por %p107, %p108
      %s110 = ssub.s32 %s19, %s31
      %s111 = ssub.s32 %s20, %s27
      %s112 = sor.u32 %s110, %s111
      %p113 = scmp.eq.s32.totalorder %s112, 0
      %s115 = sadd.s32 %s114, 1
      %s116 = scalar_select %p113, %s114, %s115
      %p119 = pneg %p113
      %p120 = scmp.eq.s32.totalorder %s12, 27
      %p121 = por %p119, %p120
      %p122 = scmp.ne.s32.totalorder %s114, %s117
      %p123 = scmp.eq.s32.totalorder %s12, 0
      %p124 = por %p122, %p123
      %p125 = scmp.ne.s32.totalorder %s114, %s117
      %p126 = scmp.eq.s32.totalorder %s17, 27
      %p127 = por %p125, %p126
      %p128 = scmp.ne.s32.totalorder %s117, %s118
      %p129 = scmp.eq.s32.totalorder %s17, 0
      %p130 = por %p128, %p129
      %p131 = scmp.ne.s32.totalorder %s117, %s118
      %p132 = scmp.eq.s32.totalorder %s18, 27
      %p133 = por %p131, %p132
      %p135 = scmp.ne.s32.totalorder %s118, %s134
      %p136 = scmp.eq.s32.totalorder %s18, 0
      %p137 = por %p135, %p136
      %p138 = scmp.le.s32.totalorder 1, %s12
      %p139 = scmp.lt.s32.totalorder %s12, 29
      %p140 = pnand %p138, %p139
      %p141 = pneg %p140
      // Predicated region
      $region9: #{tpu_custom_call.1} parent=5 // pred_check
        _
      $region10: #{tpu_custom_call.1} parent=5 // pred_check_branch
        %143 = sbr.rel (%p140) target = $region12
      $region11: #{tpu_custom_call.1} parent=5 // pred_region
        %s144 = ssub.s32 %s12, 1
        // Predicated region
        $region13: #{tpu_custom_call.1} parent=11 // pred_check
          %p145 = pneg %p76
        $region14: #{tpu_custom_call.1} parent=11 // pred_check_branch
          %147 = sbr.rel (%p145) target = $region16
        $region15: #{tpu_custom_call.1} parent=11 // pred_region
          %p148 = scmp.lt.s32.totalorder %s22, 0
          %s149 = scalar_select %p148, %s22, 0
          %s150 = smul.addr %s149, 4
          %s151 = scalar_lea.vmem %s1, %s150
        $region16: #{tpu_custom_call.1} parent=11 // pred_fallthru
          _
        // Predicated region
        $region17: #{tpu_custom_call.1} parent=11 // pred_check
          %p152 = pneg %p102
        $region18: #{tpu_custom_call.1} parent=11 // pred_check_branch
          %154 = sbr.rel (%p152) target = $region20
        $region19: #{tpu_custom_call.1} parent=11 // pred_region
          %p155 = scmp.lt.s32.totalorder %s22, 0
          %s156 = scalar_select %p155, %s22, 0
          %s157 = scalar_lea.vmem %s2, %s156
        $region20: #{tpu_custom_call.1} parent=11 // pred_fallthru
          _
      $region12: #{tpu_custom_call.1} parent=5 // pred_fallthru
        _
      %p158 = scmp.lt.s32.totalorder %s12, 28
      // Predicated region
      $region21: #{tpu_custom_call.1} parent=5 // pred_check
        %p159 = pneg %p158
      $region22: #{tpu_custom_call.1} parent=5 // pred_check_branch
        %161 = sbr.rel (%p159) target = $region24
      $region23: #{tpu_custom_call.1} parent=5 // pred_region
        // Predicated region
        $region25: #{tpu_custom_call.1} parent=23 // pred_check
          %p162 = pneg %p44
        $region26: #{tpu_custom_call.1} parent=23 // pred_check_branch
          %164 = sbr.rel (%p162) target = $region28
        $region27: #{tpu_custom_call.1} parent=23 // pred_region
          %s165 = sand.u32 %s34, 1
          %s166 = scalar_lea.sflag [#allocation3], %s165
          %s167 = sand.u32 %s34, 1
          %s168 = smul.addr %s167, 1792
          %s169 = scalar_lea.vmem [#allocation2], %s168
          %s170 = smul.u32 448, %s19
          %s172 = ssub.s32 28672, 28672
          %173 = vsyncadd %s166, %s172
          %s174 = smul.addr %s170, 64
          %s175 = scalar_lea.hbm %s0, %s174
          %s176 = sshll.u32 %s169, 4
          %s177 = int_to_ptr.vmem [resolvable:$true] %s176
          %182 = dma.hbm_to_vmem [thread:$0]  %s175, 28672, %s177, %s166, 64, 64, 4
        $region28: #{tpu_custom_call.1} parent=23 // pred_fallthru
          _
      $region24: #{tpu_custom_call.1} parent=5 // pred_fallthru
        _
      %p183 = scmp.le.s32.totalorder 1, %s12
      %p184 = scmp.lt.s32.totalorder %s12, 29
      %p185 = pnand %p183, %p184
      %p186 = pneg %p185
      // Predicated region
      $region29: #{tpu_custom_call.1} parent=5 // pred_check
        _
      $region30: #{tpu_custom_call.1} parent=5 // pred_check_branch
        %188 = sbr.rel (%p185) target = $region32
      $region31: #{tpu_custom_call.1} parent=5 // pred_region
        %s189 = ssub.s32 %s12, 1
        %s190 = sand.u32 %s37, 1
        %s191 = scalar_lea.sflag [#allocation3], %s190
        %s192 = sand.u32 %s37, 1
        %s193 = smul.addr %s192, 1792
        %s194 = scalar_lea.vmem [#allocation2], %s193
        // Predicated region
        $region33: #{tpu_custom_call.1} parent=31 // pred_check
          %p195 = pneg %p50
        $region34: #{tpu_custom_call.1} parent=31 // pred_check_branch
          %197 = sbr.rel (%p195) target = $region36
        $region35: #{tpu_custom_call.1} parent=31 // pred_region
          %198 = dma.done %s191, 28672
        $region36: #{tpu_custom_call.1} parent=31 // pred_fallthru
          _
        %s199 = sand.u32 %s37, 1
        %s200 = scalar_lea.sflag [#allocation3], %s199
        %s201 = sand.u32 %s37, 1
        %s202 = smul.addr %s201, 1792
        %s203 = scalar_lea.vmem [#allocation2], %s202
        %p204 = pneg %p50
        %p205 = pneg %p47
        %p206 = scmp.lt.s32.totalorder %s22, 0
        %s207 = scalar_select %p206, %s22, 0
        %s208 = smul.addr %s207, 4
        %s209 = scalar_lea.vmem %s1, %s208
        %p210 = pneg %p76
        %p211 = pneg %p73
        %p212 = scmp.lt.s32.totalorder %s22, 0
        %s213 = scalar_select %p212, %s22, 0
        %s214 = scalar_lea.vmem %s2, %s213
        %p215 = pneg %p102
        %p216 = pneg %p99
        %p217 = pneg %p130
        %p218 = pneg %p127
        %s219 = smul.u32 448, %s21
        %p220 = scmp.lt.s32.totalorder %s219, 12543
        %s221 = scalar_select %p220, %s219, 12543
        %p222 = scmp.lt.s32.totalorder %s22, 0
        %s223 = scalar_select %p222, %s22, 0
        %s224 = sadd.s32 %s223, %s221
        %s225 = smul.addr %s224, 4
        %s226 = scalar_lea.vmem %s3, %s225
        %s227 = smul.u32 448, %s21
        %p228 = scmp.lt.s32.totalorder %s22, 0
        %s229 = scalar_select %p228, %s22, 0
        %s230 = smul.addr %s229, 4
        %s231 = scalar_lea.vmem %s1, %s230
        %p232 = scmp.lt.s32.totalorder %s22, 0
        %s233 = scalar_select %p232, %s22, 0
        %s234 = scalar_lea.vmem %s2, %s233
        %s235 = smul.u32 448, %s21
        %p236 = scmp.lt.s32.totalorder %s235, 12543
        %s237 = scalar_select %p236, %s235, 12543
        %p238 = scmp.lt.s32.totalorder %s22, 0
        %s239 = scalar_select %p238, %s22, 0
        %s240 = sadd.s32 %s239, %s237
        %s241 = smul.addr %s240, 4
        %s242 = scalar_lea.vmem %s3, %s241
        %s243 = smul.u32 448, %s21
        %v245 = vld [vmem:[%s194] sm:$0xf]
        %v246 = vld [vmem:[%s194 + $0x4] sm:$0xf]
        %v247 = vld [vmem:[%s194 + $0x8] sm:$0xf]
        %v248 = vld [vmem:[%s194 + $0xc] sm:$0xf]
        %v249 = vld [vmem:[%s194 + $0x10] sm:$0xf]
        %v250 = vld [vmem:[%s194 + $0x14] sm:$0xf]
        %v251 = vld [vmem:[%s194 + $0x18] sm:$0xf]
        %v252 = vld [vmem:[%s194 + $0x1c] sm:$0xf]
        %v253 = vld [vmem:[%s194 + $0x20] sm:$0xf]
        %v254 = vld [vmem:[%s194 + $0x24] sm:$0xf]
        %v255 = vld [vmem:[%s194 + $0x28] sm:$0xf]
        %v256 = vld [vmem:[%s194 + $0x2c] sm:$0xf]
        %v257 = vld [vmem:[%s194 + $0x30] sm:$0xf]
        %v258 = vld [vmem:[%s194 + $0x34] sm:$0xf]
        %v259 = vld [vmem:[%s194 + $0x38] sm:$0xf]
        %v260 = vld [vmem:[%s194 + $0x3c] sm:$0xf]
        %v261 = vld [vmem:[%s194 + $0x40] sm:$0xf]
        %v262 = vld [vmem:[%s194 + $0x44] sm:$0xf]
        %v263 = vld [vmem:[%s194 + $0x48] sm:$0xf]
        %v264 = vld [vmem:[%s194 + $0x4c] sm:$0xf]
        %v265 = vld [vmem:[%s194 + $0x50] sm:$0xf]
        %v266 = vld [vmem:[%s194 + $0x54] sm:$0xf]
        %v267 = vld [vmem:[%s194 + $0x58] sm:$0xf]
        %v268 = vld [vmem:[%s194 + $0x5c] sm:$0xf]
        %v269 = vld [vmem:[%s194 + $0x60] sm:$0xf]
        %v270 = vld [vmem:[%s194 + $0x64] sm:$0xf]
        %v271 = vld [vmem:[%s194 + $0x68] sm:$0xf]
        %v272 = vld [vmem:[%s194 + $0x6c] sm:$0xf]
        %v273 = vld [vmem:[%s194 + $0x70] sm:$0xf]
        %v274 = vld [vmem:[%s194 + $0x74] sm:$0xf]
        %v275 = vld [vmem:[%s194 + $0x78] sm:$0xf]
        %v276 = vld [vmem:[%s194 + $0x7c] sm:$0xf]
        %v277 = vld [vmem:[%s194 + $0x80] sm:$0xf]
        %v278 = vld [vmem:[%s194 + $0x84] sm:$0xf]
        %v279 = vld [vmem:[%s194 + $0x88] sm:$0xf]
        %v280 = vld [vmem:[%s194 + $0x8c] sm:$0xf]
        %v281 = vld [vmem:[%s194 + $0x90] sm:$0xf]
        %v282 = vld [vmem:[%s194 + $0x94] sm:$0xf]
        %v283 = vld [vmem:[%s194 + $0x98] sm:$0xf]
        %v284 = vld [vmem:[%s194 + $0x9c] sm:$0xf]
        %v285 = vld [vmem:[%s194 + $0xa0] sm:$0xf]
        %v286 = vld [vmem:[%s194 + $0xa4] sm:$0xf]
        %v287 = vld [vmem:[%s194 + $0xa8] sm:$0xf]
        %v288 = vld [vmem:[%s194 + $0xac] sm:$0xf]
        %v289 = vld [vmem:[%s194 + $0xb0] sm:$0xf]
        %v290 = vld [vmem:[%s194 + $0xb4] sm:$0xf]
        %v291 = vld [vmem:[%s194 + $0xb8] sm:$0xf]
        %v292 = vld [vmem:[%s194 + $0xbc] sm:$0xf]
        %v293 = vld [vmem:[%s194 + $0xc0] sm:$0xf]
        %v294 = vld [vmem:[%s194 + $0xc4] sm:$0xf]
        %v295 = vld [vmem:[%s194 + $0xc8] sm:$0xf]
        %v296 = vld [vmem:[%s194 + $0xcc] sm:$0xf]
        %v297 = vld [vmem:[%s194 + $0xd0] sm:$0xf]
        %v298 = vld [vmem:[%s194 + $0xd4] sm:$0xf]
        %v299 = vld [vmem:[%s194 + $0xd8] sm:$0xf]
        %v300 = vld [vmem:[%s194 + $0xdc] sm:$0xf]
        %v301 = vld [vmem:[%s194 + $0xe0] sm:$0xf]
        %v302 = vld [vmem:[%s194 + $0xe4] sm:$0xf]
        %v303 = vld [vmem:[%s194 + $0xe8] sm:$0xf]
        %v304 = vld [vmem:[%s194 + $0xec] sm:$0xf]
        %v305 = vld [vmem:[%s194 + $0xf0] sm:$0xf]
        %v306 = vld [vmem:[%s194 + $0xf4] sm:$0xf]
        %v307 = vld [vmem:[%s194 + $0xf8] sm:$0xf]
        %v308 = vld [vmem:[%s194 + $0xfc] sm:$0xf]
        %v309 = vld [vmem:[%s194 + $0x100] sm:$0xf]
        %v310 = vld [vmem:[%s194 + $0x104] sm:$0xf]
        %v311 = vld [vmem:[%s194 + $0x108] sm:$0xf]
        %v312 = vld [vmem:[%s194 + $0x10c] sm:$0xf]
        %v313 = vld [vmem:[%s194 + $0x110] sm:$0xf]
        %v314 = vld [vmem:[%s194 + $0x114] sm:$0xf]
        %v315 = vld [vmem:[%s194 + $0x118] sm:$0xf]
        %v316 = vld [vmem:[%s194 + $0x11c] sm:$0xf]
        %v317 = vld [vmem:[%s194 + $0x120] sm:$0xf]
        %v318 = vld [vmem:[%s194 + $0x124] sm:$0xf]
        %v319 = vld [vmem:[%s194 + $0x128] sm:$0xf]
        %v320 = vld [vmem:[%s194 + $0x12c] sm:$0xf]
        %v321 = vld [vmem:[%s194 + $0x130] sm:$0xf]
        %v322 = vld [vmem:[%s194 + $0x134] sm:$0xf]
        %v323 = vld [vmem:[%s194 + $0x138] sm:$0xf]
        %v324 = vld [vmem:[%s194 + $0x13c] sm:$0xf]
        %v325 = vld [vmem:[%s194 + $0x140] sm:$0xf]
        %v326 = vld [vmem:[%s194 + $0x144] sm:$0xf]
        %v327 = vld [vmem:[%s194 + $0x148] sm:$0xf]
        %v328 = vld [vmem:[%s194 + $0x14c] sm:$0xf]
        %v329 = vld [vmem:[%s194 + $0x150] sm:$0xf]
        %v330 = vld [vmem:[%s194 + $0x154] sm:$0xf]
        %v331 = vld [vmem:[%s194 + $0x158] sm:$0xf]
        %v332 = vld [vmem:[%s194 + $0x15c] sm:$0xf]
        %v333 = vld [vmem:[%s194 + $0x160] sm:$0xf]
        %v334 = vld [vmem:[%s194 + $0x164] sm:$0xf]
        %v335 = vld [vmem:[%s194 + $0x168] sm:$0xf]
        %v336 = vld [vmem:[%s194 + $0x16c] sm:$0xf]
        %v337 = vld [vmem:[%s194 + $0x170] sm:$0xf]
        %v338 = vld [vmem:[%s194 + $0x174] sm:$0xf]
        %v339 = vld [vmem:[%s194 + $0x178] sm:$0xf]
        %v340 = vld [vmem:[%s194 + $0x17c] sm:$0xf]
        %v341 = vld [vmem:[%s194 + $0x180] sm:$0xf]
        %v342 = vld [vmem:[%s194 + $0x184] sm:$0xf]
        %v343 = vld [vmem:[%s194 + $0x188] sm:$0xf]
        %v344 = vld [vmem:[%s194 + $0x18c] sm:$0xf]
        %v345 = vld [vmem:[%s194 + $0x190] sm:$0xf]
        %v346 = vld [vmem:[%s194 + $0x194] sm:$0xf]
        %v347 = vld [vmem:[%s194 + $0x198] sm:$0xf]
        %v348 = vld [vmem:[%s194 + $0x19c] sm:$0xf]
        %v349 = vld [vmem:[%s194 + $0x1a0] sm:$0xf]
        %v350 = vld [vmem:[%s194 + $0x1a4] sm:$0xf]
        %v351 = vld [vmem:[%s194 + $0x1a8] sm:$0xf]
        %v352 = vld [vmem:[%s194 + $0x1ac] sm:$0xf]
        %v353 = vld [vmem:[%s194 + $0x1b0] sm:$0xf]
        %v354 = vld [vmem:[%s194 + $0x1b4] sm:$0xf]
        %v355 = vld [vmem:[%s194 + $0x1b8] sm:$0xf]
        %v356 = vld [vmem:[%s194 + $0x1bc] sm:$0xf]
        %v357 = vld [vmem:[%s194 + $0x1c0] sm:$0xf]
        %v358 = vld [vmem:[%s194 + $0x1c4] sm:$0xf]
        %v359 = vld [vmem:[%s194 + $0x1c8] sm:$0xf]
        %v360 = vld [vmem:[%s194 + $0x1cc] sm:$0xf]
        %v361 = vld [vmem:[%s194 + $0x1d0] sm:$0xf]
        %v362 = vld [vmem:[%s194 + $0x1d4] sm:$0xf]
        %v363 = vld [vmem:[%s194 + $0x1d8] sm:$0xf]
        %v364 = vld [vmem:[%s194 + $0x1dc] sm:$0xf]
        %v365 = vld [vmem:[%s194 + $0x1e0] sm:$0xf]
        %v366 = vld [vmem:[%s194 + $0x1e4] sm:$0xf]
        %v367 = vld [vmem:[%s194 + $0x1e8] sm:$0xf]
        %v368 = vld [vmem:[%s194 + $0x1ec] sm:$0xf]
        %v369 = vld [vmem:[%s194 + $0x1f0] sm:$0xf]
        %v370 = vld [vmem:[%s194 + $0x1f4] sm:$0xf]
        %v371 = vld [vmem:[%s194 + $0x1f8] sm:$0xf]
        %v372 = vld [vmem:[%s194 + $0x1fc] sm:$0xf]
        %v373 = vld [vmem:[%s194 + $0x200] sm:$0xf]
        %v374 = vld [vmem:[%s194 + $0x204] sm:$0xf]
        %v375 = vld [vmem:[%s194 + $0x208] sm:$0xf]
        %v376 = vld [vmem:[%s194 + $0x20c] sm:$0xf]
        %v377 = vld [vmem:[%s194 + $0x210] sm:$0xf]
        %v378 = vld [vmem:[%s194 + $0x214] sm:$0xf]
        %v379 = vld [vmem:[%s194 + $0x218] sm:$0xf]
        %v380 = vld [vmem:[%s194 + $0x21c] sm:$0xf]
        %v381 = vld [vmem:[%s194 + $0x220] sm:$0xf]
        %v382 = vld [vmem:[%s194 + $0x224] sm:$0xf]
        %v383 = vld [vmem:[%s194 + $0x228] sm:$0xf]
        %v384 = vld [vmem:[%s194 + $0x22c] sm:$0xf]
        %v385 = vld [vmem:[%s194 + $0x230] sm:$0xf]
        %v386 = vld [vmem:[%s194 + $0x234] sm:$0xf]
        %v387 = vld [vmem:[%s194 + $0x238] sm:$0xf]
        %v388 = vld [vmem:[%s194 + $0x23c] sm:$0xf]
        %v389 = vld [vmem:[%s194 + $0x240] sm:$0xf]
        %v390 = vld [vmem:[%s194 + $0x244] sm:$0xf]
        %v391 = vld [vmem:[%s194 + $0x248] sm:$0xf]
        %v392 = vld [vmem:[%s194 + $0x24c] sm:$0xf]
        %v393 = vld [vmem:[%s194 + $0x250] sm:$0xf]
        %v394 = vld [vmem:[%s194 + $0x254] sm:$0xf]
        %v395 = vld [vmem:[%s194 + $0x258] sm:$0xf]
        %v396 = vld [vmem:[%s194 + $0x25c] sm:$0xf]
        %v397 = vld [vmem:[%s194 + $0x260] sm:$0xf]
        %v398 = vld [vmem:[%s194 + $0x264] sm:$0xf]
        %v399 = vld [vmem:[%s194 + $0x268] sm:$0xf]
        %v400 = vld [vmem:[%s194 + $0x26c] sm:$0xf]
        %v401 = vld [vmem:[%s194 + $0x270] sm:$0xf]
        %v402 = vld [vmem:[%s194 + $0x274] sm:$0xf]
        %v403 = vld [vmem:[%s194 + $0x278] sm:$0xf]
        %v404 = vld [vmem:[%s194 + $0x27c] sm:$0xf]
        %v405 = vld [vmem:[%s194 + $0x280] sm:$0xf]
        %v406 = vld [vmem:[%s194 + $0x284] sm:$0xf]
        %v407 = vld [vmem:[%s194 + $0x288] sm:$0xf]
        %v408 = vld [vmem:[%s194 + $0x28c] sm:$0xf]
        %v409 = vld [vmem:[%s194 + $0x290] sm:$0xf]
        %v410 = vld [vmem:[%s194 + $0x294] sm:$0xf]
        %v411 = vld [vmem:[%s194 + $0x298] sm:$0xf]
        %v412 = vld [vmem:[%s194 + $0x29c] sm:$0xf]
        %v413 = vld [vmem:[%s194 + $0x2a0] sm:$0xf]
        %v414 = vld [vmem:[%s194 + $0x2a4] sm:$0xf]
        %v415 = vld [vmem:[%s194 + $0x2a8] sm:$0xf]
        %v416 = vld [vmem:[%s194 + $0x2ac] sm:$0xf]
        %v417 = vld [vmem:[%s194 + $0x2b0] sm:$0xf]
        %v418 = vld [vmem:[%s194 + $0x2b4] sm:$0xf]
        %v419 = vld [vmem:[%s194 + $0x2b8] sm:$0xf]
        %v420 = vld [vmem:[%s194 + $0x2bc] sm:$0xf]
        %v421 = vld [vmem:[%s194 + $0x2c0] sm:$0xf]
        %v422 = vld [vmem:[%s194 + $0x2c4] sm:$0xf]
        %v423 = vld [vmem:[%s194 + $0x2c8] sm:$0xf]
        %v424 = vld [vmem:[%s194 + $0x2cc] sm:$0xf]
        %v425 = vld [vmem:[%s194 + $0x2d0] sm:$0xf]
        %v426 = vld [vmem:[%s194 + $0x2d4] sm:$0xf]
        %v427 = vld [vmem:[%s194 + $0x2d8] sm:$0xf]
        %v428 = vld [vmem:[%s194 + $0x2dc] sm:$0xf]
        %v429 = vld [vmem:[%s194 + $0x2e0] sm:$0xf]
        %v430 = vld [vmem:[%s194 + $0x2e4] sm:$0xf]
        %v431 = vld [vmem:[%s194 + $0x2e8] sm:$0xf]
        %v432 = vld [vmem:[%s194 + $0x2ec] sm:$0xf]
        %v433 = vld [vmem:[%s194 + $0x2f0] sm:$0xf]
        %v434 = vld [vmem:[%s194 + $0x2f4] sm:$0xf]
        %v435 = vld [vmem:[%s194 + $0x2f8] sm:$0xf]
        %v436 = vld [vmem:[%s194 + $0x2fc] sm:$0xf]
        %v437 = vld [vmem:[%s194 + $0x300] sm:$0xf]
        %v438 = vld [vmem:[%s194 + $0x304] sm:$0xf]
        %v439 = vld [vmem:[%s194 + $0x308] sm:$0xf]
        %v440 = vld [vmem:[%s194 + $0x30c] sm:$0xf]
        %v441 = vld [vmem:[%s194 + $0x310] sm:$0xf]
        %v442 = vld [vmem:[%s194 + $0x314] sm:$0xf]
        %v443 = vld [vmem:[%s194 + $0x318] sm:$0xf]
        %v444 = vld [vmem:[%s194 + $0x31c] sm:$0xf]
        %v445 = vld [vmem:[%s194 + $0x320] sm:$0xf]
        %v446 = vld [vmem:[%s194 + $0x324] sm:$0xf]
        %v447 = vld [vmem:[%s194 + $0x328] sm:$0xf]
        %v448 = vld [vmem:[%s194 + $0x32c] sm:$0xf]
        %v449 = vld [vmem:[%s194 + $0x330] sm:$0xf]
        %v450 = vld [vmem:[%s194 + $0x334] sm:$0xf]
        %v451 = vld [vmem:[%s194 + $0x338] sm:$0xf]
        %v452 = vld [vmem:[%s194 + $0x33c] sm:$0xf]
        %v453 = vld [vmem:[%s194 + $0x340] sm:$0xf]
        %v454 = vld [vmem:[%s194 + $0x344] sm:$0xf]
        %v455 = vld [vmem:[%s194 + $0x348] sm:$0xf]
        %v456 = vld [vmem:[%s194 + $0x34c] sm:$0xf]
        %v457 = vld [vmem:[%s194 + $0x350] sm:$0xf]
        %v458 = vld [vmem:[%s194 + $0x354] sm:$0xf]
        %v459 = vld [vmem:[%s194 + $0x358] sm:$0xf]
        %v460 = vld [vmem:[%s194 + $0x35c] sm:$0xf]
        %v461 = vld [vmem:[%s194 + $0x360] sm:$0xf]
        %v462 = vld [vmem:[%s194 + $0x364] sm:$0xf]
        %v463 = vld [vmem:[%s194 + $0x368] sm:$0xf]
        %v464 = vld [vmem:[%s194 + $0x36c] sm:$0xf]
        %v465 = vld [vmem:[%s194 + $0x370] sm:$0xf]
        %v466 = vld [vmem:[%s194 + $0x374] sm:$0xf]
        %v467 = vld [vmem:[%s194 + $0x378] sm:$0xf]
        %v468 = vld [vmem:[%s194 + $0x37c] sm:$0xf]
        %v469 = vld [vmem:[%s194 + $0x380] sm:$0xf]
        %v470 = vld [vmem:[%s194 + $0x384] sm:$0xf]
        %v471 = vld [vmem:[%s194 + $0x388] sm:$0xf]
        %v472 = vld [vmem:[%s194 + $0x38c] sm:$0xf]
        %v473 = vld [vmem:[%s194 + $0x390] sm:$0xf]
        %v474 = vld [vmem:[%s194 + $0x394] sm:$0xf]
        %v475 = vld [vmem:[%s194 + $0x398] sm:$0xf]
        %v476 = vld [vmem:[%s194 + $0x39c] sm:$0xf]
        %v477 = vld [vmem:[%s194 + $0x3a0] sm:$0xf]
        %v478 = vld [vmem:[%s194 + $0x3a4] sm:$0xf]
        %v479 = vld [vmem:[%s194 + $0x3a8] sm:$0xf]
        %v480 = vld [vmem:[%s194 + $0x3ac] sm:$0xf]
        %v481 = vld [vmem:[%s194 + $0x3b0] sm:$0xf]
        %v482 = vld [vmem:[%s194 + $0x3b4] sm:$0xf]
        %v483 = vld [vmem:[%s194 + $0x3b8] sm:$0xf]
        %v484 = vld [vmem:[%s194 + $0x3bc] sm:$0xf]
        %v485 = vld [vmem:[%s194 + $0x3c0] sm:$0xf]
        %v486 = vld [vmem:[%s194 + $0x3c4] sm:$0xf]
        %v487 = vld [vmem:[%s194 + $0x3c8] sm:$0xf]
        %v488 = vld [vmem:[%s194 + $0x3cc] sm:$0xf]
        %v489 = vld [vmem:[%s194 + $0x3d0] sm:$0xf]
        %v490 = vld [vmem:[%s194 + $0x3d4] sm:$0xf]
        %v491 = vld [vmem:[%s194 + $0x3d8] sm:$0xf]
        %v492 = vld [vmem:[%s194 + $0x3dc] sm:$0xf]
        %v493 = vld [vmem:[%s194 + $0x3e0] sm:$0xf]
        %v494 = vld [vmem:[%s194 + $0x3e4] sm:$0xf]
        %v495 = vld [vmem:[%s194 + $0x3e8] sm:$0xf]
        %v496 = vld [vmem:[%s194 + $0x3ec] sm:$0xf]
        %v497 = vld [vmem:[%s194 + $0x3f0] sm:$0xf]
        %v498 = vld [vmem:[%s194 + $0x3f4] sm:$0xf]
        %v499 = vld [vmem:[%s194 + $0x3f8] sm:$0xf]
        %v500 = vld [vmem:[%s194 + $0x3fc] sm:$0xf]
        %v501 = vld [vmem:[%s194 + $0x400] sm:$0xf]
        %v502 = vld [vmem:[%s194 + $0x404] sm:$0xf]
        %v503 = vld [vmem:[%s194 + $0x408] sm:$0xf]
        %v504 = vld [vmem:[%s194 + $0x40c] sm:$0xf]
        %v505 = vld [vmem:[%s194 + $0x410] sm:$0xf]
        %v506 = vld [vmem:[%s194 + $0x414] sm:$0xf]
        %v507 = vld [vmem:[%s194 + $0x418] sm:$0xf]
        %v508 = vld [vmem:[%s194 + $0x41c] sm:$0xf]
        %v509 = vld [vmem:[%s194 + $0x420] sm:$0xf]
        %v510 = vld [vmem:[%s194 + $0x424] sm:$0xf]
        %v511 = vld [vmem:[%s194 + $0x428] sm:$0xf]
        %v512 = vld [vmem:[%s194 + $0x42c] sm:$0xf]
        %v513 = vld [vmem:[%s194 + $0x430] sm:$0xf]
        %v514 = vld [vmem:[%s194 + $0x434] sm:$0xf]
        %v515 = vld [vmem:[%s194 + $0x438] sm:$0xf]
        %v516 = vld [vmem:[%s194 + $0x43c] sm:$0xf]
        %v517 = vld [vmem:[%s194 + $0x440] sm:$0xf]
        %v518 = vld [vmem:[%s194 + $0x444] sm:$0xf]
        %v519 = vld [vmem:[%s194 + $0x448] sm:$0xf]
        %v520 = vld [vmem:[%s194 + $0x44c] sm:$0xf]
        %v521 = vld [vmem:[%s194 + $0x450] sm:$0xf]
        %v522 = vld [vmem:[%s194 + $0x454] sm:$0xf]
        %v523 = vld [vmem:[%s194 + $0x458] sm:$0xf]
        %v524 = vld [vmem:[%s194 + $0x45c] sm:$0xf]
        %v525 = vld [vmem:[%s194 + $0x460] sm:$0xf]
        %v526 = vld [vmem:[%s194 + $0x464] sm:$0xf]
        %v527 = vld [vmem:[%s194 + $0x468] sm:$0xf]
        %v528 = vld [vmem:[%s194 + $0x46c] sm:$0xf]
        %v529 = vld [vmem:[%s194 + $0x470] sm:$0xf]
        %v530 = vld [vmem:[%s194 + $0x474] sm:$0xf]
        %v531 = vld [vmem:[%s194 + $0x478] sm:$0xf]
        %v532 = vld [vmem:[%s194 + $0x47c] sm:$0xf]
        %v533 = vld [vmem:[%s194 + $0x480] sm:$0xf]
        %v534 = vld [vmem:[%s194 + $0x484] sm:$0xf]
        %v535 = vld [vmem:[%s194 + $0x488] sm:$0xf]
        %v536 = vld [vmem:[%s194 + $0x48c] sm:$0xf]
        %v537 = vld [vmem:[%s194 + $0x490] sm:$0xf]
        %v538 = vld [vmem:[%s194 + $0x494] sm:$0xf]
        %v539 = vld [vmem:[%s194 + $0x498] sm:$0xf]
        %v540 = vld [vmem:[%s194 + $0x49c] sm:$0xf]
        %v541 = vld [vmem:[%s194 + $0x4a0] sm:$0xf]
        %v542 = vld [vmem:[%s194 + $0x4a4] sm:$0xf]
        %v543 = vld [vmem:[%s194 + $0x4a8] sm:$0xf]
        %v544 = vld [vmem:[%s194 + $0x4ac] sm:$0xf]
        %v545 = vld [vmem:[%s194 + $0x4b0] sm:$0xf]
        %v546 = vld [vmem:[%s194 + $0x4b4] sm:$0xf]
        %v547 = vld [vmem:[%s194 + $0x4b8] sm:$0xf]
        %v548 = vld [vmem:[%s194 + $0x4bc] sm:$0xf]
        %v549 = vld [vmem:[%s194 + $0x4c0] sm:$0xf]
        %v550 = vld [vmem:[%s194 + $0x4c4] sm:$0xf]
        %v551 = vld [vmem:[%s194 + $0x4c8] sm:$0xf]
        %v552 = vld [vmem:[%s194 + $0x4cc] sm:$0xf]
        %v553 = vld [vmem:[%s194 + $0x4d0] sm:$0xf]
        %v554 = vld [vmem:[%s194 + $0x4d4] sm:$0xf]
        %v555 = vld [vmem:[%s194 + $0x4d8] sm:$0xf]
        %v556 = vld [vmem:[%s194 + $0x4dc] sm:$0xf]
        %v557 = vld [vmem:[%s194 + $0x4e0] sm:$0xf]
        %v558 = vld [vmem:[%s194 + $0x4e4] sm:$0xf]
        %v559 = vld [vmem:[%s194 + $0x4e8] sm:$0xf]
        %v560 = vld [vmem:[%s194 + $0x4ec] sm:$0xf]
        %v561 = vld [vmem:[%s194 + $0x4f0] sm:$0xf]
        %v562 = vld [vmem:[%s194 + $0x4f4] sm:$0xf]
        %v563 = vld [vmem:[%s194 + $0x4f8] sm:$0xf]
        %v564 = vld [vmem:[%s194 + $0x4fc] sm:$0xf]
        %v565 = vld [vmem:[%s194 + $0x500] sm:$0xf]
        %v566 = vld [vmem:[%s194 + $0x504] sm:$0xf]
        %v567 = vld [vmem:[%s194 + $0x508] sm:$0xf]
        %v568 = vld [vmem:[%s194 + $0x50c] sm:$0xf]
        %v569 = vld [vmem:[%s194 + $0x510] sm:$0xf]
        %v570 = vld [vmem:[%s194 + $0x514] sm:$0xf]
        %v571 = vld [vmem:[%s194 + $0x518] sm:$0xf]
        %v572 = vld [vmem:[%s194 + $0x51c] sm:$0xf]
        %v573 = vld [vmem:[%s194 + $0x520] sm:$0xf]
        %v574 = vld [vmem:[%s194 + $0x524] sm:$0xf]
        %v575 = vld [vmem:[%s194 + $0x528] sm:$0xf]
        %v576 = vld [vmem:[%s194 + $0x52c] sm:$0xf]
        %v577 = vld [vmem:[%s194 + $0x530] sm:$0xf]
        %v578 = vld [vmem:[%s194 + $0x534] sm:$0xf]
        %v579 = vld [vmem:[%s194 + $0x538] sm:$0xf]
        %v580 = vld [vmem:[%s194 + $0x53c] sm:$0xf]
        %v581 = vld [vmem:[%s194 + $0x540] sm:$0xf]
        %v582 = vld [vmem:[%s194 + $0x544] sm:$0xf]
        %v583 = vld [vmem:[%s194 + $0x548] sm:$0xf]
        %v584 = vld [vmem:[%s194 + $0x54c] sm:$0xf]
        %v585 = vld [vmem:[%s194 + $0x550] sm:$0xf]
        %v586 = vld [vmem:[%s194 + $0x554] sm:$0xf]
        %v587 = vld [vmem:[%s194 + $0x558] sm:$0xf]
        %v588 = vld [vmem:[%s194 + $0x55c] sm:$0xf]
        %v589 = vld [vmem:[%s194 + $0x560] sm:$0xf]
        %v590 = vld [vmem:[%s194 + $0x564] sm:$0xf]
        %v591 = vld [vmem:[%s194 + $0x568] sm:$0xf]
        %v592 = vld [vmem:[%s194 + $0x56c] sm:$0xf]
        %v593 = vld [vmem:[%s194 + $0x570] sm:$0xf]
        %v594 = vld [vmem:[%s194 + $0x574] sm:$0xf]
        %v595 = vld [vmem:[%s194 + $0x578] sm:$0xf]
        %v596 = vld [vmem:[%s194 + $0x57c] sm:$0xf]
        %v597 = vld [vmem:[%s194 + $0x580] sm:$0xf]
        %v598 = vld [vmem:[%s194 + $0x584] sm:$0xf]
        %v599 = vld [vmem:[%s194 + $0x588] sm:$0xf]
        %v600 = vld [vmem:[%s194 + $0x58c] sm:$0xf]
        %v601 = vld [vmem:[%s194 + $0x590] sm:$0xf]
        %v602 = vld [vmem:[%s194 + $0x594] sm:$0xf]
        %v603 = vld [vmem:[%s194 + $0x598] sm:$0xf]
        %v604 = vld [vmem:[%s194 + $0x59c] sm:$0xf]
        %v605 = vld [vmem:[%s194 + $0x5a0] sm:$0xf]
        %v606 = vld [vmem:[%s194 + $0x5a4] sm:$0xf]
        %v607 = vld [vmem:[%s194 + $0x5a8] sm:$0xf]
        %v608 = vld [vmem:[%s194 + $0x5ac] sm:$0xf]
        %v609 = vld [vmem:[%s194 + $0x5b0] sm:$0xf]
        %v610 = vld [vmem:[%s194 + $0x5b4] sm:$0xf]
        %v611 = vld [vmem:[%s194 + $0x5b8] sm:$0xf]
        %v612 = vld [vmem:[%s194 + $0x5bc] sm:$0xf]
        %v613 = vld [vmem:[%s194 + $0x5c0] sm:$0xf]
        %v614 = vld [vmem:[%s194 + $0x5c4] sm:$0xf]
        %v615 = vld [vmem:[%s194 + $0x5c8] sm:$0xf]
        %v616 = vld [vmem:[%s194 + $0x5cc] sm:$0xf]
        %v617 = vld [vmem:[%s194 + $0x5d0] sm:$0xf]
        %v618 = vld [vmem:[%s194 + $0x5d4] sm:$0xf]
        %v619 = vld [vmem:[%s194 + $0x5d8] sm:$0xf]
        %v620 = vld [vmem:[%s194 + $0x5dc] sm:$0xf]
        %v621 = vld [vmem:[%s194 + $0x5e0] sm:$0xf]
        %v622 = vld [vmem:[%s194 + $0x5e4] sm:$0xf]
        %v623 = vld [vmem:[%s194 + $0x5e8] sm:$0xf]
        %v624 = vld [vmem:[%s194 + $0x5ec] sm:$0xf]
        %v625 = vld [vmem:[%s194 + $0x5f0] sm:$0xf]
        %v626 = vld [vmem:[%s194 + $0x5f4] sm:$0xf]
        %v627 = vld [vmem:[%s194 + $0x5f8] sm:$0xf]
        %v628 = vld [vmem:[%s194 + $0x5fc] sm:$0xf]
        %v629 = vld [vmem:[%s194 + $0x600] sm:$0xf]
        %v630 = vld [vmem:[%s194 + $0x604] sm:$0xf]
        %v631 = vld [vmem:[%s194 + $0x608] sm:$0xf]
        %v632 = vld [vmem:[%s194 + $0x60c] sm:$0xf]
        %v633 = vld [vmem:[%s194 + $0x610] sm:$0xf]
        %v634 = vld [vmem:[%s194 + $0x614] sm:$0xf]
        %v635 = vld [vmem:[%s194 + $0x618] sm:$0xf]
        %v636 = vld [vmem:[%s194 + $0x61c] sm:$0xf]
        %v637 = vld [vmem:[%s194 + $0x620] sm:$0xf]
        %v638 = vld [vmem:[%s194 + $0x624] sm:$0xf]
        %v639 = vld [vmem:[%s194 + $0x628] sm:$0xf]
        %v640 = vld [vmem:[%s194 + $0x62c] sm:$0xf]
        %v641 = vld [vmem:[%s194 + $0x630] sm:$0xf]
        %v642 = vld [vmem:[%s194 + $0x634] sm:$0xf]
        %v643 = vld [vmem:[%s194 + $0x638] sm:$0xf]
        %v644 = vld [vmem:[%s194 + $0x63c] sm:$0xf]
        %v645 = vld [vmem:[%s194 + $0x640] sm:$0xf]
        %v646 = vld [vmem:[%s194 + $0x644] sm:$0xf]
        %v647 = vld [vmem:[%s194 + $0x648] sm:$0xf]
        %v648 = vld [vmem:[%s194 + $0x64c] sm:$0xf]
        %v649 = vld [vmem:[%s194 + $0x650] sm:$0xf]
        %v650 = vld [vmem:[%s194 + $0x654] sm:$0xf]
        %v651 = vld [vmem:[%s194 + $0x658] sm:$0xf]
        %v652 = vld [vmem:[%s194 + $0x65c] sm:$0xf]
        %v653 = vld [vmem:[%s194 + $0x660] sm:$0xf]
        %v654 = vld [vmem:[%s194 + $0x664] sm:$0xf]
        %v655 = vld [vmem:[%s194 + $0x668] sm:$0xf]
        %v656 = vld [vmem:[%s194 + $0x66c] sm:$0xf]
        %v657 = vld [vmem:[%s194 + $0x670] sm:$0xf]
        %v658 = vld [vmem:[%s194 + $0x674] sm:$0xf]
        %v659 = vld [vmem:[%s194 + $0x678] sm:$0xf]
        %v660 = vld [vmem:[%s194 + $0x67c] sm:$0xf]
        %v661 = vld [vmem:[%s194 + $0x680] sm:$0xf]
        %v662 = vld [vmem:[%s194 + $0x684] sm:$0xf]
        %v663 = vld [vmem:[%s194 + $0x688] sm:$0xf]
        %v664 = vld [vmem:[%s194 + $0x68c] sm:$0xf]
        %v665 = vld [vmem:[%s194 + $0x690] sm:$0xf]
        %v666 = vld [vmem:[%s194 + $0x694] sm:$0xf]
        %v667 = vld [vmem:[%s194 + $0x698] sm:$0xf]
        %v668 = vld [vmem:[%s194 + $0x69c] sm:$0xf]
        %v669 = vld [vmem:[%s194 + $0x6a0] sm:$0xf]
        %v670 = vld [vmem:[%s194 + $0x6a4] sm:$0xf]
        %v671 = vld [vmem:[%s194 + $0x6a8] sm:$0xf]
        %v672 = vld [vmem:[%s194 + $0x6ac] sm:$0xf]
        %v673 = vld [vmem:[%s194 + $0x6b0] sm:$0xf]
        %v674 = vld [vmem:[%s194 + $0x6b4] sm:$0xf]
        %v675 = vld [vmem:[%s194 + $0x6b8] sm:$0xf]
        %v676 = vld [vmem:[%s194 + $0x6bc] sm:$0xf]
        %v677 = vld [vmem:[%s194 + $0x6c0] sm:$0xf]
        %v678 = vld [vmem:[%s194 + $0x6c4] sm:$0xf]
        %v679 = vld [vmem:[%s194 + $0x6c8] sm:$0xf]
        %v680 = vld [vmem:[%s194 + $0x6cc] sm:$0xf]
        %v681 = vld [vmem:[%s194 + $0x6d0] sm:$0xf]
        %v682 = vld [vmem:[%s194 + $0x6d4] sm:$0xf]
        %v683 = vld [vmem:[%s194 + $0x6d8] sm:$0xf]
        %v684 = vld [vmem:[%s194 + $0x6dc] sm:$0xf]
        %v685 = vld [vmem:[%s194 + $0x6e0] sm:$0xf]
        %v686 = vld [vmem:[%s194 + $0x6e4] sm:$0xf]
        %v687 = vld [vmem:[%s194 + $0x6e8] sm:$0xf]
        %v688 = vld [vmem:[%s194 + $0x6ec] sm:$0xf]
        %v689 = vld [vmem:[%s194 + $0x6f0] sm:$0xf]
        %v690 = vld [vmem:[%s194 + $0x6f4] sm:$0xf]
        %v691 = vld [vmem:[%s194 + $0x6f8] sm:$0xf]
        %v692 = vld [vmem:[%s194 + $0x6fc] sm:$0xf]
        %v693 = vld [vmem:[%s231] sm:$0xf]
        %v694 = vld [vmem:[%s231 + $0x4] sm:$0xf]
        %v695 = vld [vmem:[%s231 + $0x8] sm:$0xf]
        %v696 = vld [vmem:[%s231 + $0xc] sm:$0x3]
        %v697 = vld [vmem:[%s234] sm:$0x1]
        %v699 = vlaneseq
        %v700 = vshrl.u32 %v699, 7
        %v701 = vsub.s32 0, %v700
        %v702 = vrot.slane %v697, %v701
        %v1152 = vunpack.c.l.b16 %v245
        %v1153 = vunpack.c.l.b16 %v246
        %v1154 = vunpack.c.l.b16 %v247
        %v1155 = vunpack.c.l.b16 %v248
        %v1156 = vunpack.c.l.b16 %v249
        %v1157 = vunpack.c.l.b16 %v250
        %v1158 = vunpack.c.l.b16 %v251
        %v1159 = vunpack.c.l.b16 %v252
        %v1160 = vunpack.c.l.b16 %v253
        %v1161 = vunpack.c.l.b16 %v254
        %v1162 = vunpack.c.l.b16 %v255
        %v1163 = vunpack.c.l.b16 %v256
        %v1164 = vunpack.c.l.b16 %v257
        %v1165 = vunpack.c.l.b16 %v258
        %v1166 = vunpack.c.l.b16 %v259
        %v1167 = vunpack.c.l.b16 %v260
        %v1168 = vunpack.c.l.b16 %v261
        %v1169 = vunpack.c.l.b16 %v262
        %v1170 = vunpack.c.l.b16 %v263
        %v1171 = vunpack.c.l.b16 %v264
        %v1172 = vunpack.c.l.b16 %v265
        %v1173 = vunpack.c.l.b16 %v266
        %v1174 = vunpack.c.l.b16 %v267
        %v1175 = vunpack.c.l.b16 %v268
        %v1176 = vunpack.c.l.b16 %v269
        %v1177 = vunpack.c.l.b16 %v270
        %v1178 = vunpack.c.l.b16 %v271
        %v1179 = vunpack.c.l.b16 %v272
        %v1180 = vunpack.c.l.b16 %v273
        %v1181 = vunpack.c.l.b16 %v274
        %v1182 = vunpack.c.l.b16 %v275
        %v1183 = vunpack.c.l.b16 %v276
        %v1184 = vunpack.c.l.b16 %v277
        %v1185 = vunpack.c.l.b16 %v278
        %v1186 = vunpack.c.l.b16 %v279
        %v1187 = vunpack.c.l.b16 %v280
        %v1188 = vunpack.c.l.b16 %v281
        %v1189 = vunpack.c.l.b16 %v282
        %v1190 = vunpack.c.l.b16 %v283
        %v1191 = vunpack.c.l.b16 %v284
        %v1192 = vunpack.c.l.b16 %v285
        %v1193 = vunpack.c.l.b16 %v286
        %v1194 = vunpack.c.l.b16 %v287
        %v1195 = vunpack.c.l.b16 %v288
        %v1196 = vunpack.c.l.b16 %v289
        %v1197 = vunpack.c.l.b16 %v290
        %v1198 = vunpack.c.l.b16 %v291
        %v1199 = vunpack.c.l.b16 %v292
        %v1200 = vunpack.c.l.b16 %v293
        %v1201 = vunpack.c.l.b16 %v294
        %v1202 = vunpack.c.l.b16 %v295
        %v1203 = vunpack.c.l.b16 %v296
        %v1204 = vunpack.c.l.b16 %v297
        %v1205 = vunpack.c.l.b16 %v298
        %v1206 = vunpack.c.l.b16 %v299
        %v1207 = vunpack.c.l.b16 %v300
        %v1208 = vunpack.c.l.b16 %v301
        %v1209 = vunpack.c.l.b16 %v302
        %v1210 = vunpack.c.l.b16 %v303
        %v1211 = vunpack.c.l.b16 %v304
        %v1212 = vunpack.c.l.b16 %v305
        %v1213 = vunpack.c.l.b16 %v306
        %v1214 = vunpack.c.l.b16 %v307
        %v1215 = vunpack.c.l.b16 %v308
        %v1216 = vunpack.c.l.b16 %v309
        %v1217 = vunpack.c.l.b16 %v310
        %v1218 = vunpack.c.l.b16 %v311
        %v1219 = vunpack.c.l.b16 %v312
        %v1220 = vunpack.c.l.b16 %v313
        %v1221 = vunpack.c.l.b16 %v314
        %v1222 = vunpack.c.l.b16 %v315
        %v1223 = vunpack.c.l.b16 %v316
        %v1224 = vunpack.c.l.b16 %v317
        %v1225 = vunpack.c.l.b16 %v318
        %v1226 = vunpack.c.l.b16 %v319
        %v1227 = vunpack.c.l.b16 %v320
        %v1228 = vunpack.c.l.b16 %v321
        %v1229 = vunpack.c.l.b16 %v322
        %v1230 = vunpack.c.l.b16 %v323
        %v1231 = vunpack.c.l.b16 %v324
        %v1232 = vunpack.c.l.b16 %v325
        %v1233 = vunpack.c.l.b16 %v326
        %v1234 = vunpack.c.l.b16 %v327
        %v1235 = vunpack.c.l.b16 %v328
        %v1236 = vunpack.c.l.b16 %v329
        %v1237 = vunpack.c.l.b16 %v330
        %v1238 = vunpack.c.l.b16 %v331
        %v1239 = vunpack.c.l.b16 %v332
        %v1240 = vunpack.c.l.b16 %v333
        %v1241 = vunpack.c.l.b16 %v334
        %v1242 = vunpack.c.l.b16 %v335
        %v1243 = vunpack.c.l.b16 %v336
        %v1244 = vunpack.c.l.b16 %v337
        %v1245 = vunpack.c.l.b16 %v338
        %v1246 = vunpack.c.l.b16 %v339
        %v1247 = vunpack.c.l.b16 %v340
        %v1248 = vunpack.c.l.b16 %v341
        %v1249 = vunpack.c.l.b16 %v342
        %v1250 = vunpack.c.l.b16 %v343
        %v1251 = vunpack.c.l.b16 %v344
        %v1252 = vunpack.c.l.b16 %v345
        %v1253 = vunpack.c.l.b16 %v346
        %v1254 = vunpack.c.l.b16 %v347
        %v1255 = vunpack.c.l.b16 %v348
        %v1256 = vunpack.c.l.b16 %v349
        %v1257 = vunpack.c.l.b16 %v350
        %v1258 = vunpack.c.l.b16 %v351
        %v1259 = vunpack.c.l.b16 %v352
        %v1260 = vunpack.c.l.b16 %v353
        %v1261 = vunpack.c.l.b16 %v354
        %v1262 = vunpack.c.l.b16 %v355
        %v1263 = vunpack.c.l.b16 %v356
        %v1264 = vunpack.c.l.b16 %v357
        %v1265 = vunpack.c.l.b16 %v358
        %v1266 = vunpack.c.l.b16 %v359
        %v1267 = vunpack.c.l.b16 %v360
        %v1268 = vunpack.c.l.b16 %v361
        %v1269 = vunpack.c.l.b16 %v362
        %v1270 = vunpack.c.l.b16 %v363
        %v1271 = vunpack.c.l.b16 %v364
        %v1272 = vunpack.c.l.b16 %v365
        %v1273 = vunpack.c.l.b16 %v366
        %v1274 = vunpack.c.l.b16 %v367
        %v1275 = vunpack.c.l.b16 %v368
        %v1276 = vunpack.c.l.b16 %v369
        %v1277 = vunpack.c.l.b16 %v370
        %v1278 = vunpack.c.l.b16 %v371
        %v1279 = vunpack.c.l.b16 %v372
        %v1280 = vunpack.c.l.b16 %v373
        %v1281 = vunpack.c.l.b16 %v374
        %v1282 = vunpack.c.l.b16 %v375
        %v1283 = vunpack.c.l.b16 %v376
        %v1284 = vunpack.c.l.b16 %v377
        %v1285 = vunpack.c.l.b16 %v378
        %v1286 = vunpack.c.l.b16 %v379
        %v1287 = vunpack.c.l.b16 %v380
        %v1288 = vunpack.c.l.b16 %v381
        %v1289 = vunpack.c.l.b16 %v382
        %v1290 = vunpack.c.l.b16 %v383
        %v1291 = vunpack.c.l.b16 %v384
        %v1292 = vunpack.c.l.b16 %v385
        %v1293 = vunpack.c.l.b16 %v386
        %v1294 = vunpack.c.l.b16 %v387
        %v1295 = vunpack.c.l.b16 %v388
        %v1296 = vunpack.c.l.b16 %v389
        %v1297 = vunpack.c.l.b16 %v390
        %v1298 = vunpack.c.l.b16 %v391
        %v1299 = vunpack.c.l.b16 %v392
        %v1300 = vunpack.c.l.b16 %v393
        %v1301 = vunpack.c.l.b16 %v394
        %v1302 = vunpack.c.l.b16 %v395
        %v1303 = vunpack.c.l.b16 %v396
        %v1304 = vunpack.c.l.b16 %v397
        %v1305 = vunpack.c.l.b16 %v398
        %v1306 = vunpack.c.l.b16 %v399
        %v1307 = vunpack.c.l.b16 %v400
        %v1308 = vunpack.c.l.b16 %v401
        %v1309 = vunpack.c.l.b16 %v402
        %v1310 = vunpack.c.l.b16 %v403
        %v1311 = vunpack.c.l.b16 %v404
        %v1312 = vunpack.c.l.b16 %v405
        %v1313 = vunpack.c.l.b16 %v406
        %v1314 = vunpack.c.l.b16 %v407
        %v1315 = vunpack.c.l.b16 %v408
        %v1316 = vunpack.c.l.b16 %v409
        %v1317 = vunpack.c.l.b16 %v410
        %v1318 = vunpack.c.l.b16 %v411
        %v1319 = vunpack.c.l.b16 %v412
        %v1320 = vunpack.c.l.b16 %v413
        %v1321 = vunpack.c.l.b16 %v414
        %v1322 = vunpack.c.l.b16 %v415
        %v1323 = vunpack.c.l.b16 %v416
        %v1324 = vunpack.c.l.b16 %v417
        %v1325 = vunpack.c.l.b16 %v418
        %v1326 = vunpack.c.l.b16 %v419
        %v1327 = vunpack.c.l.b16 %v420
        %v1328 = vunpack.c.l.b16 %v421
        %v1329 = vunpack.c.l.b16 %v422
        %v1330 = vunpack.c.l.b16 %v423
        %v1331 = vunpack.c.l.b16 %v424
        %v1332 = vunpack.c.l.b16 %v425
        %v1333 = vunpack.c.l.b16 %v426
        %v1334 = vunpack.c.l.b16 %v427
        %v1335 = vunpack.c.l.b16 %v428
        %v1336 = vunpack.c.l.b16 %v429
        %v1337 = vunpack.c.l.b16 %v430
        %v1338 = vunpack.c.l.b16 %v431
        %v1339 = vunpack.c.l.b16 %v432
        %v1340 = vunpack.c.l.b16 %v433
        %v1341 = vunpack.c.l.b16 %v434
        %v1342 = vunpack.c.l.b16 %v435
        %v1343 = vunpack.c.l.b16 %v436
        %v1344 = vunpack.c.l.b16 %v437
        %v1345 = vunpack.c.l.b16 %v438
        %v1346 = vunpack.c.l.b16 %v439
        %v1347 = vunpack.c.l.b16 %v440
        %v1348 = vunpack.c.l.b16 %v441
        %v1349 = vunpack.c.l.b16 %v442
        %v1350 = vunpack.c.l.b16 %v443
        %v1351 = vunpack.c.l.b16 %v444
        %v1352 = vunpack.c.l.b16 %v445
        %v1353 = vunpack.c.l.b16 %v446
        %v1354 = vunpack.c.l.b16 %v447
        %v1355 = vunpack.c.l.b16 %v448
        %v1356 = vunpack.c.l.b16 %v449
        %v1357 = vunpack.c.l.b16 %v450
        %v1358 = vunpack.c.l.b16 %v451
        %v1359 = vunpack.c.l.b16 %v452
        %v1360 = vunpack.c.l.b16 %v453
        %v1361 = vunpack.c.l.b16 %v454
        %v1362 = vunpack.c.l.b16 %v455
        %v1363 = vunpack.c.l.b16 %v456
        %v1364 = vunpack.c.l.b16 %v457
        %v1365 = vunpack.c.l.b16 %v458
        %v1366 = vunpack.c.l.b16 %v459
        %v1367 = vunpack.c.l.b16 %v460
        %v1368 = vunpack.c.l.b16 %v461
        %v1369 = vunpack.c.l.b16 %v462
        %v1370 = vunpack.c.l.b16 %v463
        %v1371 = vunpack.c.l.b16 %v464
        %v1372 = vunpack.c.l.b16 %v465
        %v1373 = vunpack.c.l.b16 %v466
        %v1374 = vunpack.c.l.b16 %v467
        %v1375 = vunpack.c.l.b16 %v468
        %v1376 = vunpack.c.l.b16 %v469
        %v1377 = vunpack.c.l.b16 %v470
        %v1378 = vunpack.c.l.b16 %v471
        %v1379 = vunpack.c.l.b16 %v472
        %v1380 = vunpack.c.l.b16 %v473
        %v1381 = vunpack.c.l.b16 %v474
        %v1382 = vunpack.c.l.b16 %v475
        %v1383 = vunpack.c.l.b16 %v476
        %v1384 = vunpack.c.l.b16 %v477
        %v1385 = vunpack.c.l.b16 %v478
        %v1386 = vunpack.c.l.b16 %v479
        %v1387 = vunpack.c.l.b16 %v480
        %v1388 = vunpack.c.l.b16 %v481
        %v1389 = vunpack.c.l.b16 %v482
        %v1390 = vunpack.c.l.b16 %v483
        %v1391 = vunpack.c.l.b16 %v484
        %v1392 = vunpack.c.l.b16 %v485
        %v1393 = vunpack.c.l.b16 %v486
        %v1394 = vunpack.c.l.b16 %v487
        %v1395 = vunpack.c.l.b16 %v488
        %v1396 = vunpack.c.l.b16 %v489
        %v1397 = vunpack.c.l.b16 %v490
        %v1398 = vunpack.c.l.b16 %v491
        %v1399 = vunpack.c.l.b16 %v492
        %v1400 = vunpack.c.l.b16 %v493
        %v1401 = vunpack.c.l.b16 %v494
        %v1402 = vunpack.c.l.b16 %v495
        %v1403 = vunpack.c.l.b16 %v496
        %v1404 = vunpack.c.l.b16 %v497
        %v1405 = vunpack.c.l.b16 %v498
        %v1406 = vunpack.c.l.b16 %v499
        %v1407 = vunpack.c.l.b16 %v500
        %v1408 = vunpack.c.l.b16 %v501
        %v1409 = vunpack.c.l.b16 %v502
        %v1410 = vunpack.c.l.b16 %v503
        %v1411 = vunpack.c.l.b16 %v504
        %v1412 = vunpack.c.l.b16 %v505
        %v1413 = vunpack.c.l.b16 %v506
        %v1414 = vunpack.c.l.b16 %v507
        %v1415 = vunpack.c.l.b16 %v508
        %v1416 = vunpack.c.l.b16 %v509
        %v1417 = vunpack.c.l.b16 %v510
        %v1418 = vunpack.c.l.b16 %v511
        %v1419 = vunpack.c.l.b16 %v512
        %v1420 = vunpack.c.l.b16 %v513
        %v1421 = vunpack.c.l.b16 %v514
        %v1422 = vunpack.c.l.b16 %v515
        %v1423 = vunpack.c.l.b16 %v516
        %v1424 = vunpack.c.l.b16 %v517
        %v1425 = vunpack.c.l.b16 %v518
        %v1426 = vunpack.c.l.b16 %v519
        %v1427 = vunpack.c.l.b16 %v520
        %v1428 = vunpack.c.l.b16 %v521
        %v1429 = vunpack.c.l.b16 %v522
        %v1430 = vunpack.c.l.b16 %v523
        %v1431 = vunpack.c.l.b16 %v524
        %v1432 = vunpack.c.l.b16 %v525
        %v1433 = vunpack.c.l.b16 %v526
        %v1434 = vunpack.c.l.b16 %v527
        %v1435 = vunpack.c.l.b16 %v528
        %v1436 = vunpack.c.l.b16 %v529
        %v1437 = vunpack.c.l.b16 %v530
        %v1438 = vunpack.c.l.b16 %v531
        %v1439 = vunpack.c.l.b16 %v532
        %v1440 = vunpack.c.l.b16 %v533
        %v1441 = vunpack.c.l.b16 %v534
        %v1442 = vunpack.c.l.b16 %v535
        %v1443 = vunpack.c.l.b16 %v536
        %v1444 = vunpack.c.l.b16 %v537
        %v1445 = vunpack.c.l.b16 %v538
        %v1446 = vunpack.c.l.b16 %v539
        %v1447 = vunpack.c.l.b16 %v540
        %v1448 = vunpack.c.l.b16 %v541
        %v1449 = vunpack.c.l.b16 %v542
        %v1450 = vunpack.c.l.b16 %v543
        %v1451 = vunpack.c.l.b16 %v544
        %v1452 = vunpack.c.l.b16 %v545
        %v1453 = vunpack.c.l.b16 %v546
        %v1454 = vunpack.c.l.b16 %v547
        %v1455 = vunpack.c.l.b16 %v548
        %v1456 = vunpack.c.l.b16 %v549
        %v1457 = vunpack.c.l.b16 %v550
        %v1458 = vunpack.c.l.b16 %v551
        %v1459 = vunpack.c.l.b16 %v552
        %v1460 = vunpack.c.l.b16 %v553
        %v1461 = vunpack.c.l.b16 %v554
        %v1462 = vunpack.c.l.b16 %v555
        %v1463 = vunpack.c.l.b16 %v556
        %v1464 = vunpack.c.l.b16 %v557
        %v1465 = vunpack.c.l.b16 %v558
        %v1466 = vunpack.c.l.b16 %v559
        %v1467 = vunpack.c.l.b16 %v560
        %v1468 = vunpack.c.l.b16 %v561
        %v1469 = vunpack.c.l.b16 %v562
        %v1470 = vunpack.c.l.b16 %v563
        %v1471 = vunpack.c.l.b16 %v564
        %v1472 = vunpack.c.l.b16 %v565
        %v1473 = vunpack.c.l.b16 %v566
        %v1474 = vunpack.c.l.b16 %v567
        %v1475 = vunpack.c.l.b16 %v568
        %v1476 = vunpack.c.l.b16 %v569
        %v1477 = vunpack.c.l.b16 %v570
        %v1478 = vunpack.c.l.b16 %v571
        %v1479 = vunpack.c.l.b16 %v572
        %v1480 = vunpack.c.l.b16 %v573
        %v1481 = vunpack.c.l.b16 %v574
        %v1482 = vunpack.c.l.b16 %v575
        %v1483 = vunpack.c.l.b16 %v576
        %v1484 = vunpack.c.l.b16 %v577
        %v1485 = vunpack.c.l.b16 %v578
        %v1486 = vunpack.c.l.b16 %v579
        %v1487 = vunpack.c.l.b16 %v580
        %v1488 = vunpack.c.l.b16 %v581
        %v1489 = vunpack.c.l.b16 %v582
        %v1490 = vunpack.c.l.b16 %v583
        %v1491 = vunpack.c.l.b16 %v584
        %v1492 = vunpack.c.l.b16 %v585
        %v1493 = vunpack.c.l.b16 %v586
        %v1494 = vunpack.c.l.b16 %v587
        %v1495 = vunpack.c.l.b16 %v588
        %v1496 = vunpack.c.l.b16 %v589
        %v1497 = vunpack.c.l.b16 %v590
        %v1498 = vunpack.c.l.b16 %v591
        %v1499 = vunpack.c.l.b16 %v592
        %v1500 = vunpack.c.l.b16 %v593
        %v1501 = vunpack.c.l.b16 %v594
        %v1502 = vunpack.c.l.b16 %v595
        %v1503 = vunpack.c.l.b16 %v596
        %v1504 = vunpack.c.l.b16 %v597
        %v1505 = vunpack.c.l.b16 %v598
        %v1506 = vunpack.c.l.b16 %v599
        %v1507 = vunpack.c.l.b16 %v600
        %v1508 = vunpack.c.l.b16 %v601
        %v1509 = vunpack.c.l.b16 %v602
        %v1510 = vunpack.c.l.b16 %v603
        %v1511 = vunpack.c.l.b16 %v604
        %v1512 = vunpack.c.l.b16 %v605
        %v1513 = vunpack.c.l.b16 %v606
        %v1514 = vunpack.c.l.b16 %v607
        %v1515 = vunpack.c.l.b16 %v608
        %v1516 = vunpack.c.l.b16 %v609
        %v1517 = vunpack.c.l.b16 %v610
        %v1518 = vunpack.c.l.b16 %v611
        %v1519 = vunpack.c.l.b16 %v612
        %v1520 = vunpack.c.l.b16 %v613
        %v1521 = vunpack.c.l.b16 %v614
        %v1522 = vunpack.c.l.b16 %v615
        %v1523 = vunpack.c.l.b16 %v616
        %v1524 = vunpack.c.l.b16 %v617
        %v1525 = vunpack.c.l.b16 %v618
        %v1526 = vunpack.c.l.b16 %v619
        %v1527 = vunpack.c.l.b16 %v620
        %v1528 = vunpack.c.l.b16 %v621
        %v1529 = vunpack.c.l.b16 %v622
        %v1530 = vunpack.c.l.b16 %v623
        %v1531 = vunpack.c.l.b16 %v624
        %v1532 = vunpack.c.l.b16 %v625
        %v1533 = vunpack.c.l.b16 %v626
        %v1534 = vunpack.c.l.b16 %v627
        %v1535 = vunpack.c.l.b16 %v628
        %v1536 = vunpack.c.l.b16 %v629
        %v1537 = vunpack.c.l.b16 %v630
        %v1538 = vunpack.c.l.b16 %v631
        %v1539 = vunpack.c.l.b16 %v632
        %v1540 = vunpack.c.l.b16 %v633
        %v1541 = vunpack.c.l.b16 %v634
        %v1542 = vunpack.c.l.b16 %v635
        %v1543 = vunpack.c.l.b16 %v636
        %v1544 = vunpack.c.l.b16 %v637
        %v1545 = vunpack.c.l.b16 %v638
        %v1546 = vunpack.c.l.b16 %v639
        %v1547 = vunpack.c.l.b16 %v640
        %v1548 = vunpack.c.l.b16 %v641
        %v1549 = vunpack.c.l.b16 %v642
        %v1550 = vunpack.c.l.b16 %v643
        %v1551 = vunpack.c.l.b16 %v644
        %v1552 = vunpack.c.l.b16 %v645
        %v1553 = vunpack.c.l.b16 %v646
        %v1554 = vunpack.c.l.b16 %v647
        %v1555 = vunpack.c.l.b16 %v648
        %v1556 = vunpack.c.l.b16 %v649
        %v1557 = vunpack.c.l.b16 %v650
        %v1558 = vunpack.c.l.b16 %v651
        %v1559 = vunpack.c.l.b16 %v652
        %v1560 = vunpack.c.l.b16 %v653
        %v1561 = vunpack.c.l.b16 %v654
        %v1562 = vunpack.c.l.b16 %v655
        %v1563 = vunpack.c.l.b16 %v656
        %v1564 = vunpack.c.l.b16 %v657
        %v1565 = vunpack.c.l.b16 %v658
        %v1566 = vunpack.c.l.b16 %v659
        %v1567 = vunpack.c.l.b16 %v660
        %v1568 = vunpack.c.l.b16 %v661
        %v1569 = vunpack.c.l.b16 %v662
        %v1570 = vunpack.c.l.b16 %v663
        %v1571 = vunpack.c.l.b16 %v664
        %v1572 = vunpack.c.l.b16 %v665
        %v1573 = vunpack.c.l.b16 %v666
        %v1574 = vunpack.c.l.b16 %v667
        %v1575 = vunpack.c.l.b16 %v668
        %v1576 = vunpack.c.l.b16 %v669
        %v1577 = vunpack.c.l.b16 %v670
        %v1578 = vunpack.c.l.b16 %v671
        %v1579 = vunpack.c.l.b16 %v672
        %v1580 = vunpack.c.l.b16 %v673
        %v1581 = vunpack.c.l.b16 %v674
        %v1582 = vunpack.c.l.b16 %v675
        %v1583 = vunpack.c.l.b16 %v676
        %v1584 = vunpack.c.l.b16 %v677
        %v1585 = vunpack.c.l.b16 %v678
        %v1586 = vunpack.c.l.b16 %v679
        %v1587 = vunpack.c.l.b16 %v680
        %v1588 = vunpack.c.l.b16 %v681
        %v1589 = vunpack.c.l.b16 %v682
        %v1590 = vunpack.c.l.b16 %v683
        %v1591 = vunpack.c.l.b16 %v684
        %v1592 = vunpack.c.l.b16 %v685
        %v1593 = vunpack.c.l.b16 %v686
        %v1594 = vunpack.c.l.b16 %v687
        %v1595 = vunpack.c.l.b16 %v688
        %v1596 = vunpack.c.l.b16 %v689
        %v1597 = vunpack.c.l.b16 %v690
        %v1598 = vunpack.c.l.b16 %v691
        %v1599 = vunpack.c.l.b16 %v692
        %v1600 = vpack.c.b16 %v1153, %v1152
        %v1601 = vpack.c.b16 %v1155, %v1154
        %v1602 = vpack.c.b16 %v1157, %v1156
        %v1603 = vpack.c.b16 %v1159, %v1158
        %v1604 = vpack.c.b16 %v1161, %v1160
        %v1605 = vpack.c.b16 %v1163, %v1162
        %v1606 = vpack.c.b16 %v1165, %v1164
        %v1607 = vpack.c.b16 %v1167, %v1166
        %v1608 = vpack.c.b16 %v1169, %v1168
        %v1609 = vpack.c.b16 %v1171, %v1170
        %v1610 = vpack.c.b16 %v1173, %v1172
        %v1611 = vpack.c.b16 %v1175, %v1174
        %v1612 = vpack.c.b16 %v1177, %v1176
        %v1613 = vpack.c.b16 %v1179, %v1178
        %v1614 = vpack.c.b16 %v1181, %v1180
        %v1615 = vpack.c.b16 %v1183, %v1182
        %v1616 = vpack.c.b16 %v1185, %v1184
        %v1617 = vpack.c.b16 %v1187, %v1186
        %v1618 = vpack.c.b16 %v1189, %v1188
        %v1619 = vpack.c.b16 %v1191, %v1190
        %v1620 = vpack.c.b16 %v1193, %v1192
        %v1621 = vpack.c.b16 %v1195, %v1194
        %v1622 = vpack.c.b16 %v1197, %v1196
        %v1623 = vpack.c.b16 %v1199, %v1198
        %v1624 = vpack.c.b16 %v1201, %v1200
        %v1625 = vpack.c.b16 %v1203, %v1202
        %v1626 = vpack.c.b16 %v1205, %v1204
        %v1627 = vpack.c.b16 %v1207, %v1206
        %v1628 = vpack.c.b16 %v1209, %v1208
        %v1629 = vpack.c.b16 %v1211, %v1210
        %v1630 = vpack.c.b16 %v1213, %v1212
        %v1631 = vpack.c.b16 %v1215, %v1214
        %v1632 = vpack.c.b16 %v1217, %v1216
        %v1633 = vpack.c.b16 %v1219, %v1218
        %v1634 = vpack.c.b16 %v1221, %v1220
        %v1635 = vpack.c.b16 %v1223, %v1222
        %v1636 = vpack.c.b16 %v1225, %v1224
        %v1637 = vpack.c.b16 %v1227, %v1226
        %v1638 = vpack.c.b16 %v1229, %v1228
        %v1639 = vpack.c.b16 %v1231, %v1230
        %v1640 = vpack.c.b16 %v1233, %v1232
        %v1641 = vpack.c.b16 %v1235, %v1234
        %v1642 = vpack.c.b16 %v1237, %v1236
        %v1643 = vpack.c.b16 %v1239, %v1238
        %v1644 = vpack.c.b16 %v1241, %v1240
        %v1645 = vpack.c.b16 %v1243, %v1242
        %v1646 = vpack.c.b16 %v1245, %v1244
        %v1647 = vpack.c.b16 %v1247, %v1246
        %v1648 = vpack.c.b16 %v1249, %v1248
        %v1649 = vpack.c.b16 %v1251, %v1250
        %v1650 = vpack.c.b16 %v1253, %v1252
        %v1651 = vpack.c.b16 %v1255, %v1254
        %v1652 = vpack.c.b16 %v1257, %v1256
        %v1653 = vpack.c.b16 %v1259, %v1258
        %v1654 = vpack.c.b16 %v1261, %v1260
        %v1655 = vpack.c.b16 %v1263, %v1262
        %v1656 = vpack.c.b16 %v1265, %v1264
        %v1657 = vpack.c.b16 %v1267, %v1266
        %v1658 = vpack.c.b16 %v1269, %v1268
        %v1659 = vpack.c.b16 %v1271, %v1270
        %v1660 = vpack.c.b16 %v1273, %v1272
        %v1661 = vpack.c.b16 %v1275, %v1274
        %v1662 = vpack.c.b16 %v1277, %v1276
        %v1663 = vpack.c.b16 %v1279, %v1278
        %v1664 = vpack.c.b16 %v1281, %v1280
        %v1665 = vpack.c.b16 %v1283, %v1282
        %v1666 = vpack.c.b16 %v1285, %v1284
        %v1667 = vpack.c.b16 %v1287, %v1286
        %v1668 = vpack.c.b16 %v1289, %v1288
        %v1669 = vpack.c.b16 %v1291, %v1290
        %v1670 = vpack.c.b16 %v1293, %v1292
        %v1671 = vpack.c.b16 %v1295, %v1294
        %v1672 = vpack.c.b16 %v1297, %v1296
        %v1673 = vpack.c.b16 %v1299, %v1298
        %v1674 = vpack.c.b16 %v1301, %v1300
        %v1675 = vpack.c.b16 %v1303, %v1302
        %v1676 = vpack.c.b16 %v1305, %v1304
        %v1677 = vpack.c.b16 %v1307, %v1306
        %v1678 = vpack.c.b16 %v1309, %v1308
        %v1679 = vpack.c.b16 %v1311, %v1310
        %v1680 = vpack.c.b16 %v1313, %v1312
        %v1681 = vpack.c.b16 %v1315, %v1314
        %v1682 = vpack.c.b16 %v1317, %v1316
        %v1683 = vpack.c.b16 %v1319, %v1318
        %v1684 = vpack.c.b16 %v1321, %v1320
        %v1685 = vpack.c.b16 %v1323, %v1322
        %v1686 = vpack.c.b16 %v1325, %v1324
        %v1687 = vpack.c.b16 %v1327, %v1326
        %v1688 = vpack.c.b16 %v1329, %v1328
        %v1689 = vpack.c.b16 %v1331, %v1330
        %v1690 = vpack.c.b16 %v1333, %v1332
        %v1691 = vpack.c.b16 %v1335, %v1334
        %v1692 = vpack.c.b16 %v1337, %v1336
        %v1693 = vpack.c.b16 %v1339, %v1338
        %v1694 = vpack.c.b16 %v1341, %v1340
        %v1695 = vpack.c.b16 %v1343, %v1342
        %v1696 = vpack.c.b16 %v1345, %v1344
        %v1697 = vpack.c.b16 %v1347, %v1346
        %v1698 = vpack.c.b16 %v1349, %v1348
        %v1699 = vpack.c.b16 %v1351, %v1350
        %v1700 = vpack.c.b16 %v1353, %v1352
        %v1701 = vpack.c.b16 %v1355, %v1354
        %v1702 = vpack.c.b16 %v1357, %v1356
        %v1703 = vpack.c.b16 %v1359, %v1358
        %v1704 = vpack.c.b16 %v1361, %v1360
        %v1705 = vpack.c.b16 %v1363, %v1362
        %v1706 = vpack.c.b16 %v1365, %v1364
        %v1707 = vpack.c.b16 %v1367, %v1366
        %v1708 = vpack.c.b16 %v1369, %v1368
        %v1709 = vpack.c.b16 %v1371, %v1370
        %v1710 = vpack.c.b16 %v1373, %v1372
        %v1711 = vpack.c.b16 %v1375, %v1374
        %v1712 = vpack.c.b16 %v1377, %v1376
        %v1713 = vpack.c.b16 %v1379, %v1378
        %v1714 = vpack.c.b16 %v1381, %v1380
        %v1715 = vpack.c.b16 %v1383, %v1382
        %v1716 = vpack.c.b16 %v1385, %v1384
        %v1717 = vpack.c.b16 %v1387, %v1386
        %v1718 = vpack.c.b16 %v1389, %v1388
        %v1719 = vpack.c.b16 %v1391, %v1390
        %v1720 = vpack.c.b16 %v1393, %v1392
        %v1721 = vpack.c.b16 %v1395, %v1394
        %v1722 = vpack.c.b16 %v1397, %v1396
        %v1723 = vpack.c.b16 %v1399, %v1398
        %v1724 = vpack.c.b16 %v1401, %v1400
        %v1725 = vpack.c.b16 %v1403, %v1402
        %v1726 = vpack.c.b16 %v1405, %v1404
        %v1727 = vpack.c.b16 %v1407, %v1406
        %v1728 = vpack.c.b16 %v1409, %v1408
        %v1729 = vpack.c.b16 %v1411, %v1410
        %v1730 = vpack.c.b16 %v1413, %v1412
        %v1731 = vpack.c.b16 %v1415, %v1414
        %v1732 = vpack.c.b16 %v1417, %v1416
        %v1733 = vpack.c.b16 %v1419, %v1418
        %v1734 = vpack.c.b16 %v1421, %v1420
        %v1735 = vpack.c.b16 %v1423, %v1422
        %v1736 = vpack.c.b16 %v1425, %v1424
        %v1737 = vpack.c.b16 %v1427, %v1426
        %v1738 = vpack.c.b16 %v1429, %v1428
        %v1739 = vpack.c.b16 %v1431, %v1430
        %v1740 = vpack.c.b16 %v1433, %v1432
        %v1741 = vpack.c.b16 %v1435, %v1434
        %v1742 = vpack.c.b16 %v1437, %v1436
        %v1743 = vpack.c.b16 %v1439, %v1438
        %v1744 = vpack.c.b16 %v1441, %v1440
        %v1745 = vpack.c.b16 %v1443, %v1442
        %v1746 = vpack.c.b16 %v1445, %v1444
        %v1747 = vpack.c.b16 %v1447, %v1446
        %v1748 = vpack.c.b16 %v1449, %v1448
        %v1749 = vpack.c.b16 %v1451, %v1450
        %v1750 = vpack.c.b16 %v1453, %v1452
        %v1751 = vpack.c.b16 %v1455, %v1454
        %v1752 = vpack.c.b16 %v1457, %v1456
        %v1753 = vpack.c.b16 %v1459, %v1458
        %v1754 = vpack.c.b16 %v1461, %v1460
        %v1755 = vpack.c.b16 %v1463, %v1462
        %v1756 = vpack.c.b16 %v1465, %v1464
        %v1757 = vpack.c.b16 %v1467, %v1466
        %v1758 = vpack.c.b16 %v1469, %v1468
        %v1759 = vpack.c.b16 %v1471, %v1470
        %v1760 = vpack.c.b16 %v1473, %v1472
        %v1761 = vpack.c.b16 %v1475, %v1474
        %v1762 = vpack.c.b16 %v1477, %v1476
        %v1763 = vpack.c.b16 %v1479, %v1478
        %v1764 = vpack.c.b16 %v1481, %v1480
        %v1765 = vpack.c.b16 %v1483, %v1482
        %v1766 = vpack.c.b16 %v1485, %v1484
        %v1767 = vpack.c.b16 %v1487, %v1486
        %v1768 = vpack.c.b16 %v1489, %v1488
        %v1769 = vpack.c.b16 %v1491, %v1490
        %v1770 = vpack.c.b16 %v1493, %v1492
        %v1771 = vpack.c.b16 %v1495, %v1494
        %v1772 = vpack.c.b16 %v1497, %v1496
        %v1773 = vpack.c.b16 %v1499, %v1498
        %v1774 = vpack.c.b16 %v1501, %v1500
        %v1775 = vpack.c.b16 %v1503, %v1502
        %v1776 = vpack.c.b16 %v1505, %v1504
        %v1777 = vpack.c.b16 %v1507, %v1506
        %v1778 = vpack.c.b16 %v1509, %v1508
        %v1779 = vpack.c.b16 %v1511, %v1510
        %v1780 = vpack.c.b16 %v1513, %v1512
        %v1781 = vpack.c.b16 %v1515, %v1514
        %v1782 = vpack.c.b16 %v1517, %v1516
        %v1783 = vpack.c.b16 %v1519, %v1518
        %v1784 = vpack.c.b16 %v1521, %v1520
        %v1785 = vpack.c.b16 %v1523, %v1522
        %v1786 = vpack.c.b16 %v1525, %v1524
        %v1787 = vpack.c.b16 %v1527, %v1526
        %v1788 = vpack.c.b16 %v1529, %v1528
        %v1789 = vpack.c.b16 %v1531, %v1530
        %v1790 = vpack.c.b16 %v1533, %v1532
        %v1791 = vpack.c.b16 %v1535, %v1534
        %v1792 = vpack.c.b16 %v1537, %v1536
        %v1793 = vpack.c.b16 %v1539, %v1538
        %v1794 = vpack.c.b16 %v1541, %v1540
        %v1795 = vpack.c.b16 %v1543, %v1542
        %v1796 = vpack.c.b16 %v1545, %v1544
        %v1797 = vpack.c.b16 %v1547, %v1546
        %v1798 = vpack.c.b16 %v1549, %v1548
        %v1799 = vpack.c.b16 %v1551, %v1550
        %v1800 = vpack.c.b16 %v1553, %v1552
        %v1801 = vpack.c.b16 %v1555, %v1554
        %v1802 = vpack.c.b16 %v1557, %v1556
        %v1803 = vpack.c.b16 %v1559, %v1558
        %v1804 = vpack.c.b16 %v1561, %v1560
        %v1805 = vpack.c.b16 %v1563, %v1562
        %v1806 = vpack.c.b16 %v1565, %v1564
        %v1807 = vpack.c.b16 %v1567, %v1566
        %v1808 = vpack.c.b16 %v1569, %v1568
        %v1809 = vpack.c.b16 %v1571, %v1570
        %v1810 = vpack.c.b16 %v1573, %v1572
        %v1811 = vpack.c.b16 %v1575, %v1574
        %v1812 = vpack.c.b16 %v1577, %v1576
        %v1813 = vpack.c.b16 %v1579, %v1578
        %v1814 = vpack.c.b16 %v1581, %v1580
        %v1815 = vpack.c.b16 %v1583, %v1582
        %v1816 = vpack.c.b16 %v1585, %v1584
        %v1817 = vpack.c.b16 %v1587, %v1586
        %v1818 = vpack.c.b16 %v1589, %v1588
        %v1819 = vpack.c.b16 %v1591, %v1590
        %v1820 = vpack.c.b16 %v1593, %v1592
        %v1821 = vpack.c.b16 %v1595, %v1594
        %v1822 = vpack.c.b16 %v1597, %v1596
        %v1823 = vpack.c.b16 %v1599, %v1598
        %v1828 = vunpack.c.l.b16 %v693
        %v1829 = vunpack.c.l.b16 %v694
        %v1830 = vunpack.c.l.b16 %v695
        %v1831 = vunpack.c.l.b16 %v696
        %v1832 = vpack.c.b16 %v1829, %v1828
        %v1833 = vpack.c.b16 %v1831, %v1830
        %vm1835 = vcmask 220160
        %v1837 = vsel %vm1835, %v1600, 0
        %v1840 = vsel %vm1835, %v1601, 0
        %v1843 = vsel %vm1835, %v1602, 0
        %v1846 = vsel %vm1835, %v1603, 0
        %v1849 = vsel %vm1835, %v1604, 0
        %v1852 = vsel %vm1835, %v1605, 0
        %v1855 = vsel %vm1835, %v1606, 0
        %v1858 = vsel %vm1835, %v1607, 0
        %v1861 = vsel %vm1835, %v1608, 0
        %v1864 = vsel %vm1835, %v1609, 0
        %v1867 = vsel %vm1835, %v1610, 0
        %v1870 = vsel %vm1835, %v1611, 0
        %v1873 = vsel %vm1835, %v1612, 0
        %v1876 = vsel %vm1835, %v1613, 0
        %v1879 = vsel %vm1835, %v1614, 0
        %v1882 = vsel %vm1835, %v1615, 0
        %v1885 = vsel %vm1835, %v1616, 0
        %v1888 = vsel %vm1835, %v1617, 0
        %v1891 = vsel %vm1835, %v1618, 0
        %v1894 = vsel %vm1835, %v1619, 0
        %v1897 = vsel %vm1835, %v1620, 0
        %v1900 = vsel %vm1835, %v1621, 0
        %v1903 = vsel %vm1835, %v1622, 0
        %v1906 = vsel %vm1835, %v1623, 0
        %v1909 = vsel %vm1835, %v1624, 0
        %v1912 = vsel %vm1835, %v1625, 0
        %v1915 = vsel %vm1835, %v1626, 0
        %v1918 = vsel %vm1835, %v1627, 0
        %v1921 = vsel %vm1835, %v1628, 0
        %v1924 = vsel %vm1835, %v1629, 0
        %v1927 = vsel %vm1835, %v1630, 0
        %v1930 = vsel %vm1835, %v1631, 0
        %v1933 = vsel %vm1835, %v1632, 0
        %v1936 = vsel %vm1835, %v1633, 0
        %v1939 = vsel %vm1835, %v1634, 0
        %v1942 = vsel %vm1835, %v1635, 0
        %v1945 = vsel %vm1835, %v1636, 0
        %v1948 = vsel %vm1835, %v1637, 0
        %v1951 = vsel %vm1835, %v1638, 0
        %v1954 = vsel %vm1835, %v1639, 0
        %v1957 = vsel %vm1835, %v1640, 0
        %v1960 = vsel %vm1835, %v1641, 0
        %v1963 = vsel %vm1835, %v1642, 0
        %v1966 = vsel %vm1835, %v1643, 0
        %v1969 = vsel %vm1835, %v1644, 0
        %v1972 = vsel %vm1835, %v1645, 0
        %v1975 = vsel %vm1835, %v1646, 0
        %v1978 = vsel %vm1835, %v1647, 0
        %v1981 = vsel %vm1835, %v1648, 0
        %v1984 = vsel %vm1835, %v1649, 0
        %v1987 = vsel %vm1835, %v1650, 0
        %v1990 = vsel %vm1835, %v1651, 0
        %v1993 = vsel %vm1835, %v1652, 0
        %v1996 = vsel %vm1835, %v1653, 0
        %v1999 = vsel %vm1835, %v1654, 0
        %v2002 = vsel %vm1835, %v1655, 0
        %v2005 = vsel %vm1835, %v1656, 0
        %v2008 = vsel %vm1835, %v1657, 0
        %v2011 = vsel %vm1835, %v1658, 0
        %v2014 = vsel %vm1835, %v1659, 0
        %v2017 = vsel %vm1835, %v1660, 0
        %v2020 = vsel %vm1835, %v1661, 0
        %v2023 = vsel %vm1835, %v1662, 0
        %v2026 = vsel %vm1835, %v1663, 0
        %v2029 = vsel %vm1835, %v1664, 0
        %v2032 = vsel %vm1835, %v1665, 0
        %v2035 = vsel %vm1835, %v1666, 0
        %v2038 = vsel %vm1835, %v1667, 0
        %v2041 = vsel %vm1835, %v1668, 0
        %v2044 = vsel %vm1835, %v1669, 0
        %v2047 = vsel %vm1835, %v1670, 0
        %v2050 = vsel %vm1835, %v1671, 0
        %v2053 = vsel %vm1835, %v1672, 0
        %v2056 = vsel %vm1835, %v1673, 0
        %v2059 = vsel %vm1835, %v1674, 0
        %v2062 = vsel %vm1835, %v1675, 0
        %v2065 = vsel %vm1835, %v1676, 0
        %v2068 = vsel %vm1835, %v1677, 0
        %v2071 = vsel %vm1835, %v1678, 0
        %v2074 = vsel %vm1835, %v1679, 0
        %v2077 = vsel %vm1835, %v1680, 0
        %v2080 = vsel %vm1835, %v1681, 0
        %v2083 = vsel %vm1835, %v1682, 0
        %v2086 = vsel %vm1835, %v1683, 0
        %v2089 = vsel %vm1835, %v1684, 0
        %v2092 = vsel %vm1835, %v1685, 0
        %v2095 = vsel %vm1835, %v1686, 0
        %v2098 = vsel %vm1835, %v1687, 0
        %v2101 = vsel %vm1835, %v1688, 0
        %v2104 = vsel %vm1835, %v1689, 0
        %v2107 = vsel %vm1835, %v1690, 0
        %v2110 = vsel %vm1835, %v1691, 0
        %v2113 = vsel %vm1835, %v1692, 0
        %v2116 = vsel %vm1835, %v1693, 0
        %v2119 = vsel %vm1835, %v1694, 0
        %v2122 = vsel %vm1835, %v1695, 0
        %v2125 = vsel %vm1835, %v1696, 0
        %v2128 = vsel %vm1835, %v1697, 0
        %v2131 = vsel %vm1835, %v1698, 0
        %v2134 = vsel %vm1835, %v1699, 0
        %v2137 = vsel %vm1835, %v1700, 0
        %v2140 = vsel %vm1835, %v1701, 0
        %v2143 = vsel %vm1835, %v1702, 0
        %v2146 = vsel %vm1835, %v1703, 0
        %v2149 = vsel %vm1835, %v1704, 0
        %v2152 = vsel %vm1835, %v1705, 0
        %v2155 = vsel %vm1835, %v1706, 0
        %v2158 = vsel %vm1835, %v1707, 0
        %v2161 = vsel %vm1835, %v1708, 0
        %v2164 = vsel %vm1835, %v1709, 0
        %v2167 = vsel %vm1835, %v1710, 0
        %v2170 = vsel %vm1835, %v1711, 0
        %v2173 = vsel %vm1835, %v1712, 0
        %v2176 = vsel %vm1835, %v1713, 0
        %v2179 = vsel %vm1835, %v1714, 0
        %v2182 = vsel %vm1835, %v1715, 0
        %v2185 = vsel %vm1835, %v1716, 0
        %v2188 = vsel %vm1835, %v1717, 0
        %v2191 = vsel %vm1835, %v1718, 0
        %v2194 = vsel %vm1835, %v1719, 0
        %v2197 = vsel %vm1835, %v1720, 0
        %v2200 = vsel %vm1835, %v1721, 0
        %v2203 = vsel %vm1835, %v1722, 0
        %v2206 = vsel %vm1835, %v1723, 0
        %v2209 = vsel %vm1835, %v1724, 0
        %v2212 = vsel %vm1835, %v1725, 0
        %v2215 = vsel %vm1835, %v1726, 0
        %v2218 = vsel %vm1835, %v1727, 0
        %v2221 = vsel %vm1835, %v1728, 0
        %v2224 = vsel %vm1835, %v1729, 0
        %v2227 = vsel %vm1835, %v1730, 0
        %v2230 = vsel %vm1835, %v1731, 0
        %v2233 = vsel %vm1835, %v1732, 0
        %v2236 = vsel %vm1835, %v1733, 0
        %v2239 = vsel %vm1835, %v1734, 0
        %v2242 = vsel %vm1835, %v1735, 0
        %v2245 = vsel %vm1835, %v1736, 0
        %v2248 = vsel %vm1835, %v1737, 0
        %v2251 = vsel %vm1835, %v1738, 0
        %v2254 = vsel %vm1835, %v1739, 0
        %v2257 = vsel %vm1835, %v1740, 0
        %v2260 = vsel %vm1835, %v1741, 0
        %v2263 = vsel %vm1835, %v1742, 0
        %v2266 = vsel %vm1835, %v1743, 0
        %v2269 = vsel %vm1835, %v1744, 0
        %v2272 = vsel %vm1835, %v1745, 0
        %v2275 = vsel %vm1835, %v1746, 0
        %v2278 = vsel %vm1835, %v1747, 0
        %v2281 = vsel %vm1835, %v1748, 0
        %v2284 = vsel %vm1835, %v1749, 0
        %v2287 = vsel %vm1835, %v1750, 0
        %v2290 = vsel %vm1835, %v1751, 0
        %v2293 = vsel %vm1835, %v1752, 0
        %v2296 = vsel %vm1835, %v1753, 0
        %v2299 = vsel %vm1835, %v1754, 0
        %v2302 = vsel %vm1835, %v1755, 0
        %v2305 = vsel %vm1835, %v1756, 0
        %v2308 = vsel %vm1835, %v1757, 0
        %v2311 = vsel %vm1835, %v1758, 0
        %v2314 = vsel %vm1835, %v1759, 0
        %v2317 = vsel %vm1835, %v1760, 0
        %v2320 = vsel %vm1835, %v1761, 0
        %v2323 = vsel %vm1835, %v1762, 0
        %v2326 = vsel %vm1835, %v1763, 0
        %v2329 = vsel %vm1835, %v1764, 0
        %v2332 = vsel %vm1835, %v1765, 0
        %v2335 = vsel %vm1835, %v1766, 0
        %v2338 = vsel %vm1835, %v1767, 0
        %v2341 = vsel %vm1835, %v1768, 0
        %v2344 = vsel %vm1835, %v1769, 0
        %v2347 = vsel %vm1835, %v1770, 0
        %v2350 = vsel %vm1835, %v1771, 0
        %v2353 = vsel %vm1835, %v1772, 0
        %v2356 = vsel %vm1835, %v1773, 0
        %v2359 = vsel %vm1835, %v1774, 0
        %v2362 = vsel %vm1835, %v1775, 0
        %v2365 = vsel %vm1835, %v1776, 0
        %v2368 = vsel %vm1835, %v1777, 0
        %v2371 = vsel %vm1835, %v1778, 0
        %v2374 = vsel %vm1835, %v1779, 0
        %v2377 = vsel %vm1835, %v1780, 0
        %v2380 = vsel %vm1835, %v1781, 0
        %v2383 = vsel %vm1835, %v1782, 0
        %v2386 = vsel %vm1835, %v1783, 0
        %v2389 = vsel %vm1835, %v1784, 0
        %v2392 = vsel %vm1835, %v1785, 0
        %v2395 = vsel %vm1835, %v1786, 0
        %v2398 = vsel %vm1835, %v1787, 0
        %v2401 = vsel %vm1835, %v1788, 0
        %v2404 = vsel %vm1835, %v1789, 0
        %v2407 = vsel %vm1835, %v1790, 0
        %v2410 = vsel %vm1835, %v1791, 0
        %v2413 = vsel %vm1835, %v1792, 0
        %v2416 = vsel %vm1835, %v1793, 0
        %v2419 = vsel %vm1835, %v1794, 0
        %v2422 = vsel %vm1835, %v1795, 0
        %v2425 = vsel %vm1835, %v1796, 0
        %v2428 = vsel %vm1835, %v1797, 0
        %v2431 = vsel %vm1835, %v1798, 0
        %v2434 = vsel %vm1835, %v1799, 0
        %v2437 = vsel %vm1835, %v1800, 0
        %v2440 = vsel %vm1835, %v1801, 0
        %v2443 = vsel %vm1835, %v1802, 0
        %v2446 = vsel %vm1835, %v1803, 0
        %v2449 = vsel %vm1835, %v1804, 0
        %v2452 = vsel %vm1835, %v1805, 0
        %v2455 = vsel %vm1835, %v1806, 0
        %v2458 = vsel %vm1835, %v1807, 0
        %v2461 = vsel %vm1835, %v1808, 0
        %v2464 = vsel %vm1835, %v1809, 0
        %v2467 = vsel %vm1835, %v1810, 0
        %v2470 = vsel %vm1835, %v1811, 0
        %v2473 = vsel %vm1835, %v1812, 0
        %v2476 = vsel %vm1835, %v1813, 0
        %v2479 = vsel %vm1835, %v1814, 0
        %v2482 = vsel %vm1835, %v1815, 0
        %v2485 = vsel %vm1835, %v1816, 0
        %v2488 = vsel %vm1835, %v1817, 0
        %v2491 = vsel %vm1835, %v1818, 0
        %v2494 = vsel %vm1835, %v1819, 0
        %v2497 = vsel %vm1835, %v1820, 0
        %v2500 = vsel %vm1835, %v1821, 0
        %v2503 = vsel %vm1835, %v1822, 0
        %v2506 = vsel %vm1835, %v1823, 0
        %vm2508 = vcmask 1044480
        %vm2509 = vcmask 1045504
        %v2510 = vsel %vm2508, 4294967295, 65535
        %v2511 = vsel %vm2509, %v2510, 0
        %v2513 = vand.u32 %v1833, %v2511
        %2515 = vmatprep.subr.bf16.mxu0 0
        %2516 = vmatpush1.bf16.msra.mxu0 %v1832
        %2517 = vmatprep.subr.bf16.mxu0 0
        %2518 = vmatpush1.bf16.msra.mxu0 %v2513
        %2519 = vmatprep.subr.bf16.mxu0 0
        %2520 = vmatpush1.bf16.msra.mxu0 0
        %2521 = vmatprep.subr.bf16.mxu0 0
        %2522 = vmatpush1.bf16.msra.mxu0 0
        %2523 = vmatprep.subr.bf16.mxu0 0
        %2524 = vmatpush1.bf16.msra.mxu0 0
        %2525 = vmatprep.subr.bf16.mxu0 0
        %2526 = vmatpush1.bf16.msra.mxu0 0
        %2527 = vmatprep.subr.bf16.mxu0 0
        %2528 = vmatpush1.bf16.msra.mxu0 0
        %2529 = vmatprep.subr.bf16.mxu0 0
        %2530 = vmatpush1.bf16.msra.mxu0 0
        %2531 = vmatprep.subr.bf16.mxu0 0
        %2532 = vmatpush1.bf16.msra.mxu0 0
        %2533 = vmatprep.subr.bf16.mxu0 0
        %2534 = vmatpush1.bf16.msra.mxu0 0
        %2535 = vmatprep.subr.bf16.mxu0 0
        %2536 = vmatpush1.bf16.msra.mxu0 0
        %2537 = vmatprep.subr.bf16.mxu0 0
        %2538 = vmatpush1.bf16.msra.mxu0 0
        %2539 = vmatprep.subr.bf16.mxu0 0
        %2540 = vmatpush1.bf16.msra.mxu0 0
        %2541 = vmatprep.subr.bf16.mxu0 0
        %2542 = vmatpush1.bf16.msra.mxu0 0
        %2543 = vmatprep.subr.bf16.mxu0 0
        %2544 = vmatpush1.bf16.msra.mxu0 0
        %2545 = vmatprep.subr.bf16.mxu0 0
        %2546 = vmatpush1.bf16.msra.mxu0 0
        %2547 = vmatprep.mubr.bf16.mxu0 0
        %2548 = vmatmul.mubr.bf16.gmra.mrb[0].mxu0 %v1837
        %v2549 = vpop.f32.mrb[0].mxu0
        %v2550 = vadd.f32 %v702, %v2549
        %v2551 = vpop.f32.mrb[0].mxu0
        %v2552 = vpop.f32.mrb[0].mxu0
        %v2553 = vadd.f32 %v702, %v2552
        %v2554 = vpop.f32.mrb[0].mxu0
        %2555 = vmatprep.mubr.bf16.mxu0 0
        %2556 = vmatmul.mubr.bf16.gmra.mrb[0].mxu0 %v1840
        %v2557 = vpop.f32.mrb[0].mxu0
        %v2558 = vadd.f32 %v702, %v2557
        %v2559 = vpop.f32.mrb[0].mxu0
        %v2560 = vpop.f32.mrb[0].mxu0
        %v2561 = vadd.f32 %v702, %v2560
        %v2562 = vpop.f32.mrb[0].mxu0
        %2563 = vmatprep.mubr.bf16.mxu0 0
        %2564 = vmatmul.mubr.bf16.gmra.mrb[0].mxu0 %v1843
        %v2565 = vpop.f32.mrb[0].mxu0
        %v2566 = vadd.f32 %v702, %v2565
        %v2567 = vpop.f32.mrb[0].mxu0
        %v2568 = vpop.f32.mrb[0].mxu0
        %v2569 = vadd.f32 %v702, %v2568
        %v2570 = vpop.f32.mrb[0].mxu0
        %2571 = vmatprep.mubr.bf16.mxu0 0
        %2572 = vmatmul.mubr.bf16.gmra.mrb[0].mxu0 %v1846
        %v2573 = vpop.f32.mrb[0].mxu0
        %v2574 = vadd.f32 %v702, %v2573
        %v2575 = vpop.f32.mrb[0].mxu0
        %v2576 = vpop.f32.mrb[0].mxu0
        %v2577 = vadd.f32 %v702, %v2576
        %v2578 = vpop.f32.mrb[0].mxu0
        %2579 = vmatprep.mubr.bf16.mxu0 0
        %2580 = vmatmul.mubr.bf16.gmra.mrb[0].mxu0 %v1849
        %v2581 = vpop.f32.mrb[0].mxu0
        %v2582 = vadd.f32 %v702, %v2581
        %v2583 = vpop.f32.mrb[0].mxu0
        %v2584 = vpop.f32.mrb[0].mxu0
        %v2585 = vadd.f32 %v702, %v2584
        %v2586 = vpop.f32.mrb[0].mxu0
        %2587 = vmatprep.mubr.bf16.mxu0 0
        %2588 = vmatmul.mubr.bf16.gmra.mrb[0].mxu0 %v1852
        %v2589 = vpop.f32.mrb[0].mxu0
        %v2590 = vadd.f32 %v702, %v2589
        %v2591 = vpop.f32.mrb[0].mxu0
        %v2592 = vpop.f32.mrb[0].mxu0
        %v2593 = vadd.f32 %v702, %v2592
        %v2594 = vpop.f32.mrb[0].mxu0
        %2595 = vmatprep.mubr.bf16.mxu0 0
        %2596 = vmatmul.mubr.bf16.gmra.mrb[0].mxu0 %v1855
        %v2597 = vpop.f32.mrb[0].mxu0
        %v2598 = vadd.f32 %v702, %v2597
        %v2599 = vpop.f32.mrb[0].mxu0
        %v2600 = vpop.f32.mrb[0].mxu0
        %v2601 = vadd.f32 %v702, %v2600
        %v2602 = vpop.f32.mrb[0].mxu0
        %2603 = vmatprep.mubr.bf16.mxu0 0
        %2604 = vmatmul.mubr.bf16.gmra.mrb[0].mxu0 %v1858
        %v2605 = vpop.f32.mrb[0].mxu0
        %v2606 = vadd.f32 %v702, %v2605
        %v2607 = vpop.f32.mrb[0].mxu0
        %v2608 = vpop.f32.mrb[0].mxu0
        %v2609 = vadd.f32 %v702, %v2608
        %v2610 = vpop.f32.mrb[0].mxu0
        %2611 = vmatprep.mubr.bf16.mxu0 0
        %2612 = vmatmul.mubr.bf16.gmra.mrb[0].mxu0 %v1861
        %v2613 = vpop.f32.mrb[0].mxu0
        %v2614 = vadd.f32 %v702, %v2613
        %v2615 = vpop.f32.mrb[0].mxu0
        %v2616 = vpop.f32.mrb[0].mxu0
        %v2617 = vadd.f32 %v702, %v2616
        %v2618 = vpop.f32.mrb[0].mxu0
        %2619 = vmatprep.mubr.bf16.mxu0 0
        %2620 = vmatmul.mubr.bf16.gmra.mrb[0].mxu0 %v1864
        %v2621 = vpop.f32.mrb[0].mxu0
        %v2622 = vadd.f32 %v702, %v2621
        %v2623 = vpop.f32.mrb[0].mxu0
        %v2624 = vpop.f32.mrb[0].mxu0
        %v2625 = vadd.f32 %v702, %v2624
        %v2626 = vpop.f32.mrb[0].mxu0
        %2627 = vmatprep.mubr.bf16.mxu0 0
        %2628 = vmatmul.mubr.bf16.gmra.mrb[0].mxu0 %v1867
        %v2629 = vpop.f32.mrb[0].mxu0
        %v2630 = vadd.f32 %v702, %v2629
        %v2631 = vpop.f32.mrb[0].mxu0
        %v2632 = vpop.f32.mrb[0].mxu0
        %v2633 = vadd.f32 %v702, %v2632
        %v2634 = vpop.f32.mrb[0].mxu0
        %2635 = vmatprep.mubr.bf16.mxu0 0
        %2636 = vmatmul.mubr.bf16.gmra.mrb[0].mxu0 %v1870
        %v2637 = vpop.f32.mrb[0].mxu0
        %v2638 = vadd.f32 %v702, %v2637
        %v2639 = vpop.f32.mrb[0].mxu0
        %v2640 = vpop.f32.mrb[0].mxu0
        %v2641 = vadd.f32 %v702, %v2640
        %v2642 = vpop.f32.mrb[0].mxu0
        %2643 = vmatprep.mubr.bf16.mxu0 0
        %2644 = vmatmul.mubr.bf16.gmra.mrb[0].mxu0 %v1873
        %v2645 = vpop.f32.mrb[0].mxu0
        %v2646 = vadd.f32 %v702, %v2645
        %v2647 = vpop.f32.mrb[0].mxu0
        %v2648 = vpop.f32.mrb[0].mxu0
        %v2649 = vadd.f32 %v702, %v2648
        %v2650 = vpop.f32.mrb[0].mxu0
        %2651 = vmatprep.mubr.bf16.mxu0 0
        %2652 = vmatmul.mubr.bf16.gmra.mrb[0].mxu0 %v1876
        %v2653 = vpop.f32.mrb[0].mxu0
        %v2654 = vadd.f32 %v702, %v2653
        %v2655 = vpop.f32.mrb[0].mxu0
        %v2656 = vpop.f32.mrb[0].mxu0
        %v2657 = vadd.f32 %v702, %v2656
        %v2658 = vpop.f32.mrb[0].mxu0
        %2659 = vmatprep.mubr.bf16.mxu0 0
        %2660 = vmatmul.mubr.bf16.gmra.mrb[0].mxu0 %v1879
        %v2661 = vpop.f32.mrb[0].mxu0
        %v2662 = vadd.f32 %v702, %v2661
        %v2663 = vpop.f32.mrb[0].mxu0
        %v2664 = vpop.f32.mrb[0].mxu0
        %v2665 = vadd.f32 %v702, %v2664
        %v2666 = vpop.f32.mrb[0].mxu0
        %2667 = vmatprep.mubr.bf16.mxu0 0
        %2668 = vmatmul.mubr.bf16.gmra.mrb[0].mxu0 %v1882
        %v2669 = vpop.f32.mrb[0].mxu0
        %v2670 = vadd.f32 %v702, %v2669
        %v2671 = vpop.f32.mrb[0].mxu0
        %v2672 = vpop.f32.mrb[0].mxu0
        %v2673 = vadd.f32 %v702, %v2672
        %v2674 = vpop.f32.mrb[0].mxu0
        %2675 = vmatprep.mubr.bf16.mxu0 0
        %2676 = vmatmul.mubr.bf16.gmra.mrb[0].mxu0 %v1885
        %v2677 = vpop.f32.mrb[0].mxu0
        %v2678 = vadd.f32 %v702, %v2677
        %v2679 = vpop.f32.mrb[0].mxu0
        %v2680 = vpop.f32.mrb[0].mxu0
        %v2681 = vadd.f32 %v702, %v2680
        %v2682 = vpop.f32.mrb[0].mxu0
        %2683 = vmatprep.mubr.bf16.mxu0 0
        %2684 = vmatmul.mubr.bf16.gmra.mrb[0].mxu0 %v1888
        %v2685 = vpop.f32.mrb[0].mxu0
        %v2686 = vadd.f32 %v702, %v2685
        %v2687 = vpop.f32.mrb[0].mxu0
        %v2688 = vpop.f32.mrb[0].mxu0
        %v2689 = vadd.f32 %v702, %v2688
        %v2690 = vpop.f32.mrb[0].mxu0
        %2691 = vmatprep.mubr.bf16.mxu0 0
        %2692 = vmatmul.mubr.bf16.gmra.mrb[0].mxu0 %v1891
        %v2693 = vpop.f32.mrb[0].mxu0
        %v2694 = vadd.f32 %v702, %v2693
        %v2695 = vpop.f32.mrb[0].mxu0
        %v2696 = vpop.f32.mrb[0].mxu0
        %v2697 = vadd.f32 %v702, %v2696
        %v2698 = vpop.f32.mrb[0].mxu0
        %2699 = vmatprep.mubr.bf16.mxu0 0
        %2700 = vmatmul.mubr.bf16.gmra.mrb[0].mxu0 %v1894
        %v2701 = vpop.f32.mrb[0].mxu0
        %v2702 = vadd.f32 %v702, %v2701
        %v2703 = vpop.f32.mrb[0].mxu0
        %v2704 = vpop.f32.mrb[0].mxu0
        %v2705 = vadd.f32 %v702, %v2704
        %v2706 = vpop.f32.mrb[0].mxu0
        %2707 = vmatprep.mubr.bf16.mxu0 0
        %2708 = vmatmul.mubr.bf16.gmra.mrb[0].mxu0 %v1897
        %v2709 = vpop.f32.mrb[0].mxu0
        %v2710 = vadd.f32 %v702, %v2709
        %v2711 = vpop.f32.mrb[0].mxu0
        %v2712 = vpop.f32.mrb[0].mxu0
        %v2713 = vadd.f32 %v702, %v2712
        %v2714 = vpop.f32.mrb[0].mxu0
        %2715 = vmatprep.mubr.bf16.mxu0 0
        %2716 = vmatmul.mubr.bf16.gmra.mrb[0].mxu0 %v1900
        %v2717 = vpop.f32.mrb[0].mxu0
        %v2718 = vadd.f32 %v702, %v2717
        %v2719 = vpop.f32.mrb[0].mxu0
        %v2720 = vpop.f32.mrb[0].mxu0
        %v2721 = vadd.f32 %v702, %v2720
        %v2722 = vpop.f32.mrb[0].mxu0
        %2723 = vmatprep.mubr.bf16.mxu0 0
        %2724 = vmatmul.mubr.bf16.gmra.mrb[0].mxu0 %v1903
        %v2725 = vpop.f32.mrb[0].mxu0
        %v2726 = vadd.f32 %v702, %v2725
        %v2727 = vpop.f32.mrb[0].mxu0
        %v2728 = vpop.f32.mrb[0].mxu0
        %v2729 = vadd.f32 %v702, %v2728
        %v2730 = vpop.f32.mrb[0].mxu0
        %2731 = vmatprep.mubr.bf16.mxu0 0
        %2732 = vmatmul.mubr.bf16.gmra.mrb[0].mxu0 %v1906
        %v2733 = vpop.f32.mrb[0].mxu0
        %v2734 = vadd.f32 %v702, %v2733
        %v2735 = vpop.f32.mrb[0].mxu0
        %v2736 = vpop.f32.mrb[0].mxu0
        %v2737 = vadd.f32 %v702, %v2736
        %v2738 = vpop.f32.mrb[0].mxu0
        %2739 = vmatprep.mubr.bf16.mxu0 0
        %2740 = vmatmul.mubr.bf16.gmra.mrb[0].mxu0 %v1909
        %v2741 = vpop.f32.mrb[0].mxu0
        %v2742 = vadd.f32 %v702, %v2741
        %v2743 = vpop.f32.mrb[0].mxu0
        %v2744 = vpop.f32.mrb[0].mxu0
        %v2745 = vadd.f32 %v702, %v2744
        %v2746 = vpop.f32.mrb[0].mxu0
        %2747 = vmatprep.mubr.bf16.mxu0 0
        %2748 = vmatmul.mubr.bf16.gmra.mrb[0].mxu0 %v1912
        %v2749 = vpop.f32.mrb[0].mxu0
        %v2750 = vadd.f32 %v702, %v2749
        %v2751 = vpop.f32.mrb[0].mxu0
        %v2752 = vpop.f32.mrb[0].mxu0
        %v2753 = vadd.f32 %v702, %v2752
        %v2754 = vpop.f32.mrb[0].mxu0
        %2755 = vmatprep.mubr.bf16.mxu0 0
        %2756 = vmatmul.mubr.bf16.gmra.mrb[0].mxu0 %v1915
        %v2757 = vpop.f32.mrb[0].mxu0
        %v2758 = vadd.f32 %v702, %v2757
        %v2759 = vpop.f32.mrb[0].mxu0
        %v2760 = vpop.f32.mrb[0].mxu0
        %v2761 = vadd.f32 %v702, %v2760
        %v2762 = vpop.f32.mrb[0].mxu0
        %2763 = vmatprep.mubr.bf16.mxu0 0
        %2764 = vmatmul.mubr.bf16.gmra.mrb[0].mxu0 %v1918
        %v2765 = vpop.f32.mrb[0].mxu0
        %v2766 = vadd.f32 %v702, %v2765
        %v2767 = vpop.f32.mrb[0].mxu0
        %v2768 = vpop.f32.mrb[0].mxu0
        %v2769 = vadd.f32 %v702, %v2768
        %v2770 = vpop.f32.mrb[0].mxu0
        %2771 = vmatprep.mubr.bf16.mxu0 0
        %2772 = vmatmul.mubr.bf16.gmra.mrb[0].mxu0 %v1921
        %v2773 = vpop.f32.mrb[0].mxu0
        %v2774 = vadd.f32 %v702, %v2773
        %v2775 = vpop.f32.mrb[0].mxu0
        %v2776 = vpop.f32.mrb[0].mxu0
        %v2777 = vadd.f32 %v702, %v2776
        %v2778 = vpop.f32.mrb[0].mxu0
        %2779 = vmatprep.mubr.bf16.mxu0 0
        %2780 = vmatmul.mubr.bf16.gmra.mrb[0].mxu0 %v1924
        %v2781 = vpop.f32.mrb[0].mxu0
        %v2782 = vadd.f32 %v702, %v2781
        %v2783 = vpop.f32.mrb[0].mxu0
        %v2784 = vpop.f32.mrb[0].mxu0
        %v2785 = vadd.f32 %v702, %v2784
        %v2786 = vpop.f32.mrb[0].mxu0
        %2787 = vmatprep.mubr.bf16.mxu0 0
        %2788 = vmatmul.mubr.bf16.gmra.mrb[0].mxu0 %v1927
        %v2789 = vpop.f32.mrb[0].mxu0
        %v2790 = vadd.f32 %v702, %v2789
        %v2791 = vpop.f32.mrb[0].mxu0
        %v2792 = vpop.f32.mrb[0].mxu0
        %v2793 = vadd.f32 %v702, %v2792
        %v2794 = vpop.f32.mrb[0].mxu0
        %2795 = vmatprep.mubr.bf16.mxu0 0
        %2796 = vmatmul.mubr.bf16.gmra.mrb[0].mxu0 %v1930
        %v2797 = vpop.f32.mrb[0].mxu0
        %v2798 = vadd.f32 %v702, %v2797
        %v2799 = vpop.f32.mrb[0].mxu0
        %v2800 = vpop.f32.mrb[0].mxu0
        %v2801 = vadd.f32 %v702, %v2800
        %v2802 = vpop.f32.mrb[0].mxu0
        %2803 = vmatprep.mubr.bf16.mxu0 0
        %2804 = vmatmul.mubr.bf16.gmra.mrb[0].mxu0 %v1933
        %v2805 = vpop.f32.mrb[0].mxu0
        %v2806 = vadd.f32 %v702, %v2805
        %v2807 = vpop.f32.mrb[0].mxu0
        %v2808 = vpop.f32.mrb[0].mxu0
        %v2809 = vadd.f32 %v702, %v2808
        %v2810 = vpop.f32.mrb[0].mxu0
        %2811 = vmatprep.mubr.bf16.mxu0 0
        %2812 = vmatmul.mubr.bf16.gmra.mrb[0].mxu0 %v1936
        %v2813 = vpop.f32.mrb[0].mxu0
        %v2814 = vadd.f32 %v702, %v2813
        %v2815 = vpop.f32.mrb[0].mxu0
        %v2816 = vpop.f32.mrb[0].mxu0
        %v2817 = vadd.f32 %v702, %v2816
        %v2818 = vpop.f32.mrb[0].mxu0
        %2819 = vmatprep.mubr.bf16.mxu0 0
        %2820 = vmatmul.mubr.bf16.gmra.mrb[0].mxu0 %v1939
        %v2821 = vpop.f32.mrb[0].mxu0
        %v2822 = vadd.f32 %v702, %v2821
        %v2823 = vpop.f32.mrb[0].mxu0
        %v2824 = vpop.f32.mrb[0].mxu0
        %v2825 = vadd.f32 %v702, %v2824
        %v2826 = vpop.f32.mrb[0].mxu0
        %2827 = vmatprep.mubr.bf16.mxu0 0
        %2828 = vmatmul.mubr.bf16.gmra.mrb[0].mxu0 %v1942
        %v2829 = vpop.f32.mrb[0].mxu0
        %v2830 = vadd.f32 %v702, %v2829
        %v2831 = vpop.f32.mrb[0].mxu0
        %v2832 = vpop.f32.mrb[0].mxu0
        %v2833 = vadd.f32 %v702, %v2832
        %v2834 = vpop.f32.mrb[0].mxu0
        %2835 = vmatprep.mubr.bf16.mxu0 0
        %2836 = vmatmul.mubr.bf16.gmra.mrb[0].mxu0 %v1945
        %v2837 = vpop.f32.mrb[0].mxu0
        %v2838 = vadd.f32 %v702, %v2837
        %v2839 = vpop.f32.mrb[0].mxu0
        %v2840 = vpop.f32.mrb[0].mxu0
        %v2841 = vadd.f32 %v702, %v2840
        %v2842 = vpop.f32.mrb[0].mxu0
        %2843 = vmatprep.mubr.bf16.mxu0 0
        %2844 = vmatmul.mubr.bf16.gmra.mrb[0].mxu0 %v1948
        %v2845 = vpop.f32.mrb[0].mxu0
        %v2846 = vadd.f32 %v702, %v2845
        %v2847 = vpop.f32.mrb[0].mxu0
        %v2848 = vpop.f32.mrb[0].mxu0
        %v2849 = vadd.f32 %v702, %v2848
        %v2850 = vpop.f32.mrb[0].mxu0
        %2851 = vmatprep.mubr.bf16.mxu0 0
        %2852 = vmatmul.mubr.bf16.gmra.mrb[0].mxu0 %v1951
        %v2853 = vpop.f32.mrb[0].mxu0
        %v2854 = vadd.f32 %v702, %v2853
        %v2855 = vpop.f32.mrb[0].mxu0
        %v2856 = vpop.f32.mrb[0].mxu0
        %v2857 = vadd.f32 %v702, %v2856
        %v2858 = vpop.f32.mrb[0].mxu0
        %2859 = vmatprep.mubr.bf16.mxu0 0
        %2860 = vmatmul.mubr.bf16.gmra.mrb[0].mxu0 %v1954
        %v2861 = vpop.f32.mrb[0].mxu0
        %v2862 = vadd.f32 %v702, %v2861
        %v2863 = vpop.f32.mrb[0].mxu0
        %v2864 = vpop.f32.mrb[0].mxu0
        %v2865 = vadd.f32 %v702, %v2864
        %v2866 = vpop.f32.mrb[0].mxu0
        %2867 = vmatprep.mubr.bf16.mxu0 0
        %2868 = vmatmul.mubr.bf16.gmra.mrb[0].mxu0 %v1957
        %v2869 = vpop.f32.mrb[0].mxu0
        %v2870 = vadd.f32 %v702, %v2869
        %v2871 = vpop.f32.mrb[0].mxu0
        %v2872 = vpop.f32.mrb[0].mxu0
        %v2873 = vadd.f32 %v702, %v2872
        %v2874 = vpop.f32.mrb[0].mxu0
        %2875 = vmatprep.mubr.bf16.mxu0 0
        %2876 = vmatmul.mubr.bf16.gmra.mrb[0].mxu0 %v1960
        %v2877 = vpop.f32.mrb[0].mxu0
        %v2878 = vadd.f32 %v702, %v2877
        %v2879 = vpop.f32.mrb[0].mxu0
        %v2880 = vpop.f32.mrb[0].mxu0
        %v2881 = vadd.f32 %v702, %v2880
        %v2882 = vpop.f32.mrb[0].mxu0
        %2883 = vmatprep.mubr.bf16.mxu0 0
        %2884 = vmatmul.mubr.bf16.gmra.mrb[0].mxu0 %v1963
        %v2885 = vpop.f32.mrb[0].mxu0
        %v2886 = vadd.f32 %v702, %v2885
        %v2887 = vpop.f32.mrb[0].mxu0
        %v2888 = vpop.f32.mrb[0].mxu0
        %v2889 = vadd.f32 %v702, %v2888
        %v2890 = vpop.f32.mrb[0].mxu0
        %2891 = vmatprep.mubr.bf16.mxu0 0
        %2892 = vmatmul.mubr.bf16.gmra.mrb[0].mxu0 %v1966
        %v2893 = vpop.f32.mrb[0].mxu0
        %v2894 = vadd.f32 %v702, %v2893
        %v2895 = vpop.f32.mrb[0].mxu0
        %v2896 = vpop.f32.mrb[0].mxu0
        %v2897 = vadd.f32 %v702, %v2896
        %v2898 = vpop.f32.mrb[0].mxu0
        %2899 = vmatprep.mubr.bf16.mxu0 0
        %2900 = vmatmul.mubr.bf16.gmra.mrb[0].mxu0 %v1969
        %v2901 = vpop.f32.mrb[0].mxu0
        %v2902 = vadd.f32 %v702, %v2901
        %v2903 = vpop.f32.mrb[0].mxu0
        %v2904 = vpop.f32.mrb[0].mxu0
        %v2905 = vadd.f32 %v702, %v2904
        %v2906 = vpop.f32.mrb[0].mxu0
        %2907 = vmatprep.mubr.bf16.mxu0 0
        %2908 = vmatmul.mubr.bf16.gmra.mrb[0].mxu0 %v1972
        %v2909 = vpop.f32.mrb[0].mxu0
        %v2910 = vadd.f32 %v702, %v2909
        %v2911 = vpop.f32.mrb[0].mxu0
        %v2912 = vpop.f32.mrb[0].mxu0
        %v2913 = vadd.f32 %v702, %v2912
        %v2914 = vpop.f32.mrb[0].mxu0
        %2915 = vmatprep.mubr.bf16.mxu0 0
        %2916 = vmatmul.mubr.bf16.gmra.mrb[0].mxu0 %v1975
        %v2917 = vpop.f32.mrb[0].mxu0
        %v2918 = vadd.f32 %v702, %v2917
        %v2919 = vpop.f32.mrb[0].mxu0
        %v2920 = vpop.f32.mrb[0].mxu0
        %v2921 = vadd.f32 %v702, %v2920
        %v2922 = vpop.f32.mrb[0].mxu0
        %2923 = vmatprep.mubr.bf16.mxu0 0
        %2924 = vmatmul.mubr.bf16.gmra.mrb[0].mxu0 %v1978
        %v2925 = vpop.f32.mrb[0].mxu0
        %v2926 = vadd.f32 %v702, %v2925
        %v2927 = vpop.f32.mrb[0].mxu0
        %v2928 = vpop.f32.mrb[0].mxu0
        %v2929 = vadd.f32 %v702, %v2928
        %v2930 = vpop.f32.mrb[0].mxu0
        %2931 = vmatprep.mubr.bf16.mxu0 0
        %2932 = vmatmul.mubr.bf16.gmra.mrb[0].mxu0 %v1981
        %v2933 = vpop.f32.mrb[0].mxu0
        %v2934 = vadd.f32 %v702, %v2933
        %v2935 = vpop.f32.mrb[0].mxu0
        %v2936 = vpop.f32.mrb[0].mxu0
        %v2937 = vadd.f32 %v702, %v2936
        %v2938 = vpop.f32.mrb[0].mxu0
        %2939 = vmatprep.mubr.bf16.mxu0 0
        %2940 = vmatmul.mubr.bf16.gmra.mrb[0].mxu0 %v1984
        %v2941 = vpop.f32.mrb[0].mxu0
        %v2942 = vadd.f32 %v702, %v2941
        %v2943 = vpop.f32.mrb[0].mxu0
        %v2944 = vpop.f32.mrb[0].mxu0
        %v2945 = vadd.f32 %v702, %v2944
        %v2946 = vpop.f32.mrb[0].mxu0
        %2947 = vmatprep.mubr.bf16.mxu0 0
        %2948 = vmatmul.mubr.bf16.gmra.mrb[0].mxu0 %v1987
        %v2949 = vpop.f32.mrb[0].mxu0
        %v2950 = vadd.f32 %v702, %v2949
        %v2951 = vpop.f32.mrb[0].mxu0
        %v2952 = vpop.f32.mrb[0].mxu0
        %v2953 = vadd.f32 %v702, %v2952
        %v2954 = vpop.f32.mrb[0].mxu0
        %2955 = vmatprep.mubr.bf16.mxu0 0
        %2956 = vmatmul.mubr.bf16.gmra.mrb[0].mxu0 %v1990
        %v2957 = vpop.f32.mrb[0].mxu0
        %v2958 = vadd.f32 %v702, %v2957
        %v2959 = vpop.f32.mrb[0].mxu0
        %v2960 = vpop.f32.mrb[0].mxu0
        %v2961 = vadd.f32 %v702, %v2960
        %v2962 = vpop.f32.mrb[0].mxu0
        %2963 = vmatprep.mubr.bf16.mxu0 0
        %2964 = vmatmul.mubr.bf16.gmra.mrb[0].mxu0 %v1993
        %v2965 = vpop.f32.mrb[0].mxu0
        %v2966 = vadd.f32 %v702, %v2965
        %v2967 = vpop.f32.mrb[0].mxu0
        %v2968 = vpop.f32.mrb[0].mxu0
        %v2969 = vadd.f32 %v702, %v2968
        %v2970 = vpop.f32.mrb[0].mxu0
        %2971 = vmatprep.mubr.bf16.mxu0 0
        %2972 = vmatmul.mubr.bf16.gmra.mrb[0].mxu0 %v1996
        %v2973 = vpop.f32.mrb[0].mxu0
        %v2974 = vadd.f32 %v702, %v2973
        %v2975 = vpop.f32.mrb[0].mxu0
        %v2976 = vpop.f32.mrb[0].mxu0
        %v2977 = vadd.f32 %v702, %v2976
        %v2978 = vpop.f32.mrb[0].mxu0
        %2979 = vmatprep.mubr.bf16.mxu0 0
        %2980 = vmatmul.mubr.bf16.gmra.mrb[0].mxu0 %v1999
        %v2981 = vpop.f32.mrb[0].mxu0
        %v2982 = vadd.f32 %v702, %v2981
        %v2983 = vpop.f32.mrb[0].mxu0
        %v2984 = vpop.f32.mrb[0].mxu0
        %v2985 = vadd.f32 %v702, %v2984
        %v2986 = vpop.f32.mrb[0].mxu0
        %2987 = vmatprep.mubr.bf16.mxu0 0
        %2988 = vmatmul.mubr.bf16.gmra.mrb[0].mxu0 %v2002
        %v2989 = vpop.f32.mrb[0].mxu0
        %v2990 = vadd.f32 %v702, %v2989
        %v2991 = vpop.f32.mrb[0].mxu0
        %v2992 = vpop.f32.mrb[0].mxu0
        %v2993 = vadd.f32 %v702, %v2992
        %v2994 = vpop.f32.mrb[0].mxu0
        %2995 = vmatprep.mubr.bf16.mxu0 0
        %2996 = vmatmul.mubr.bf16.gmra.mrb[0].mxu0 %v2005
        %v2997 = vpop.f32.mrb[0].mxu0
        %v2998 = vadd.f32 %v702, %v2997
        %v2999 = vpop.f32.mrb[0].mxu0
        %v3000 = vpop.f32.mrb[0].mxu0
        %v3001 = vadd.f32 %v702, %v3000
        %v3002 = vpop.f32.mrb[0].mxu0
        %3003 = vmatprep.mubr.bf16.mxu0 0
        %3004 = vmatmul.mubr.bf16.gmra.mrb[0].mxu0 %v2008
        %v3005 = vpop.f32.mrb[0].mxu0
        %v3006 = vadd.f32 %v702, %v3005
        %v3007 = vpop.f32.mrb[0].mxu0
        %v3008 = vpop.f32.mrb[0].mxu0
        %v3009 = vadd.f32 %v702, %v3008
        %v3010 = vpop.f32.mrb[0].mxu0
        %3011 = vmatprep.mubr.bf16.mxu0 0
        %3012 = vmatmul.mubr.bf16.gmra.mrb[0].mxu0 %v2011
        %v3013 = vpop.f32.mrb[0].mxu0
        %v3014 = vadd.f32 %v702, %v3013
        %v3015 = vpop.f32.mrb[0].mxu0
        %v3016 = vpop.f32.mrb[0].mxu0
        %v3017 = vadd.f32 %v702, %v3016
        %v3018 = vpop.f32.mrb[0].mxu0
        %3019 = vmatprep.mubr.bf16.mxu0 0
        %3020 = vmatmul.mubr.bf16.gmra.mrb[0].mxu0 %v2014
        %v3021 = vpop.f32.mrb[0].mxu0
        %v3022 = vadd.f32 %v702, %v3021
        %v3023 = vpop.f32.mrb[0].mxu0
        %v3024 = vpop.f32.mrb[0].mxu0
        %v3025 = vadd.f32 %v702, %v3024
        %v3026 = vpop.f32.mrb[0].mxu0
        %3027 = vmatprep.mubr.bf16.mxu0 0
        %3028 = vmatmul.mubr.bf16.gmra.mrb[0].mxu0 %v2017
        %v3029 = vpop.f32.mrb[0].mxu0
        %v3030 = vadd.f32 %v702, %v3029
        %v3031 = vpop.f32.mrb[0].mxu0
        %v3032 = vpop.f32.mrb[0].mxu0
        %v3033 = vadd.f32 %v702, %v3032
        %v3034 = vpop.f32.mrb[0].mxu0
        %3035 = vmatprep.mubr.bf16.mxu0 0
        %3036 = vmatmul.mubr.bf16.gmra.mrb[0].mxu0 %v2020
        %v3037 = vpop.f32.mrb[0].mxu0
        %v3038 = vadd.f32 %v702, %v3037
        %v3039 = vpop.f32.mrb[0].mxu0
        %v3040 = vpop.f32.mrb[0].mxu0
        %v3041 = vadd.f32 %v702, %v3040
        %v3042 = vpop.f32.mrb[0].mxu0
        %3043 = vmatprep.mubr.bf16.mxu0 0
        %3044 = vmatmul.mubr.bf16.gmra.mrb[0].mxu0 %v2023
        %v3045 = vpop.f32.mrb[0].mxu0
        %v3046 = vadd.f32 %v702, %v3045
        %v3047 = vpop.f32.mrb[0].mxu0
        %v3048 = vpop.f32.mrb[0].mxu0
        %v3049 = vadd.f32 %v702, %v3048
        %v3050 = vpop.f32.mrb[0].mxu0
        %3051 = vmatprep.mubr.bf16.mxu0 0
        %3052 = vmatmul.mubr.bf16.gmra.mrb[0].mxu0 %v2026
        %v3053 = vpop.f32.mrb[0].mxu0
        %v3054 = vadd.f32 %v702, %v3053
        %v3055 = vpop.f32.mrb[0].mxu0
        %v3056 = vpop.f32.mrb[0].mxu0
        %v3057 = vadd.f32 %v702, %v3056
        %v3058 = vpop.f32.mrb[0].mxu0
        %3059 = vmatprep.mubr.bf16.mxu0 0
        %3060 = vmatmul.mubr.bf16.gmra.mrb[0].mxu0 %v2029
        %v3061 = vpop.f32.mrb[0].mxu0
        %v3062 = vadd.f32 %v702, %v3061
        %v3063 = vpop.f32.mrb[0].mxu0
        %v3064 = vpop.f32.mrb[0].mxu0
        %v3065 = vadd.f32 %v702, %v3064
        %v3066 = vpop.f32.mrb[0].mxu0
        %3067 = vmatprep.mubr.bf16.mxu0 0
        %3068 = vmatmul.mubr.bf16.gmra.mrb[0].mxu0 %v2032
        %v3069 = vpop.f32.mrb[0].mxu0
        %v3070 = vadd.f32 %v702, %v3069
        %v3071 = vpop.f32.mrb[0].mxu0
        %v3072 = vpop.f32.mrb[0].mxu0
        %v3073 = vadd.f32 %v702, %v3072
        %v3074 = vpop.f32.mrb[0].mxu0
        %3075 = vmatprep.mubr.bf16.mxu0 0
        %3076 = vmatmul.mubr.bf16.gmra.mrb[0].mxu0 %v2035
        %v3077 = vpop.f32.mrb[0].mxu0
        %v3078 = vadd.f32 %v702, %v3077
        %v3079 = vpop.f32.mrb[0].mxu0
        %v3080 = vpop.f32.mrb[0].mxu0
        %v3081 = vadd.f32 %v702, %v3080
        %v3082 = vpop.f32.mrb[0].mxu0
        %3083 = vmatprep.mubr.bf16.mxu0 0
        %3084 = vmatmul.mubr.bf16.gmra.mrb[0].mxu0 %v2038
        %v3085 = vpop.f32.mrb[0].mxu0
        %v3086 = vadd.f32 %v702, %v3085
        %v3087 = vpop.f32.mrb[0].mxu0
        %v3088 = vpop.f32.mrb[0].mxu0
        %v3089 = vadd.f32 %v702, %v3088
        %v3090 = vpop.f32.mrb[0].mxu0
        %3091 = vmatprep.mubr.bf16.mxu0 0
        %3092 = vmatmul.mubr.bf16.gmra.mrb[0].mxu0 %v2041
        %v3093 = vpop.f32.mrb[0].mxu0
        %v3094 = vadd.f32 %v702, %v3093
        %v3095 = vpop.f32.mrb[0].mxu0
        %v3096 = vpop.f32.mrb[0].mxu0
        %v3097 = vadd.f32 %v702, %v3096
        %v3098 = vpop.f32.mrb[0].mxu0
        %3099 = vmatprep.mubr.bf16.mxu0 0
        %3100 = vmatmul.mubr.bf16.gmra.mrb[0].mxu0 %v2044
        %v3101 = vpop.f32.mrb[0].mxu0
        %v3102 = vadd.f32 %v702, %v3101
        %v3103 = vpop.f32.mrb[0].mxu0
        %v3104 = vpop.f32.mrb[0].mxu0
        %v3105 = vadd.f32 %v702, %v3104
        %v3106 = vpop.f32.mrb[0].mxu0
        %3107 = vmatprep.mubr.bf16.mxu0 0
        %3108 = vmatmul.mubr.bf16.gmra.mrb[0].mxu0 %v2047
        %v3109 = vpop.f32.mrb[0].mxu0
        %v3110 = vadd.f32 %v702, %v3109
        %v3111 = vpop.f32.mrb[0].mxu0
        %v3112 = vpop.f32.mrb[0].mxu0
        %v3113 = vadd.f32 %v702, %v3112
        %v3114 = vpop.f32.mrb[0].mxu0
        %3115 = vmatprep.mubr.bf16.mxu0 0
        %3116 = vmatmul.mubr.bf16.gmra.mrb[0].mxu0 %v2050
        %v3117 = vpop.f32.mrb[0].mxu0
        %v3118 = vadd.f32 %v702, %v3117
        %v3119 = vpop.f32.mrb[0].mxu0
        %v3120 = vpop.f32.mrb[0].mxu0
        %v3121 = vadd.f32 %v702, %v3120
        %v3122 = vpop.f32.mrb[0].mxu0
        %3123 = vmatprep.mubr.bf16.mxu0 0
        %3124 = vmatmul.mubr.bf16.gmra.mrb[0].mxu0 %v2053
        %v3125 = vpop.f32.mrb[0].mxu0
        %v3126 = vadd.f32 %v702, %v3125
        %v3127 = vpop.f32.mrb[0].mxu0
        %v3128 = vpop.f32.mrb[0].mxu0
        %v3129 = vadd.f32 %v702, %v3128
        %v3130 = vpop.f32.mrb[0].mxu0
        %3131 = vmatprep.mubr.bf16.mxu0 0
        %3132 = vmatmul.mubr.bf16.gmra.mrb[0].mxu0 %v2056
        %v3133 = vpop.f32.mrb[0].mxu0
        %v3134 = vadd.f32 %v702, %v3133
        %v3135 = vpop.f32.mrb[0].mxu0
        %v3136 = vpop.f32.mrb[0].mxu0
        %v3137 = vadd.f32 %v702, %v3136
        %v3138 = vpop.f32.mrb[0].mxu0
        %3139 = vmatprep.mubr.bf16.mxu0 0
        %3140 = vmatmul.mubr.bf16.gmra.mrb[0].mxu0 %v2059
        %v3141 = vpop.f32.mrb[0].mxu0
        %v3142 = vadd.f32 %v702, %v3141
        %v3143 = vpop.f32.mrb[0].mxu0
        %v3144 = vpop.f32.mrb[0].mxu0
        %v3145 = vadd.f32 %v702, %v3144
        %v3146 = vpop.f32.mrb[0].mxu0
        %3147 = vmatprep.mubr.bf16.mxu0 0
        %3148 = vmatmul.mubr.bf16.gmra.mrb[0].mxu0 %v2062
        %v3149 = vpop.f32.mrb[0].mxu0
        %v3150 = vadd.f32 %v702, %v3149
        %v3151 = vpop.f32.mrb[0].mxu0
        %v3152 = vpop.f32.mrb[0].mxu0
        %v3153 = vadd.f32 %v702, %v3152
        %v3154 = vpop.f32.mrb[0].mxu0
        %3155 = vmatprep.mubr.bf16.mxu0 0
        %3156 = vmatmul.mubr.bf16.gmra.mrb[0].mxu0 %v2065
        %v3157 = vpop.f32.mrb[0].mxu0
        %v3158 = vadd.f32 %v702, %v3157
        %v3159 = vpop.f32.mrb[0].mxu0
        %v3160 = vpop.f32.mrb[0].mxu0
        %v3161 = vadd.f32 %v702, %v3160
        %v3162 = vpop.f32.mrb[0].mxu0
        %3163 = vmatprep.mubr.bf16.mxu0 0
        %3164 = vmatmul.mubr.bf16.gmra.mrb[0].mxu0 %v2068
        %v3165 = vpop.f32.mrb[0].mxu0
        %v3166 = vadd.f32 %v702, %v3165
        %v3167 = vpop.f32.mrb[0].mxu0
        %v3168 = vpop.f32.mrb[0].mxu0
        %v3169 = vadd.f32 %v702, %v3168
        %v3170 = vpop.f32.mrb[0].mxu0
        %3171 = vmatprep.mubr.bf16.mxu0 0
        %3172 = vmatmul.mubr.bf16.gmra.mrb[0].mxu0 %v2071
        %v3173 = vpop.f32.mrb[0].mxu0
        %v3174 = vadd.f32 %v702, %v3173
        %v3175 = vpop.f32.mrb[0].mxu0
        %v3176 = vpop.f32.mrb[0].mxu0
        %v3177 = vadd.f32 %v702, %v3176
        %v3178 = vpop.f32.mrb[0].mxu0
        %3179 = vmatprep.mubr.bf16.mxu0 0
        %3180 = vmatmul.mubr.bf16.gmra.mrb[0].mxu0 %v2074
        %v3181 = vpop.f32.mrb[0].mxu0
        %v3182 = vadd.f32 %v702, %v3181
        %v3183 = vpop.f32.mrb[0].mxu0
        %v3184 = vpop.f32.mrb[0].mxu0
        %v3185 = vadd.f32 %v702, %v3184
        %v3186 = vpop.f32.mrb[0].mxu0
        %3187 = vmatprep.mubr.bf16.mxu0 0
        %3188 = vmatmul.mubr.bf16.gmra.mrb[0].mxu0 %v2077
        %v3189 = vpop.f32.mrb[0].mxu0
        %v3190 = vadd.f32 %v702, %v3189
        %v3191 = vpop.f32.mrb[0].mxu0
        %v3192 = vpop.f32.mrb[0].mxu0
        %v3193 = vadd.f32 %v702, %v3192
        %v3194 = vpop.f32.mrb[0].mxu0
        %3195 = vmatprep.mubr.bf16.mxu0 0
        %3196 = vmatmul.mubr.bf16.gmra.mrb[0].mxu0 %v2080
        %v3197 = vpop.f32.mrb[0].mxu0
        %v3198 = vadd.f32 %v702, %v3197
        %v3199 = vpop.f32.mrb[0].mxu0
        %v3200 = vpop.f32.mrb[0].mxu0
        %v3201 = vadd.f32 %v702, %v3200
        %v3202 = vpop.f32.mrb[0].mxu0
        %3203 = vmatprep.mubr.bf16.mxu0 0
        %3204 = vmatmul.mubr.bf16.gmra.mrb[0].mxu0 %v2083
        %v3205 = vpop.f32.mrb[0].mxu0
        %v3206 = vadd.f32 %v702, %v3205
        %v3207 = vpop.f32.mrb[0].mxu0
        %v3208 = vpop.f32.mrb[0].mxu0
        %v3209 = vadd.f32 %v702, %v3208
        %v3210 = vpop.f32.mrb[0].mxu0
        %3211 = vmatprep.mubr.bf16.mxu0 0
        %3212 = vmatmul.mubr.bf16.gmra.mrb[0].mxu0 %v2086
        %v3213 = vpop.f32.mrb[0].mxu0
        %v3214 = vadd.f32 %v702, %v3213
        %v3215 = vpop.f32.mrb[0].mxu0
        %v3216 = vpop.f32.mrb[0].mxu0
        %v3217 = vadd.f32 %v702, %v3216
        %v3218 = vpop.f32.mrb[0].mxu0
        %3219 = vmatprep.mubr.bf16.mxu0 0
        %3220 = vmatmul.mubr.bf16.gmra.mrb[0].mxu0 %v2089
        %v3221 = vpop.f32.mrb[0].mxu0
        %v3222 = vadd.f32 %v702, %v3221
        %v3223 = vpop.f32.mrb[0].mxu0
        %v3224 = vpop.f32.mrb[0].mxu0
        %v3225 = vadd.f32 %v702, %v3224
        %v3226 = vpop.f32.mrb[0].mxu0
        %3227 = vmatprep.mubr.bf16.mxu0 0
        %3228 = vmatmul.mubr.bf16.gmra.mrb[0].mxu0 %v2092
        %v3229 = vpop.f32.mrb[0].mxu0
        %v3230 = vadd.f32 %v702, %v3229
        %v3231 = vpop.f32.mrb[0].mxu0
        %v3232 = vpop.f32.mrb[0].mxu0
        %v3233 = vadd.f32 %v702, %v3232
        %v3234 = vpop.f32.mrb[0].mxu0
        %3235 = vmatprep.mubr.bf16.mxu0 0
        %3236 = vmatmul.mubr.bf16.gmra.mrb[0].mxu0 %v2095
        %v3237 = vpop.f32.mrb[0].mxu0
        %v3238 = vadd.f32 %v702, %v3237
        %v3239 = vpop.f32.mrb[0].mxu0
        %v3240 = vpop.f32.mrb[0].mxu0
        %v3241 = vadd.f32 %v702, %v3240
        %v3242 = vpop.f32.mrb[0].mxu0
        %3243 = vmatprep.mubr.bf16.mxu0 0
        %3244 = vmatmul.mubr.bf16.gmra.mrb[0].mxu0 %v2098
        %v3245 = vpop.f32.mrb[0].mxu0
        %v3246 = vadd.f32 %v702, %v3245
        %v3247 = vpop.f32.mrb[0].mxu0
        %v3248 = vpop.f32.mrb[0].mxu0
        %v3249 = vadd.f32 %v702, %v3248
        %v3250 = vpop.f32.mrb[0].mxu0
        %3251 = vmatprep.mubr.bf16.mxu0 0
        %3252 = vmatmul.mubr.bf16.gmra.mrb[0].mxu0 %v2101
        %v3253 = vpop.f32.mrb[0].mxu0
        %v3254 = vadd.f32 %v702, %v3253
        %v3255 = vpop.f32.mrb[0].mxu0
        %v3256 = vpop.f32.mrb[0].mxu0
        %v3257 = vadd.f32 %v702, %v3256
        %v3258 = vpop.f32.mrb[0].mxu0
        %3259 = vmatprep.mubr.bf16.mxu0 0
        %3260 = vmatmul.mubr.bf16.gmra.mrb[0].mxu0 %v2104
        %v3261 = vpop.f32.mrb[0].mxu0
        %v3262 = vadd.f32 %v702, %v3261
        %v3263 = vpop.f32.mrb[0].mxu0
        %v3264 = vpop.f32.mrb[0].mxu0
        %v3265 = vadd.f32 %v702, %v3264
        %v3266 = vpop.f32.mrb[0].mxu0
        %3267 = vmatprep.mubr.bf16.mxu0 0
        %3268 = vmatmul.mubr.bf16.gmra.mrb[0].mxu0 %v2107
        %v3269 = vpop.f32.mrb[0].mxu0
        %v3270 = vadd.f32 %v702, %v3269
        %v3271 = vpop.f32.mrb[0].mxu0
        %v3272 = vpop.f32.mrb[0].mxu0
        %v3273 = vadd.f32 %v702, %v3272
        %v3274 = vpop.f32.mrb[0].mxu0
        %3275 = vmatprep.mubr.bf16.mxu0 0
        %3276 = vmatmul.mubr.bf16.gmra.mrb[0].mxu0 %v2110
        %v3277 = vpop.f32.mrb[0].mxu0
        %v3278 = vadd.f32 %v702, %v3277
        %v3279 = vpop.f32.mrb[0].mxu0
        %v3280 = vpop.f32.mrb[0].mxu0
        %v3281 = vadd.f32 %v702, %v3280
        %v3282 = vpop.f32.mrb[0].mxu0
        %3283 = vmatprep.mubr.bf16.mxu0 0
        %3284 = vmatmul.mubr.bf16.gmra.mrb[0].mxu0 %v2113
        %v3285 = vpop.f32.mrb[0].mxu0
        %v3286 = vadd.f32 %v702, %v3285
        %v3287 = vpop.f32.mrb[0].mxu0
        %v3288 = vpop.f32.mrb[0].mxu0
        %v3289 = vadd.f32 %v702, %v3288
        %v3290 = vpop.f32.mrb[0].mxu0
        %3291 = vmatprep.mubr.bf16.mxu0 0
        %3292 = vmatmul.mubr.bf16.gmra.mrb[0].mxu0 %v2116
        %v3293 = vpop.f32.mrb[0].mxu0
        %v3294 = vadd.f32 %v702, %v3293
        %v3295 = vpop.f32.mrb[0].mxu0
        %v3296 = vpop.f32.mrb[0].mxu0
        %v3297 = vadd.f32 %v702, %v3296
        %v3298 = vpop.f32.mrb[0].mxu0
        %3299 = vmatprep.mubr.bf16.mxu0 0
        %3300 = vmatmul.mubr.bf16.gmra.mrb[0].mxu0 %v2119
        %v3301 = vpop.f32.mrb[0].mxu0
        %v3302 = vadd.f32 %v702, %v3301
        %v3303 = vpop.f32.mrb[0].mxu0
        %v3304 = vpop.f32.mrb[0].mxu0
        %v3305 = vadd.f32 %v702, %v3304
        %v3306 = vpop.f32.mrb[0].mxu0
        %3307 = vmatprep.mubr.bf16.mxu0 0
        %3308 = vmatmul.mubr.bf16.gmra.mrb[0].mxu0 %v2122
        %v3309 = vpop.f32.mrb[0].mxu0
        %v3310 = vadd.f32 %v702, %v3309
        %v3311 = vpop.f32.mrb[0].mxu0
        %v3312 = vpop.f32.mrb[0].mxu0
        %v3313 = vadd.f32 %v702, %v3312
        %v3314 = vpop.f32.mrb[0].mxu0
        %3315 = vmatprep.mubr.bf16.mxu0 0
        %3316 = vmatmul.mubr.bf16.gmra.mrb[0].mxu0 %v2125
        %v3317 = vpop.f32.mrb[0].mxu0
        %v3318 = vadd.f32 %v702, %v3317
        %v3319 = vpop.f32.mrb[0].mxu0
        %v3320 = vpop.f32.mrb[0].mxu0
        %v3321 = vadd.f32 %v702, %v3320
        %v3322 = vpop.f32.mrb[0].mxu0
        %3323 = vmatprep.mubr.bf16.mxu0 0
        %3324 = vmatmul.mubr.bf16.gmra.mrb[0].mxu0 %v2128
        %v3325 = vpop.f32.mrb[0].mxu0
        %v3326 = vadd.f32 %v702, %v3325
        %v3327 = vpop.f32.mrb[0].mxu0
        %v3328 = vpop.f32.mrb[0].mxu0
        %v3329 = vadd.f32 %v702, %v3328
        %v3330 = vpop.f32.mrb[0].mxu0
        %3331 = vmatprep.mubr.bf16.mxu0 0
        %3332 = vmatmul.mubr.bf16.gmra.mrb[0].mxu0 %v2131
        %v3333 = vpop.f32.mrb[0].mxu0
        %v3334 = vadd.f32 %v702, %v3333
        %v3335 = vpop.f32.mrb[0].mxu0
        %v3336 = vpop.f32.mrb[0].mxu0
        %v3337 = vadd.f32 %v702, %v3336
        %v3338 = vpop.f32.mrb[0].mxu0
        %3339 = vmatprep.mubr.bf16.mxu0 0
        %3340 = vmatmul.mubr.bf16.gmra.mrb[0].mxu0 %v2134
        %v3341 = vpop.f32.mrb[0].mxu0
        %v3342 = vadd.f32 %v702, %v3341
        %v3343 = vpop.f32.mrb[0].mxu0
        %v3344 = vpop.f32.mrb[0].mxu0
        %v3345 = vadd.f32 %v702, %v3344
        %v3346 = vpop.f32.mrb[0].mxu0
        %3347 = vmatprep.mubr.bf16.mxu0 0
        %3348 = vmatmul.mubr.bf16.gmra.mrb[0].mxu0 %v2137
        %v3349 = vpop.f32.mrb[0].mxu0
        %v3350 = vadd.f32 %v702, %v3349
        %v3351 = vpop.f32.mrb[0].mxu0
        %v3352 = vpop.f32.mrb[0].mxu0
        %v3353 = vadd.f32 %v702, %v3352
        %v3354 = vpop.f32.mrb[0].mxu0
        %3355 = vmatprep.mubr.bf16.mxu0 0
        %3356 = vmatmul.mubr.bf16.gmra.mrb[0].mxu0 %v2140
        %v3357 = vpop.f32.mrb[0].mxu0
        %v3358 = vadd.f32 %v702, %v3357
        %v3359 = vpop.f32.mrb[0].mxu0
        %v3360 = vpop.f32.mrb[0].mxu0
        %v3361 = vadd.f32 %v702, %v3360
        %v3362 = vpop.f32.mrb[0].mxu0
        %3363 = vmatprep.mubr.bf16.mxu0 0
        %3364 = vmatmul.mubr.bf16.gmra.mrb[0].mxu0 %v2143
        %v3365 = vpop.f32.mrb[0].mxu0
        %v3366 = vadd.f32 %v702, %v3365
        %v3367 = vpop.f32.mrb[0].mxu0
        %v3368 = vpop.f32.mrb[0].mxu0
        %v3369 = vadd.f32 %v702, %v3368
        %v3370 = vpop.f32.mrb[0].mxu0
        %3371 = vmatprep.mubr.bf16.mxu0 0
        %3372 = vmatmul.mubr.bf16.gmra.mrb[0].mxu0 %v2146
        %v3373 = vpop.f32.mrb[0].mxu0
        %v3374 = vadd.f32 %v702, %v3373
        %v3375 = vpop.f32.mrb[0].mxu0
        %v3376 = vpop.f32.mrb[0].mxu0
        %v3377 = vadd.f32 %v702, %v3376
        %v3378 = vpop.f32.mrb[0].mxu0
        %3379 = vmatprep.mubr.bf16.mxu0 0
        %3380 = vmatmul.mubr.bf16.gmra.mrb[0].mxu0 %v2149
        %v3381 = vpop.f32.mrb[0].mxu0
        %v3382 = vadd.f32 %v702, %v3381
        %v3383 = vpop.f32.mrb[0].mxu0
        %v3384 = vpop.f32.mrb[0].mxu0
        %v3385 = vadd.f32 %v702, %v3384
        %v3386 = vpop.f32.mrb[0].mxu0
        %3387 = vmatprep.mubr.bf16.mxu0 0
        %3388 = vmatmul.mubr.bf16.gmra.mrb[0].mxu0 %v2152
        %v3389 = vpop.f32.mrb[0].mxu0
        %v3390 = vadd.f32 %v702, %v3389
        %v3391 = vpop.f32.mrb[0].mxu0
        %v3392 = vpop.f32.mrb[0].mxu0
        %v3393 = vadd.f32 %v702, %v3392
        %v3394 = vpop.f32.mrb[0].mxu0
        %3395 = vmatprep.mubr.bf16.mxu0 0
        %3396 = vmatmul.mubr.bf16.gmra.mrb[0].mxu0 %v2155
        %v3397 = vpop.f32.mrb[0].mxu0
        %v3398 = vadd.f32 %v702, %v3397
        %v3399 = vpop.f32.mrb[0].mxu0
        %v3400 = vpop.f32.mrb[0].mxu0
        %v3401 = vadd.f32 %v702, %v3400
        %v3402 = vpop.f32.mrb[0].mxu0
        %3403 = vmatprep.mubr.bf16.mxu0 0
        %3404 = vmatmul.mubr.bf16.gmra.mrb[0].mxu0 %v2158
        %v3405 = vpop.f32.mrb[0].mxu0
        %v3406 = vadd.f32 %v702, %v3405
        %v3407 = vpop.f32.mrb[0].mxu0
        %v3408 = vpop.f32.mrb[0].mxu0
        %v3409 = vadd.f32 %v702, %v3408
        %v3410 = vpop.f32.mrb[0].mxu0
        %3411 = vmatprep.mubr.bf16.mxu0 0
        %3412 = vmatmul.mubr.bf16.gmra.mrb[0].mxu0 %v2161
        %v3413 = vpop.f32.mrb[0].mxu0
        %v3414 = vadd.f32 %v702, %v3413
        %v3415 = vpop.f32.mrb[0].mxu0
        %v3416 = vpop.f32.mrb[0].mxu0
        %v3417 = vadd.f32 %v702, %v3416
        %v3418 = vpop.f32.mrb[0].mxu0
        %3419 = vmatprep.mubr.bf16.mxu0 0
        %3420 = vmatmul.mubr.bf16.gmra.mrb[0].mxu0 %v2164
        %v3421 = vpop.f32.mrb[0].mxu0
        %v3422 = vadd.f32 %v702, %v3421
        %v3423 = vpop.f32.mrb[0].mxu0
        %v3424 = vpop.f32.mrb[0].mxu0
        %v3425 = vadd.f32 %v702, %v3424
        %v3426 = vpop.f32.mrb[0].mxu0
        %3427 = vmatprep.mubr.bf16.mxu0 0
        %3428 = vmatmul.mubr.bf16.gmra.mrb[0].mxu0 %v2167
        %v3429 = vpop.f32.mrb[0].mxu0
        %v3430 = vadd.f32 %v702, %v3429
        %v3431 = vpop.f32.mrb[0].mxu0
        %v3432 = vpop.f32.mrb[0].mxu0
        %v3433 = vadd.f32 %v702, %v3432
        %v3434 = vpop.f32.mrb[0].mxu0
        %3435 = vmatprep.mubr.bf16.mxu0 0
        %3436 = vmatmul.mubr.bf16.gmra.mrb[0].mxu0 %v2170
        %v3437 = vpop.f32.mrb[0].mxu0
        %v3438 = vadd.f32 %v702, %v3437
        %v3439 = vpop.f32.mrb[0].mxu0
        %v3440 = vpop.f32.mrb[0].mxu0
        %v3441 = vadd.f32 %v702, %v3440
        %v3442 = vpop.f32.mrb[0].mxu0
        %3443 = vmatprep.mubr.bf16.mxu0 0
        %3444 = vmatmul.mubr.bf16.gmra.mrb[0].mxu0 %v2173
        %v3445 = vpop.f32.mrb[0].mxu0
        %v3446 = vadd.f32 %v702, %v3445
        %v3447 = vpop.f32.mrb[0].mxu0
        %v3448 = vpop.f32.mrb[0].mxu0
        %v3449 = vadd.f32 %v702, %v3448
        %v3450 = vpop.f32.mrb[0].mxu0
        %3451 = vmatprep.mubr.bf16.mxu0 0
        %3452 = vmatmul.mubr.bf16.gmra.mrb[0].mxu0 %v2176
        %v3453 = vpop.f32.mrb[0].mxu0
        %v3454 = vadd.f32 %v702, %v3453
        %v3455 = vpop.f32.mrb[0].mxu0
        %v3456 = vpop.f32.mrb[0].mxu0
        %v3457 = vadd.f32 %v702, %v3456
        %v3458 = vpop.f32.mrb[0].mxu0
        %3459 = vmatprep.mubr.bf16.mxu0 0
        %3460 = vmatmul.mubr.bf16.gmra.mrb[0].mxu0 %v2179
        %v3461 = vpop.f32.mrb[0].mxu0
        %v3462 = vadd.f32 %v702, %v3461
        %v3463 = vpop.f32.mrb[0].mxu0
        %v3464 = vpop.f32.mrb[0].mxu0
        %v3465 = vadd.f32 %v702, %v3464
        %v3466 = vpop.f32.mrb[0].mxu0
        %3467 = vmatprep.mubr.bf16.mxu0 0
        %3468 = vmatmul.mubr.bf16.gmra.mrb[0].mxu0 %v2182
        %v3469 = vpop.f32.mrb[0].mxu0
        %v3470 = vadd.f32 %v702, %v3469
        %v3471 = vpop.f32.mrb[0].mxu0
        %v3472 = vpop.f32.mrb[0].mxu0
        %v3473 = vadd.f32 %v702, %v3472
        %v3474 = vpop.f32.mrb[0].mxu0
        %3475 = vmatprep.mubr.bf16.mxu0 0
        %3476 = vmatmul.mubr.bf16.gmra.mrb[0].mxu0 %v2185
        %v3477 = vpop.f32.mrb[0].mxu0
        %v3478 = vadd.f32 %v702, %v3477
        %v3479 = vpop.f32.mrb[0].mxu0
        %v3480 = vpop.f32.mrb[0].mxu0
        %v3481 = vadd.f32 %v702, %v3480
        %v3482 = vpop.f32.mrb[0].mxu0
        %3483 = vmatprep.mubr.bf16.mxu0 0
        %3484 = vmatmul.mubr.bf16.gmra.mrb[0].mxu0 %v2188
        %v3485 = vpop.f32.mrb[0].mxu0
        %v3486 = vadd.f32 %v702, %v3485
        %v3487 = vpop.f32.mrb[0].mxu0
        %v3488 = vpop.f32.mrb[0].mxu0
        %v3489 = vadd.f32 %v702, %v3488
        %v3490 = vpop.f32.mrb[0].mxu0
        %3491 = vmatprep.mubr.bf16.mxu0 0
        %3492 = vmatmul.mubr.bf16.gmra.mrb[0].mxu0 %v2191
        %v3493 = vpop.f32.mrb[0].mxu0
        %v3494 = vadd.f32 %v702, %v3493
        %v3495 = vpop.f32.mrb[0].mxu0
        %v3496 = vpop.f32.mrb[0].mxu0
        %v3497 = vadd.f32 %v702, %v3496
        %v3498 = vpop.f32.mrb[0].mxu0
        %3499 = vmatprep.mubr.bf16.mxu0 0
        %3500 = vmatmul.mubr.bf16.gmra.mrb[0].mxu0 %v2194
        %v3501 = vpop.f32.mrb[0].mxu0
        %v3502 = vadd.f32 %v702, %v3501
        %v3503 = vpop.f32.mrb[0].mxu0
        %v3504 = vpop.f32.mrb[0].mxu0
        %v3505 = vadd.f32 %v702, %v3504
        %v3506 = vpop.f32.mrb[0].mxu0
        %3507 = vmatprep.mubr.bf16.mxu0 0
        %3508 = vmatmul.mubr.bf16.gmra.mrb[0].mxu0 %v2197
        %v3509 = vpop.f32.mrb[0].mxu0
        %v3510 = vadd.f32 %v702, %v3509
        %v3511 = vpop.f32.mrb[0].mxu0
        %v3512 = vpop.f32.mrb[0].mxu0
        %v3513 = vadd.f32 %v702, %v3512
        %v3514 = vpop.f32.mrb[0].mxu0
        %3515 = vmatprep.mubr.bf16.mxu0 0
        %3516 = vmatmul.mubr.bf16.gmra.mrb[0].mxu0 %v2200
        %v3517 = vpop.f32.mrb[0].mxu0
        %v3518 = vadd.f32 %v702, %v3517
        %v3519 = vpop.f32.mrb[0].mxu0
        %v3520 = vpop.f32.mrb[0].mxu0
        %v3521 = vadd.f32 %v702, %v3520
        %v3522 = vpop.f32.mrb[0].mxu0
        %3523 = vmatprep.mubr.bf16.mxu0 0
        %3524 = vmatmul.mubr.bf16.gmra.mrb[0].mxu0 %v2203
        %v3525 = vpop.f32.mrb[0].mxu0
        %v3526 = vadd.f32 %v702, %v3525
        %v3527 = vpop.f32.mrb[0].mxu0
        %v3528 = vpop.f32.mrb[0].mxu0
        %v3529 = vadd.f32 %v702, %v3528
        %v3530 = vpop.f32.mrb[0].mxu0
        %3531 = vmatprep.mubr.bf16.mxu0 0
        %3532 = vmatmul.mubr.bf16.gmra.mrb[0].mxu0 %v2206
        %v3533 = vpop.f32.mrb[0].mxu0
        %v3534 = vadd.f32 %v702, %v3533
        %v3535 = vpop.f32.mrb[0].mxu0
        %v3536 = vpop.f32.mrb[0].mxu0
        %v3537 = vadd.f32 %v702, %v3536
        %v3538 = vpop.f32.mrb[0].mxu0
        %3539 = vmatprep.mubr.bf16.mxu0 0
        %3540 = vmatmul.mubr.bf16.gmra.mrb[0].mxu0 %v2209
        %v3541 = vpop.f32.mrb[0].mxu0
        %v3542 = vadd.f32 %v702, %v3541
        %v3543 = vpop.f32.mrb[0].mxu0
        %v3544 = vpop.f32.mrb[0].mxu0
        %v3545 = vadd.f32 %v702, %v3544
        %v3546 = vpop.f32.mrb[0].mxu0
        %3547 = vmatprep.mubr.bf16.mxu0 0
        %3548 = vmatmul.mubr.bf16.gmra.mrb[0].mxu0 %v2212
        %v3549 = vpop.f32.mrb[0].mxu0
        %v3550 = vadd.f32 %v702, %v3549
        %v3551 = vpop.f32.mrb[0].mxu0
        %v3552 = vpop.f32.mrb[0].mxu0
        %v3553 = vadd.f32 %v702, %v3552
        %v3554 = vpop.f32.mrb[0].mxu0
        %3555 = vmatprep.mubr.bf16.mxu0 0
        %3556 = vmatmul.mubr.bf16.gmra.mrb[0].mxu0 %v2215
        %v3557 = vpop.f32.mrb[0].mxu0
        %v3558 = vadd.f32 %v702, %v3557
        %v3559 = vpop.f32.mrb[0].mxu0
        %v3560 = vpop.f32.mrb[0].mxu0
        %v3561 = vadd.f32 %v702, %v3560
        %v3562 = vpop.f32.mrb[0].mxu0
        %3563 = vmatprep.mubr.bf16.mxu0 0
        %3564 = vmatmul.mubr.bf16.gmra.mrb[0].mxu0 %v2218
        %v3565 = vpop.f32.mrb[0].mxu0
        %v3566 = vadd.f32 %v702, %v3565
        %v3567 = vpop.f32.mrb[0].mxu0
        %v3568 = vpop.f32.mrb[0].mxu0
        %v3569 = vadd.f32 %v702, %v3568
        %v3570 = vpop.f32.mrb[0].mxu0
        %3571 = vmatprep.mubr.bf16.mxu0 0
        %3572 = vmatmul.mubr.bf16.gmra.mrb[0].mxu0 %v2221
        %v3573 = vpop.f32.mrb[0].mxu0
        %v3574 = vadd.f32 %v702, %v3573
        %v3575 = vpop.f32.mrb[0].mxu0
        %v3576 = vpop.f32.mrb[0].mxu0
        %v3577 = vadd.f32 %v702, %v3576
        %v3578 = vpop.f32.mrb[0].mxu0
        %3579 = vmatprep.mubr.bf16.mxu0 0
        %3580 = vmatmul.mubr.bf16.gmra.mrb[0].mxu0 %v2224
        %v3581 = vpop.f32.mrb[0].mxu0
        %v3582 = vadd.f32 %v702, %v3581
        %v3583 = vpop.f32.mrb[0].mxu0
        %v3584 = vpop.f32.mrb[0].mxu0
        %v3585 = vadd.f32 %v702, %v3584
        %v3586 = vpop.f32.mrb[0].mxu0
        %3587 = vmatprep.mubr.bf16.mxu0 0
        %3588 = vmatmul.mubr.bf16.gmra.mrb[0].mxu0 %v2227
        %v3589 = vpop.f32.mrb[0].mxu0
        %v3590 = vadd.f32 %v702, %v3589
        %v3591 = vpop.f32.mrb[0].mxu0
        %v3592 = vpop.f32.mrb[0].mxu0
        %v3593 = vadd.f32 %v702, %v3592
        %v3594 = vpop.f32.mrb[0].mxu0
        %3595 = vmatprep.mubr.bf16.mxu0 0
        %3596 = vmatmul.mubr.bf16.gmra.mrb[0].mxu0 %v2230
        %v3597 = vpop.f32.mrb[0].mxu0
        %v3598 = vadd.f32 %v702, %v3597
        %v3599 = vpop.f32.mrb[0].mxu0
        %v3600 = vpop.f32.mrb[0].mxu0
        %v3601 = vadd.f32 %v702, %v3600
        %v3602 = vpop.f32.mrb[0].mxu0
        %3603 = vmatprep.mubr.bf16.mxu0 0
        %3604 = vmatmul.mubr.bf16.gmra.mrb[0].mxu0 %v2233
        %v3605 = vpop.f32.mrb[0].mxu0
        %v3606 = vadd.f32 %v702, %v3605
        %v3607 = vpop.f32.mrb[0].mxu0
        %v3608 = vpop.f32.mrb[0].mxu0
        %v3609 = vadd.f32 %v702, %v3608
        %v3610 = vpop.f32.mrb[0].mxu0
        %3611 = vmatprep.mubr.bf16.mxu0 0
        %3612 = vmatmul.mubr.bf16.gmra.mrb[0].mxu0 %v2236
        %v3613 = vpop.f32.mrb[0].mxu0
        %v3614 = vadd.f32 %v702, %v3613
        %v3615 = vpop.f32.mrb[0].mxu0
        %v3616 = vpop.f32.mrb[0].mxu0
        %v3617 = vadd.f32 %v702, %v3616
        %v3618 = vpop.f32.mrb[0].mxu0
        %3619 = vmatprep.mubr.bf16.mxu0 0
        %3620 = vmatmul.mubr.bf16.gmra.mrb[0].mxu0 %v2239
        %v3621 = vpop.f32.mrb[0].mxu0
        %v3622 = vadd.f32 %v702, %v3621
        %v3623 = vpop.f32.mrb[0].mxu0
        %v3624 = vpop.f32.mrb[0].mxu0
        %v3625 = vadd.f32 %v702, %v3624
        %v3626 = vpop.f32.mrb[0].mxu0
        %3627 = vmatprep.mubr.bf16.mxu0 0
        %3628 = vmatmul.mubr.bf16.gmra.mrb[0].mxu0 %v2242
        %v3629 = vpop.f32.mrb[0].mxu0
        %v3630 = vadd.f32 %v702, %v3629
        %v3631 = vpop.f32.mrb[0].mxu0
        %v3632 = vpop.f32.mrb[0].mxu0
        %v3633 = vadd.f32 %v702, %v3632
        %v3634 = vpop.f32.mrb[0].mxu0
        %3635 = vmatprep.mubr.bf16.mxu0 0
        %3636 = vmatmul.mubr.bf16.gmra.mrb[0].mxu0 %v2245
        %v3637 = vpop.f32.mrb[0].mxu0
        %v3638 = vadd.f32 %v702, %v3637
        %v3639 = vpop.f32.mrb[0].mxu0
        %v3640 = vpop.f32.mrb[0].mxu0
        %v3641 = vadd.f32 %v702, %v3640
        %v3642 = vpop.f32.mrb[0].mxu0
        %3643 = vmatprep.mubr.bf16.mxu0 0
        %3644 = vmatmul.mubr.bf16.gmra.mrb[0].mxu0 %v2248
        %v3645 = vpop.f32.mrb[0].mxu0
        %v3646 = vadd.f32 %v702, %v3645
        %v3647 = vpop.f32.mrb[0].mxu0
        %v3648 = vpop.f32.mrb[0].mxu0
        %v3649 = vadd.f32 %v702, %v3648
        %v3650 = vpop.f32.mrb[0].mxu0
        %3651 = vmatprep.mubr.bf16.mxu0 0
        %3652 = vmatmul.mubr.bf16.gmra.mrb[0].mxu0 %v2251
        %v3653 = vpop.f32.mrb[0].mxu0
        %v3654 = vadd.f32 %v702, %v3653
        %v3655 = vpop.f32.mrb[0].mxu0
        %v3656 = vpop.f32.mrb[0].mxu0
        %v3657 = vadd.f32 %v702, %v3656
        %v3658 = vpop.f32.mrb[0].mxu0
        %3659 = vmatprep.mubr.bf16.mxu0 0
        %3660 = vmatmul.mubr.bf16.gmra.mrb[0].mxu0 %v2254
        %v3661 = vpop.f32.mrb[0].mxu0
        %v3662 = vadd.f32 %v702, %v3661
        %v3663 = vpop.f32.mrb[0].mxu0
        %v3664 = vpop.f32.mrb[0].mxu0
        %v3665 = vadd.f32 %v702, %v3664
        %v3666 = vpop.f32.mrb[0].mxu0
        %3667 = vmatprep.mubr.bf16.mxu0 0
        %3668 = vmatmul.mubr.bf16.gmra.mrb[0].mxu0 %v2257
        %v3669 = vpop.f32.mrb[0].mxu0
        %v3670 = vadd.f32 %v702, %v3669
        %v3671 = vpop.f32.mrb[0].mxu0
        %v3672 = vpop.f32.mrb[0].mxu0
        %v3673 = vadd.f32 %v702, %v3672
        %v3674 = vpop.f32.mrb[0].mxu0
        %3675 = vmatprep.mubr.bf16.mxu0 0
        %3676 = vmatmul.mubr.bf16.gmra.mrb[0].mxu0 %v2260
        %v3677 = vpop.f32.mrb[0].mxu0
        %v3678 = vadd.f32 %v702, %v3677
        %v3679 = vpop.f32.mrb[0].mxu0
        %v3680 = vpop.f32.mrb[0].mxu0
        %v3681 = vadd.f32 %v702, %v3680
        %v3682 = vpop.f32.mrb[0].mxu0
        %3683 = vmatprep.mubr.bf16.mxu0 0
        %3684 = vmatmul.mubr.bf16.gmra.mrb[0].mxu0 %v2263
        %v3685 = vpop.f32.mrb[0].mxu0
        %v3686 = vadd.f32 %v702, %v3685
        %v3687 = vpop.f32.mrb[0].mxu0
        %v3688 = vpop.f32.mrb[0].mxu0
        %v3689 = vadd.f32 %v702, %v3688
        %v3690 = vpop.f32.mrb[0].mxu0
        %3691 = vmatprep.mubr.bf16.mxu0 0
        %3692 = vmatmul.mubr.bf16.gmra.mrb[0].mxu0 %v2266
        %v3693 = vpop.f32.mrb[0].mxu0
        %v3694 = vadd.f32 %v702, %v3693
        %v3695 = vpop.f32.mrb[0].mxu0
        %v3696 = vpop.f32.mrb[0].mxu0
        %v3697 = vadd.f32 %v702, %v3696
        %v3698 = vpop.f32.mrb[0].mxu0
        %3699 = vmatprep.mubr.bf16.mxu0 0
        %3700 = vmatmul.mubr.bf16.gmra.mrb[0].mxu0 %v2269
        %v3701 = vpop.f32.mrb[0].mxu0
        %v3702 = vadd.f32 %v702, %v3701
        %v3703 = vpop.f32.mrb[0].mxu0
        %v3704 = vpop.f32.mrb[0].mxu0
        %v3705 = vadd.f32 %v702, %v3704
        %v3706 = vpop.f32.mrb[0].mxu0
        %3707 = vmatprep.mubr.bf16.mxu0 0
        %3708 = vmatmul.mubr.bf16.gmra.mrb[0].mxu0 %v2272
        %v3709 = vpop.f32.mrb[0].mxu0
        %v3710 = vadd.f32 %v702, %v3709
        %v3711 = vpop.f32.mrb[0].mxu0
        %v3712 = vpop.f32.mrb[0].mxu0
        %v3713 = vadd.f32 %v702, %v3712
        %v3714 = vpop.f32.mrb[0].mxu0
        %3715 = vmatprep.mubr.bf16.mxu0 0
        %3716 = vmatmul.mubr.bf16.gmra.mrb[0].mxu0 %v2275
        %v3717 = vpop.f32.mrb[0].mxu0
        %v3718 = vadd.f32 %v702, %v3717
        %v3719 = vpop.f32.mrb[0].mxu0
        %v3720 = vpop.f32.mrb[0].mxu0
        %v3721 = vadd.f32 %v702, %v3720
        %v3722 = vpop.f32.mrb[0].mxu0
        %3723 = vmatprep.mubr.bf16.mxu0 0
        %3724 = vmatmul.mubr.bf16.gmra.mrb[0].mxu0 %v2278
        %v3725 = vpop.f32.mrb[0].mxu0
        %v3726 = vadd.f32 %v702, %v3725
        %v3727 = vpop.f32.mrb[0].mxu0
        %v3728 = vpop.f32.mrb[0].mxu0
        %v3729 = vadd.f32 %v702, %v3728
        %v3730 = vpop.f32.mrb[0].mxu0
        %3731 = vmatprep.mubr.bf16.mxu0 0
        %3732 = vmatmul.mubr.bf16.gmra.mrb[0].mxu0 %v2281
        %v3733 = vpop.f32.mrb[0].mxu0
        %v3734 = vadd.f32 %v702, %v3733
        %v3735 = vpop.f32.mrb[0].mxu0
        %v3736 = vpop.f32.mrb[0].mxu0
        %v3737 = vadd.f32 %v702, %v3736
        %v3738 = vpop.f32.mrb[0].mxu0
        %3739 = vmatprep.mubr.bf16.mxu0 0
        %3740 = vmatmul.mubr.bf16.gmra.mrb[0].mxu0 %v2284
        %v3741 = vpop.f32.mrb[0].mxu0
        %v3742 = vadd.f32 %v702, %v3741
        %v3743 = vpop.f32.mrb[0].mxu0
        %v3744 = vpop.f32.mrb[0].mxu0
        %v3745 = vadd.f32 %v702, %v3744
        %v3746 = vpop.f32.mrb[0].mxu0
        %3747 = vmatprep.mubr.bf16.mxu0 0
        %3748 = vmatmul.mubr.bf16.gmra.mrb[0].mxu0 %v2287
        %v3749 = vpop.f32.mrb[0].mxu0
        %v3750 = vadd.f32 %v702, %v3749
        %v3751 = vpop.f32.mrb[0].mxu0
        %v3752 = vpop.f32.mrb[0].mxu0
        %v3753 = vadd.f32 %v702, %v3752
        %v3754 = vpop.f32.mrb[0].mxu0
        %3755 = vmatprep.mubr.bf16.mxu0 0
        %3756 = vmatmul.mubr.bf16.gmra.mrb[0].mxu0 %v2290
        %v3757 = vpop.f32.mrb[0].mxu0
        %v3758 = vadd.f32 %v702, %v3757
        %v3759 = vpop.f32.mrb[0].mxu0
        %v3760 = vpop.f32.mrb[0].mxu0
        %v3761 = vadd.f32 %v702, %v3760
        %v3762 = vpop.f32.mrb[0].mxu0
        %3763 = vmatprep.mubr.bf16.mxu0 0
        %3764 = vmatmul.mubr.bf16.gmra.mrb[0].mxu0 %v2293
        %v3765 = vpop.f32.mrb[0].mxu0
        %v3766 = vadd.f32 %v702, %v3765
        %v3767 = vpop.f32.mrb[0].mxu0
        %v3768 = vpop.f32.mrb[0].mxu0
        %v3769 = vadd.f32 %v702, %v3768
        %v3770 = vpop.f32.mrb[0].mxu0
        %3771 = vmatprep.mubr.bf16.mxu0 0
        %3772 = vmatmul.mubr.bf16.gmra.mrb[0].mxu0 %v2296
        %v3773 = vpop.f32.mrb[0].mxu0
        %v3774 = vadd.f32 %v702, %v3773
        %v3775 = vpop.f32.mrb[0].mxu0
        %v3776 = vpop.f32.mrb[0].mxu0
        %v3777 = vadd.f32 %v702, %v3776
        %v3778 = vpop.f32.mrb[0].mxu0
        %3779 = vmatprep.mubr.bf16.mxu0 0
        %3780 = vmatmul.mubr.bf16.gmra.mrb[0].mxu0 %v2299
        %v3781 = vpop.f32.mrb[0].mxu0
        %v3782 = vadd.f32 %v702, %v3781
        %v3783 = vpop.f32.mrb[0].mxu0
        %v3784 = vpop.f32.mrb[0].mxu0
        %v3785 = vadd.f32 %v702, %v3784
        %v3786 = vpop.f32.mrb[0].mxu0
        %3787 = vmatprep.mubr.bf16.mxu0 0
        %3788 = vmatmul.mubr.bf16.gmra.mrb[0].mxu0 %v2302
        %v3789 = vpop.f32.mrb[0].mxu0
        %v3790 = vadd.f32 %v702, %v3789
        %v3791 = vpop.f32.mrb[0].mxu0
        %v3792 = vpop.f32.mrb[0].mxu0
        %v3793 = vadd.f32 %v702, %v3792
        %v3794 = vpop.f32.mrb[0].mxu0
        %3795 = vmatprep.mubr.bf16.mxu0 0
        %3796 = vmatmul.mubr.bf16.gmra.mrb[0].mxu0 %v2305
        %v3797 = vpop.f32.mrb[0].mxu0
        %v3798 = vadd.f32 %v702, %v3797
        %v3799 = vpop.f32.mrb[0].mxu0
        %v3800 = vpop.f32.mrb[0].mxu0
        %v3801 = vadd.f32 %v702, %v3800
        %v3802 = vpop.f32.mrb[0].mxu0
        %3803 = vmatprep.mubr.bf16.mxu0 0
        %3804 = vmatmul.mubr.bf16.gmra.mrb[0].mxu0 %v2308
        %v3805 = vpop.f32.mrb[0].mxu0
        %v3806 = vadd.f32 %v702, %v3805
        %v3807 = vpop.f32.mrb[0].mxu0
        %v3808 = vpop.f32.mrb[0].mxu0
        %v3809 = vadd.f32 %v702, %v3808
        %v3810 = vpop.f32.mrb[0].mxu0
        %3811 = vmatprep.mubr.bf16.mxu0 0
        %3812 = vmatmul.mubr.bf16.gmra.mrb[0].mxu0 %v2311
        %v3813 = vpop.f32.mrb[0].mxu0
        %v3814 = vadd.f32 %v702, %v3813
        %v3815 = vpop.f32.mrb[0].mxu0
        %v3816 = vpop.f32.mrb[0].mxu0
        %v3817 = vadd.f32 %v702, %v3816
        %v3818 = vpop.f32.mrb[0].mxu0
        %3819 = vmatprep.mubr.bf16.mxu0 0
        %3820 = vmatmul.mubr.bf16.gmra.mrb[0].mxu0 %v2314
        %v3821 = vpop.f32.mrb[0].mxu0
        %v3822 = vadd.f32 %v702, %v3821
        %v3823 = vpop.f32.mrb[0].mxu0
        %v3824 = vpop.f32.mrb[0].mxu0
        %v3825 = vadd.f32 %v702, %v3824
        %v3826 = vpop.f32.mrb[0].mxu0
        %3827 = vmatprep.mubr.bf16.mxu0 0
        %3828 = vmatmul.mubr.bf16.gmra.mrb[0].mxu0 %v2317
        %v3829 = vpop.f32.mrb[0].mxu0
        %v3830 = vadd.f32 %v702, %v3829
        %v3831 = vpop.f32.mrb[0].mxu0
        %v3832 = vpop.f32.mrb[0].mxu0
        %v3833 = vadd.f32 %v702, %v3832
        %v3834 = vpop.f32.mrb[0].mxu0
        %3835 = vmatprep.mubr.bf16.mxu0 0
        %3836 = vmatmul.mubr.bf16.gmra.mrb[0].mxu0 %v2320
        %v3837 = vpop.f32.mrb[0].mxu0
        %v3838 = vadd.f32 %v702, %v3837
        %v3839 = vpop.f32.mrb[0].mxu0
        %v3840 = vpop.f32.mrb[0].mxu0
        %v3841 = vadd.f32 %v702, %v3840
        %v3842 = vpop.f32.mrb[0].mxu0
        %3843 = vmatprep.mubr.bf16.mxu0 0
        %3844 = vmatmul.mubr.bf16.gmra.mrb[0].mxu0 %v2323
        %v3845 = vpop.f32.mrb[0].mxu0
        %v3846 = vadd.f32 %v702, %v3845
        %v3847 = vpop.f32.mrb[0].mxu0
        %v3848 = vpop.f32.mrb[0].mxu0
        %v3849 = vadd.f32 %v702, %v3848
        %v3850 = vpop.f32.mrb[0].mxu0
        %3851 = vmatprep.mubr.bf16.mxu0 0
        %3852 = vmatmul.mubr.bf16.gmra.mrb[0].mxu0 %v2326
        %v3853 = vpop.f32.mrb[0].mxu0
        %v3854 = vadd.f32 %v702, %v3853
        %v3855 = vpop.f32.mrb[0].mxu0
        %v3856 = vpop.f32.mrb[0].mxu0
        %v3857 = vadd.f32 %v702, %v3856
        %v3858 = vpop.f32.mrb[0].mxu0
        %3859 = vmatprep.mubr.bf16.mxu0 0
        %3860 = vmatmul.mubr.bf16.gmra.mrb[0].mxu0 %v2329
        %v3861 = vpop.f32.mrb[0].mxu0
        %v3862 = vadd.f32 %v702, %v3861
        %v3863 = vpop.f32.mrb[0].mxu0
        %v3864 = vpop.f32.mrb[0].mxu0
        %v3865 = vadd.f32 %v702, %v3864
        %v3866 = vpop.f32.mrb[0].mxu0
        %3867 = vmatprep.mubr.bf16.mxu0 0
        %3868 = vmatmul.mubr.bf16.gmra.mrb[0].mxu0 %v2332
        %v3869 = vpop.f32.mrb[0].mxu0
        %v3870 = vadd.f32 %v702, %v3869
        %v3871 = vpop.f32.mrb[0].mxu0
        %v3872 = vpop.f32.mrb[0].mxu0
        %v3873 = vadd.f32 %v702, %v3872
        %v3874 = vpop.f32.mrb[0].mxu0
        %3875 = vmatprep.mubr.bf16.mxu0 0
        %3876 = vmatmul.mubr.bf16.gmra.mrb[0].mxu0 %v2335
        %v3877 = vpop.f32.mrb[0].mxu0
        %v3878 = vadd.f32 %v702, %v3877
        %v3879 = vpop.f32.mrb[0].mxu0
        %v3880 = vpop.f32.mrb[0].mxu0
        %v3881 = vadd.f32 %v702, %v3880
        %v3882 = vpop.f32.mrb[0].mxu0
        %3883 = vmatprep.mubr.bf16.mxu0 0
        %3884 = vmatmul.mubr.bf16.gmra.mrb[0].mxu0 %v2338
        %v3885 = vpop.f32.mrb[0].mxu0
        %v3886 = vadd.f32 %v702, %v3885
        %v3887 = vpop.f32.mrb[0].mxu0
        %v3888 = vpop.f32.mrb[0].mxu0
        %v3889 = vadd.f32 %v702, %v3888
        %v3890 = vpop.f32.mrb[0].mxu0
        %3891 = vmatprep.mubr.bf16.mxu0 0
        %3892 = vmatmul.mubr.bf16.gmra.mrb[0].mxu0 %v2341
        %v3893 = vpop.f32.mrb[0].mxu0
        %v3894 = vadd.f32 %v702, %v3893
        %v3895 = vpop.f32.mrb[0].mxu0
        %v3896 = vpop.f32.mrb[0].mxu0
        %v3897 = vadd.f32 %v702, %v3896
        %v3898 = vpop.f32.mrb[0].mxu0
        %3899 = vmatprep.mubr.bf16.mxu0 0
        %3900 = vmatmul.mubr.bf16.gmra.mrb[0].mxu0 %v2344
        %v3901 = vpop.f32.mrb[0].mxu0
        %v3902 = vadd.f32 %v702, %v3901
        %v3903 = vpop.f32.mrb[0].mxu0
        %v3904 = vpop.f32.mrb[0].mxu0
        %v3905 = vadd.f32 %v702, %v3904
        %v3906 = vpop.f32.mrb[0].mxu0
        %3907 = vmatprep.mubr.bf16.mxu0 0
        %3908 = vmatmul.mubr.bf16.gmra.mrb[0].mxu0 %v2347
        %v3909 = vpop.f32.mrb[0].mxu0
        %v3910 = vadd.f32 %v702, %v3909
        %v3911 = vpop.f32.mrb[0].mxu0
        %v3912 = vpop.f32.mrb[0].mxu0
        %v3913 = vadd.f32 %v702, %v3912
        %v3914 = vpop.f32.mrb[0].mxu0
        %3915 = vmatprep.mubr.bf16.mxu0 0
        %3916 = vmatmul.mubr.bf16.gmra.mrb[0].mxu0 %v2350
        %v3917 = vpop.f32.mrb[0].mxu0
        %v3918 = vadd.f32 %v702, %v3917
        %v3919 = vpop.f32.mrb[0].mxu0
        %v3920 = vpop.f32.mrb[0].mxu0
        %v3921 = vadd.f32 %v702, %v3920
        %v3922 = vpop.f32.mrb[0].mxu0
        %3923 = vmatprep.mubr.bf16.mxu0 0
        %3924 = vmatmul.mubr.bf16.gmra.mrb[0].mxu0 %v2353
        %v3925 = vpop.f32.mrb[0].mxu0
        %v3926 = vadd.f32 %v702, %v3925
        %v3927 = vpop.f32.mrb[0].mxu0
        %v3928 = vpop.f32.mrb[0].mxu0
        %v3929 = vadd.f32 %v702, %v3928
        %v3930 = vpop.f32.mrb[0].mxu0
        %3931 = vmatprep.mubr.bf16.mxu0 0
        %3932 = vmatmul.mubr.bf16.gmra.mrb[0].mxu0 %v2356
        %v3933 = vpop.f32.mrb[0].mxu0
        %v3934 = vadd.f32 %v702, %v3933
        %v3935 = vpop.f32.mrb[0].mxu0
        %v3936 = vpop.f32.mrb[0].mxu0
        %v3937 = vadd.f32 %v702, %v3936
        %v3938 = vpop.f32.mrb[0].mxu0
        %3939 = vmatprep.mubr.bf16.mxu0 0
        %3940 = vmatmul.mubr.bf16.gmra.mrb[0].mxu0 %v2359
        %v3941 = vpop.f32.mrb[0].mxu0
        %v3942 = vadd.f32 %v702, %v3941
        %v3943 = vpop.f32.mrb[0].mxu0
        %v3944 = vpop.f32.mrb[0].mxu0
        %v3945 = vadd.f32 %v702, %v3944
        %v3946 = vpop.f32.mrb[0].mxu0
        %3947 = vmatprep.mubr.bf16.mxu0 0
        %3948 = vmatmul.mubr.bf16.gmra.mrb[0].mxu0 %v2362
        %v3949 = vpop.f32.mrb[0].mxu0
        %v3950 = vadd.f32 %v702, %v3949
        %v3951 = vpop.f32.mrb[0].mxu0
        %v3952 = vpop.f32.mrb[0].mxu0
        %v3953 = vadd.f32 %v702, %v3952
        %v3954 = vpop.f32.mrb[0].mxu0
        %3955 = vmatprep.mubr.bf16.mxu0 0
        %3956 = vmatmul.mubr.bf16.gmra.mrb[0].mxu0 %v2365
        %v3957 = vpop.f32.mrb[0].mxu0
        %v3958 = vadd.f32 %v702, %v3957
        %v3959 = vpop.f32.mrb[0].mxu0
        %v3960 = vpop.f32.mrb[0].mxu0
        %v3961 = vadd.f32 %v702, %v3960
        %v3962 = vpop.f32.mrb[0].mxu0
        %3963 = vmatprep.mubr.bf16.mxu0 0
        %3964 = vmatmul.mubr.bf16.gmra.mrb[0].mxu0 %v2368
        %v3965 = vpop.f32.mrb[0].mxu0
        %v3966 = vadd.f32 %v702, %v3965
        %v3967 = vpop.f32.mrb[0].mxu0
        %v3968 = vpop.f32.mrb[0].mxu0
        %v3969 = vadd.f32 %v702, %v3968
        %v3970 = vpop.f32.mrb[0].mxu0
        %3971 = vmatprep.mubr.bf16.mxu0 0
        %3972 = vmatmul.mubr.bf16.gmra.mrb[0].mxu0 %v2371
        %v3973 = vpop.f32.mrb[0].mxu0
        %v3974 = vadd.f32 %v702, %v3973
        %v3975 = vpop.f32.mrb[0].mxu0
        %v3976 = vpop.f32.mrb[0].mxu0
        %v3977 = vadd.f32 %v702, %v3976
        %v3978 = vpop.f32.mrb[0].mxu0
        %3979 = vmatprep.mubr.bf16.mxu0 0
        %3980 = vmatmul.mubr.bf16.gmra.mrb[0].mxu0 %v2374
        %v3981 = vpop.f32.mrb[0].mxu0
        %v3982 = vadd.f32 %v702, %v3981
        %v3983 = vpop.f32.mrb[0].mxu0
        %v3984 = vpop.f32.mrb[0].mxu0
        %v3985 = vadd.f32 %v702, %v3984
        %v3986 = vpop.f32.mrb[0].mxu0
        %3987 = vmatprep.mubr.bf16.mxu0 0
        %3988 = vmatmul.mubr.bf16.gmra.mrb[0].mxu0 %v2377
        %v3989 = vpop.f32.mrb[0].mxu0
        %v3990 = vadd.f32 %v702, %v3989
        %v3991 = vpop.f32.mrb[0].mxu0
        %v3992 = vpop.f32.mrb[0].mxu0
        %v3993 = vadd.f32 %v702, %v3992
        %v3994 = vpop.f32.mrb[0].mxu0
        %3995 = vmatprep.mubr.bf16.mxu0 0
        %3996 = vmatmul.mubr.bf16.gmra.mrb[0].mxu0 %v2380
        %v3997 = vpop.f32.mrb[0].mxu0
        %v3998 = vadd.f32 %v702, %v3997
        %v3999 = vpop.f32.mrb[0].mxu0
        %v4000 = vpop.f32.mrb[0].mxu0
        %v4001 = vadd.f32 %v702, %v4000
        %v4002 = vpop.f32.mrb[0].mxu0
        %4003 = vmatprep.mubr.bf16.mxu0 0
        %4004 = vmatmul.mubr.bf16.gmra.mrb[0].mxu0 %v2383
        %v4005 = vpop.f32.mrb[0].mxu0
        %v4006 = vadd.f32 %v702, %v4005
        %v4007 = vpop.f32.mrb[0].mxu0
        %v4008 = vpop.f32.mrb[0].mxu0
        %v4009 = vadd.f32 %v702, %v4008
        %v4010 = vpop.f32.mrb[0].mxu0
        %4011 = vmatprep.mubr.bf16.mxu0 0
        %4012 = vmatmul.mubr.bf16.gmra.mrb[0].mxu0 %v2386
        %v4013 = vpop.f32.mrb[0].mxu0
        %v4014 = vadd.f32 %v702, %v4013
        %v4015 = vpop.f32.mrb[0].mxu0
        %v4016 = vpop.f32.mrb[0].mxu0
        %v4017 = vadd.f32 %v702, %v4016
        %v4018 = vpop.f32.mrb[0].mxu0
        %4019 = vmatprep.mubr.bf16.mxu0 0
        %4020 = vmatmul.mubr.bf16.gmra.mrb[0].mxu0 %v2389
        %v4021 = vpop.f32.mrb[0].mxu0
        %v4022 = vadd.f32 %v702, %v4021
        %v4023 = vpop.f32.mrb[0].mxu0
        %v4024 = vpop.f32.mrb[0].mxu0
        %v4025 = vadd.f32 %v702, %v4024
        %v4026 = vpop.f32.mrb[0].mxu0
        %4027 = vmatprep.mubr.bf16.mxu0 0
        %4028 = vmatmul.mubr.bf16.gmra.mrb[0].mxu0 %v2392
        %v4029 = vpop.f32.mrb[0].mxu0
        %v4030 = vadd.f32 %v702, %v4029
        %v4031 = vpop.f32.mrb[0].mxu0
        %v4032 = vpop.f32.mrb[0].mxu0
        %v4033 = vadd.f32 %v702, %v4032
        %v4034 = vpop.f32.mrb[0].mxu0
        %4035 = vmatprep.mubr.bf16.mxu0 0
        %4036 = vmatmul.mubr.bf16.gmra.mrb[0].mxu0 %v2395
        %v4037 = vpop.f32.mrb[0].mxu0
        %v4038 = vadd.f32 %v702, %v4037
        %v4039 = vpop.f32.mrb[0].mxu0
        %v4040 = vpop.f32.mrb[0].mxu0
        %v4041 = vadd.f32 %v702, %v4040
        %v4042 = vpop.f32.mrb[0].mxu0
        %4043 = vmatprep.mubr.bf16.mxu0 0
        %4044 = vmatmul.mubr.bf16.gmra.mrb[0].mxu0 %v2398
        %v4045 = vpop.f32.mrb[0].mxu0
        %v4046 = vadd.f32 %v702, %v4045
        %v4047 = vpop.f32.mrb[0].mxu0
        %v4048 = vpop.f32.mrb[0].mxu0
        %v4049 = vadd.f32 %v702, %v4048
        %v4050 = vpop.f32.mrb[0].mxu0
        %4051 = vmatprep.mubr.bf16.mxu0 0
        %4052 = vmatmul.mubr.bf16.gmra.mrb[0].mxu0 %v2401
        %v4053 = vpop.f32.mrb[0].mxu0
        %v4054 = vadd.f32 %v702, %v4053
        %v4055 = vpop.f32.mrb[0].mxu0
        %v4056 = vpop.f32.mrb[0].mxu0
        %v4057 = vadd.f32 %v702, %v4056
        %v4058 = vpop.f32.mrb[0].mxu0
        %4059 = vmatprep.mubr.bf16.mxu0 0
        %4060 = vmatmul.mubr.bf16.gmra.mrb[0].mxu0 %v2404
        %v4061 = vpop.f32.mrb[0].mxu0
        %v4062 = vadd.f32 %v702, %v4061
        %v4063 = vpop.f32.mrb[0].mxu0
        %v4064 = vpop.f32.mrb[0].mxu0
        %v4065 = vadd.f32 %v702, %v4064
        %v4066 = vpop.f32.mrb[0].mxu0
        %4067 = vmatprep.mubr.bf16.mxu0 0
        %4068 = vmatmul.mubr.bf16.gmra.mrb[0].mxu0 %v2407
        %v4069 = vpop.f32.mrb[0].mxu0
        %v4070 = vadd.f32 %v702, %v4069
        %v4071 = vpop.f32.mrb[0].mxu0
        %v4072 = vpop.f32.mrb[0].mxu0
        %v4073 = vadd.f32 %v702, %v4072
        %v4074 = vpop.f32.mrb[0].mxu0
        %4075 = vmatprep.mubr.bf16.mxu0 0
        %4076 = vmatmul.mubr.bf16.gmra.mrb[0].mxu0 %v2410
        %v4077 = vpop.f32.mrb[0].mxu0
        %v4078 = vadd.f32 %v702, %v4077
        %v4079 = vpop.f32.mrb[0].mxu0
        %v4080 = vpop.f32.mrb[0].mxu0
        %v4081 = vadd.f32 %v702, %v4080
        %v4082 = vpop.f32.mrb[0].mxu0
        %4083 = vmatprep.mubr.bf16.mxu0 0
        %4084 = vmatmul.mubr.bf16.gmra.mrb[0].mxu0 %v2413
        %v4085 = vpop.f32.mrb[0].mxu0
        %v4086 = vadd.f32 %v702, %v4085
        %v4087 = vpop.f32.mrb[0].mxu0
        %v4088 = vpop.f32.mrb[0].mxu0
        %v4089 = vadd.f32 %v702, %v4088
        %v4090 = vpop.f32.mrb[0].mxu0
        %4091 = vmatprep.mubr.bf16.mxu0 0
        %4092 = vmatmul.mubr.bf16.gmra.mrb[0].mxu0 %v2416
        %v4093 = vpop.f32.mrb[0].mxu0
        %v4094 = vadd.f32 %v702, %v4093
        %v4095 = vpop.f32.mrb[0].mxu0
        %v4096 = vpop.f32.mrb[0].mxu0
        %v4097 = vadd.f32 %v702, %v4096
        %v4098 = vpop.f32.mrb[0].mxu0
        %4099 = vmatprep.mubr.bf16.mxu0 0
        %4100 = vmatmul.mubr.bf16.gmra.mrb[0].mxu0 %v2419
        %v4101 = vpop.f32.mrb[0].mxu0
        %v4102 = vadd.f32 %v702, %v4101
        %v4103 = vpop.f32.mrb[0].mxu0
        %v4104 = vpop.f32.mrb[0].mxu0
        %v4105 = vadd.f32 %v702, %v4104
        %v4106 = vpop.f32.mrb[0].mxu0
        %4107 = vmatprep.mubr.bf16.mxu0 0
        %4108 = vmatmul.mubr.bf16.gmra.mrb[0].mxu0 %v2422
        %v4109 = vpop.f32.mrb[0].mxu0
        %v4110 = vadd.f32 %v702, %v4109
        %v4111 = vpop.f32.mrb[0].mxu0
        %v4112 = vpop.f32.mrb[0].mxu0
        %v4113 = vadd.f32 %v702, %v4112
        %v4114 = vpop.f32.mrb[0].mxu0
        %4115 = vmatprep.mubr.bf16.mxu0 0
        %4116 = vmatmul.mubr.bf16.gmra.mrb[0].mxu0 %v2425
        %v4117 = vpop.f32.mrb[0].mxu0
        %v4118 = vadd.f32 %v702, %v4117
        %v4119 = vpop.f32.mrb[0].mxu0
        %v4120 = vpop.f32.mrb[0].mxu0
        %v4121 = vadd.f32 %v702, %v4120
        %v4122 = vpop.f32.mrb[0].mxu0
        %4123 = vmatprep.mubr.bf16.mxu0 0
        %4124 = vmatmul.mubr.bf16.gmra.mrb[0].mxu0 %v2428
        %v4125 = vpop.f32.mrb[0].mxu0
        %v4126 = vadd.f32 %v702, %v4125
        %v4127 = vpop.f32.mrb[0].mxu0
        %v4128 = vpop.f32.mrb[0].mxu0
        %v4129 = vadd.f32 %v702, %v4128
        %v4130 = vpop.f32.mrb[0].mxu0
        %4131 = vmatprep.mubr.bf16.mxu0 0
        %4132 = vmatmul.mubr.bf16.gmra.mrb[0].mxu0 %v2431
        %v4133 = vpop.f32.mrb[0].mxu0
        %v4134 = vadd.f32 %v702, %v4133
        %v4135 = vpop.f32.mrb[0].mxu0
        %v4136 = vpop.f32.mrb[0].mxu0
        %v4137 = vadd.f32 %v702, %v4136
        %v4138 = vpop.f32.mrb[0].mxu0
        %4139 = vmatprep.mubr.bf16.mxu0 0
        %4140 = vmatmul.mubr.bf16.gmra.mrb[0].mxu0 %v2434
        %v4141 = vpop.f32.mrb[0].mxu0
        %v4142 = vadd.f32 %v702, %v4141
        %v4143 = vpop.f32.mrb[0].mxu0
        %v4144 = vpop.f32.mrb[0].mxu0
        %v4145 = vadd.f32 %v702, %v4144
        %v4146 = vpop.f32.mrb[0].mxu0
        %4147 = vmatprep.mubr.bf16.mxu0 0
        %4148 = vmatmul.mubr.bf16.gmra.mrb[0].mxu0 %v2437
        %v4149 = vpop.f32.mrb[0].mxu0
        %v4150 = vadd.f32 %v702, %v4149
        %v4151 = vpop.f32.mrb[0].mxu0
        %v4152 = vpop.f32.mrb[0].mxu0
        %v4153 = vadd.f32 %v702, %v4152
        %v4154 = vpop.f32.mrb[0].mxu0
        %4155 = vmatprep.mubr.bf16.mxu0 0
        %4156 = vmatmul.mubr.bf16.gmra.mrb[0].mxu0 %v2440
        %v4157 = vpop.f32.mrb[0].mxu0
        %v4158 = vadd.f32 %v702, %v4157
        %v4159 = vpop.f32.mrb[0].mxu0
        %v4160 = vpop.f32.mrb[0].mxu0
        %v4161 = vadd.f32 %v702, %v4160
        %v4162 = vpop.f32.mrb[0].mxu0
        %4163 = vmatprep.mubr.bf16.mxu0 0
        %4164 = vmatmul.mubr.bf16.gmra.mrb[0].mxu0 %v2443
        %v4165 = vpop.f32.mrb[0].mxu0
        %v4166 = vadd.f32 %v702, %v4165
        %v4167 = vpop.f32.mrb[0].mxu0
        %v4168 = vpop.f32.mrb[0].mxu0
        %v4169 = vadd.f32 %v702, %v4168
        %v4170 = vpop.f32.mrb[0].mxu0
        %4171 = vmatprep.mubr.bf16.mxu0 0
        %4172 = vmatmul.mubr.bf16.gmra.mrb[0].mxu0 %v2446
        %v4173 = vpop.f32.mrb[0].mxu0
        %v4174 = vadd.f32 %v702, %v4173
        %v4175 = vpop.f32.mrb[0].mxu0
        %v4176 = vpop.f32.mrb[0].mxu0
        %v4177 = vadd.f32 %v702, %v4176
        %v4178 = vpop.f32.mrb[0].mxu0
        %4179 = vmatprep.mubr.bf16.mxu0 0
        %4180 = vmatmul.mubr.bf16.gmra.mrb[0].mxu0 %v2449
        %v4181 = vpop.f32.mrb[0].mxu0
        %v4182 = vadd.f32 %v702, %v4181
        %v4183 = vpop.f32.mrb[0].mxu0
        %v4184 = vpop.f32.mrb[0].mxu0
        %v4185 = vadd.f32 %v702, %v4184
        %v4186 = vpop.f32.mrb[0].mxu0
        %4187 = vmatprep.mubr.bf16.mxu0 0
        %4188 = vmatmul.mubr.bf16.gmra.mrb[0].mxu0 %v2452
        %v4189 = vpop.f32.mrb[0].mxu0
        %v4190 = vadd.f32 %v702, %v4189
        %v4191 = vpop.f32.mrb[0].mxu0
        %v4192 = vpop.f32.mrb[0].mxu0
        %v4193 = vadd.f32 %v702, %v4192
        %v4194 = vpop.f32.mrb[0].mxu0
        %4195 = vmatprep.mubr.bf16.mxu0 0
        %4196 = vmatmul.mubr.bf16.gmra.mrb[0].mxu0 %v2455
        %v4197 = vpop.f32.mrb[0].mxu0
        %v4198 = vadd.f32 %v702, %v4197
        %v4199 = vpop.f32.mrb[0].mxu0
        %v4200 = vpop.f32.mrb[0].mxu0
        %v4201 = vadd.f32 %v702, %v4200
        %v4202 = vpop.f32.mrb[0].mxu0
        %4203 = vmatprep.mubr.bf16.mxu0 0
        %4204 = vmatmul.mubr.bf16.gmra.mrb[0].mxu0 %v2458
        %v4205 = vpop.f32.mrb[0].mxu0
        %v4206 = vadd.f32 %v702, %v4205
        %v4207 = vpop.f32.mrb[0].mxu0
        %v4208 = vpop.f32.mrb[0].mxu0
        %v4209 = vadd.f32 %v702, %v4208
        %v4210 = vpop.f32.mrb[0].mxu0
        %4211 = vmatprep.mubr.bf16.mxu0 0
        %4212 = vmatmul.mubr.bf16.gmra.mrb[0].mxu0 %v2461
        %v4213 = vpop.f32.mrb[0].mxu0
        %v4214 = vadd.f32 %v702, %v4213
        %v4215 = vpop.f32.mrb[0].mxu0
        %v4216 = vpop.f32.mrb[0].mxu0
        %v4217 = vadd.f32 %v702, %v4216
        %v4218 = vpop.f32.mrb[0].mxu0
        %4219 = vmatprep.mubr.bf16.mxu0 0
        %4220 = vmatmul.mubr.bf16.gmra.mrb[0].mxu0 %v2464
        %v4221 = vpop.f32.mrb[0].mxu0
        %v4222 = vadd.f32 %v702, %v4221
        %v4223 = vpop.f32.mrb[0].mxu0
        %v4224 = vpop.f32.mrb[0].mxu0
        %v4225 = vadd.f32 %v702, %v4224
        %v4226 = vpop.f32.mrb[0].mxu0
        %4227 = vmatprep.mubr.bf16.mxu0 0
        %4228 = vmatmul.mubr.bf16.gmra.mrb[0].mxu0 %v2467
        %v4229 = vpop.f32.mrb[0].mxu0
        %v4230 = vadd.f32 %v702, %v4229
        %v4231 = vpop.f32.mrb[0].mxu0
        %v4232 = vpop.f32.mrb[0].mxu0
        %v4233 = vadd.f32 %v702, %v4232
        %v4234 = vpop.f32.mrb[0].mxu0
        %4235 = vmatprep.mubr.bf16.mxu0 0
        %4236 = vmatmul.mubr.bf16.gmra.mrb[0].mxu0 %v2470
        %v4237 = vpop.f32.mrb[0].mxu0
        %v4238 = vadd.f32 %v702, %v4237
        %v4239 = vpop.f32.mrb[0].mxu0
        %v4240 = vpop.f32.mrb[0].mxu0
        %v4241 = vadd.f32 %v702, %v4240
        %v4242 = vpop.f32.mrb[0].mxu0
        %4243 = vmatprep.mubr.bf16.mxu0 0
        %4244 = vmatmul.mubr.bf16.gmra.mrb[0].mxu0 %v2473
        %v4245 = vpop.f32.mrb[0].mxu0
        %v4246 = vadd.f32 %v702, %v4245
        %v4247 = vpop.f32.mrb[0].mxu0
        %v4248 = vpop.f32.mrb[0].mxu0
        %v4249 = vadd.f32 %v702, %v4248
        %v4250 = vpop.f32.mrb[0].mxu0
        %4251 = vmatprep.mubr.bf16.mxu0 0
        %4252 = vmatmul.mubr.bf16.gmra.mrb[0].mxu0 %v2476
        %v4253 = vpop.f32.mrb[0].mxu0
        %v4254 = vadd.f32 %v702, %v4253
        %v4255 = vpop.f32.mrb[0].mxu0
        %v4256 = vpop.f32.mrb[0].mxu0
        %v4257 = vadd.f32 %v702, %v4256
        %v4258 = vpop.f32.mrb[0].mxu0
        %4259 = vmatprep.mubr.bf16.mxu0 0
        %4260 = vmatmul.mubr.bf16.gmra.mrb[0].mxu0 %v2479
        %v4261 = vpop.f32.mrb[0].mxu0
        %v4262 = vadd.f32 %v702, %v4261
        %v4263 = vpop.f32.mrb[0].mxu0
        %v4264 = vpop.f32.mrb[0].mxu0
        %v4265 = vadd.f32 %v702, %v4264
        %v4266 = vpop.f32.mrb[0].mxu0
        %4267 = vmatprep.mubr.bf16.mxu0 0
        %4268 = vmatmul.mubr.bf16.gmra.mrb[0].mxu0 %v2482
        %v4269 = vpop.f32.mrb[0].mxu0
        %v4270 = vadd.f32 %v702, %v4269
        %v4271 = vpop.f32.mrb[0].mxu0
        %v4272 = vpop.f32.mrb[0].mxu0
        %v4273 = vadd.f32 %v702, %v4272
        %v4274 = vpop.f32.mrb[0].mxu0
        %4275 = vmatprep.mubr.bf16.mxu0 0
        %4276 = vmatmul.mubr.bf16.gmra.mrb[0].mxu0 %v2485
        %v4277 = vpop.f32.mrb[0].mxu0
        %v4278 = vadd.f32 %v702, %v4277
        %v4279 = vpop.f32.mrb[0].mxu0
        %v4280 = vpop.f32.mrb[0].mxu0
        %v4281 = vadd.f32 %v702, %v4280
        %v4282 = vpop.f32.mrb[0].mxu0
        %4283 = vmatprep.mubr.bf16.mxu0 0
        %4284 = vmatmul.mubr.bf16.gmra.mrb[0].mxu0 %v2488
        %v4285 = vpop.f32.mrb[0].mxu0
        %v4286 = vadd.f32 %v702, %v4285
        %v4287 = vpop.f32.mrb[0].mxu0
        %v4288 = vpop.f32.mrb[0].mxu0
        %v4289 = vadd.f32 %v702, %v4288
        %v4290 = vpop.f32.mrb[0].mxu0
        %4291 = vmatprep.mubr.bf16.mxu0 0
        %4292 = vmatmul.mubr.bf16.gmra.mrb[0].mxu0 %v2491
        %v4293 = vpop.f32.mrb[0].mxu0
        %v4294 = vadd.f32 %v702, %v4293
        %v4295 = vpop.f32.mrb[0].mxu0
        %v4296 = vpop.f32.mrb[0].mxu0
        %v4297 = vadd.f32 %v702, %v4296
        %v4298 = vpop.f32.mrb[0].mxu0
        %4299 = vmatprep.mubr.bf16.mxu0 0
        %4300 = vmatmul.mubr.bf16.gmra.mrb[0].mxu0 %v2494
        %v4301 = vpop.f32.mrb[0].mxu0
        %v4302 = vadd.f32 %v702, %v4301
        %v4303 = vpop.f32.mrb[0].mxu0
        %v4304 = vpop.f32.mrb[0].mxu0
        %v4305 = vadd.f32 %v702, %v4304
        %v4306 = vpop.f32.mrb[0].mxu0
        %4307 = vmatprep.mubr.bf16.mxu0 0
        %4308 = vmatmul.mubr.bf16.gmra.mrb[0].mxu0 %v2497
        %v4309 = vpop.f32.mrb[0].mxu0
        %v4310 = vadd.f32 %v702, %v4309
        %v4311 = vpop.f32.mrb[0].mxu0
        %v4312 = vpop.f32.mrb[0].mxu0
        %v4313 = vadd.f32 %v702, %v4312
        %v4314 = vpop.f32.mrb[0].mxu0
        %4315 = vmatprep.mubr.bf16.mxu0 0
        %4316 = vmatmul.mubr.bf16.gmra.mrb[0].mxu0 %v2500
        %v4317 = vpop.f32.mrb[0].mxu0
        %v4318 = vadd.f32 %v702, %v4317
        %v4319 = vpop.f32.mrb[0].mxu0
        %v4320 = vpop.f32.mrb[0].mxu0
        %v4321 = vadd.f32 %v702, %v4320
        %v4322 = vpop.f32.mrb[0].mxu0
        %4323 = vmatprep.mubr.bf16.mxu0 0
        %4324 = vmatmul.mubr.bf16.gmra.mrb[0].mxu0 %v2503
        %v4325 = vpop.f32.mrb[0].mxu0
        %v4326 = vadd.f32 %v702, %v4325
        %v4327 = vpop.f32.mrb[0].mxu0
        %v4328 = vpop.f32.mrb[0].mxu0
        %v4329 = vadd.f32 %v702, %v4328
        %v4330 = vpop.f32.mrb[0].mxu0
        %4331 = vmatprep.mubr.bf16.mxu0 0
        %4332 = vmatmul.mubr.bf16.gmra.mrb[0].mxu0 %v2506
        %v4333 = vpop.f32.mrb[0].mxu0
        %v4334 = vadd.f32 %v702, %v4333
        %v4335 = vpop.f32.mrb[0].mxu0
        %v4336 = vpop.f32.mrb[0].mxu0
        %v4337 = vadd.f32 %v702, %v4336
        %v4338 = vpop.f32.mrb[0].mxu0
        %4339 = vdwg.mxu0
        %v4340 = vmax.f32 %v2550, 0.0
        %v4341 = vmax.f32 %v2553, 0.0
        %v4342 = vmax.f32 %v2558, 0.0
        %v4343 = vmax.f32 %v2561, 0.0
        %v4344 = vmax.f32 %v2566, 0.0
        %v4345 = vmax.f32 %v2569, 0.0
        %v4346 = vmax.f32 %v2574, 0.0
        %v4347 = vmax.f32 %v2577, 0.0
        %v4348 = vmax.f32 %v2582, 0.0
        %v4349 = vmax.f32 %v2585, 0.0
        %v4350 = vmax.f32 %v2590, 0.0
        %v4351 = vmax.f32 %v2593, 0.0
        %v4352 = vmax.f32 %v2598, 0.0
        %v4353 = vmax.f32 %v2601, 0.0
        %v4354 = vmax.f32 %v2606, 0.0
        %v4355 = vmax.f32 %v2609, 0.0
        %v4356 = vmax.f32 %v2614, 0.0
        %v4357 = vmax.f32 %v2617, 0.0
        %v4358 = vmax.f32 %v2622, 0.0
        %v4359 = vmax.f32 %v2625, 0.0
        %v4360 = vmax.f32 %v2630, 0.0
        %v4361 = vmax.f32 %v2633, 0.0
        %v4362 = vmax.f32 %v2638, 0.0
        %v4363 = vmax.f32 %v2641, 0.0
        %v4364 = vmax.f32 %v2646, 0.0
        %v4365 = vmax.f32 %v2649, 0.0
        %v4366 = vmax.f32 %v2654, 0.0
        %v4367 = vmax.f32 %v2657, 0.0
        %v4368 = vmax.f32 %v2662, 0.0
        %v4369 = vmax.f32 %v2665, 0.0
        %v4370 = vmax.f32 %v2670, 0.0
        %v4371 = vmax.f32 %v2673, 0.0
        %v4372 = vmax.f32 %v2678, 0.0
        %v4373 = vmax.f32 %v2681, 0.0
        %v4374 = vmax.f32 %v2686, 0.0
        %v4375 = vmax.f32 %v2689, 0.0
        %v4376 = vmax.f32 %v2694, 0.0
        %v4377 = vmax.f32 %v2697, 0.0
        %v4378 = vmax.f32 %v2702, 0.0
        %v4379 = vmax.f32 %v2705, 0.0
        %v4380 = vmax.f32 %v2710, 0.0
        %v4381 = vmax.f32 %v2713, 0.0
        %v4382 = vmax.f32 %v2718, 0.0
        %v4383 = vmax.f32 %v2721, 0.0
        %v4384 = vmax.f32 %v2726, 0.0
        %v4385 = vmax.f32 %v2729, 0.0
        %v4386 = vmax.f32 %v2734, 0.0
        %v4387 = vmax.f32 %v2737, 0.0
        %v4388 = vmax.f32 %v2742, 0.0
        %v4389 = vmax.f32 %v2745, 0.0
        %v4390 = vmax.f32 %v2750, 0.0
        %v4391 = vmax.f32 %v2753, 0.0
        %v4392 = vmax.f32 %v2758, 0.0
        %v4393 = vmax.f32 %v2761, 0.0
        %v4394 = vmax.f32 %v2766, 0.0
        %v4395 = vmax.f32 %v2769, 0.0
        %v4396 = vmax.f32 %v2774, 0.0
        %v4397 = vmax.f32 %v2777, 0.0
        %v4398 = vmax.f32 %v2782, 0.0
        %v4399 = vmax.f32 %v2785, 0.0
        %v4400 = vmax.f32 %v2790, 0.0
        %v4401 = vmax.f32 %v2793, 0.0
        %v4402 = vmax.f32 %v2798, 0.0
        %v4403 = vmax.f32 %v2801, 0.0
        %v4404 = vmax.f32 %v2806, 0.0
        %v4405 = vmax.f32 %v2809, 0.0
        %v4406 = vmax.f32 %v2814, 0.0
        %v4407 = vmax.f32 %v2817, 0.0
        %v4408 = vmax.f32 %v2822, 0.0
        %v4409 = vmax.f32 %v2825, 0.0
        %v4410 = vmax.f32 %v2830, 0.0
        %v4411 = vmax.f32 %v2833, 0.0
        %v4412 = vmax.f32 %v2838, 0.0
        %v4413 = vmax.f32 %v2841, 0.0
        %v4414 = vmax.f32 %v2846, 0.0
        %v4415 = vmax.f32 %v2849, 0.0
        %v4416 = vmax.f32 %v2854, 0.0
        %v4417 = vmax.f32 %v2857, 0.0
        %v4418 = vmax.f32 %v2862, 0.0
        %v4419 = vmax.f32 %v2865, 0.0
        %v4420 = vmax.f32 %v2870, 0.0
        %v4421 = vmax.f32 %v2873, 0.0
        %v4422 = vmax.f32 %v2878, 0.0
        %v4423 = vmax.f32 %v2881, 0.0
        %v4424 = vmax.f32 %v2886, 0.0
        %v4425 = vmax.f32 %v2889, 0.0
        %v4426 = vmax.f32 %v2894, 0.0
        %v4427 = vmax.f32 %v2897, 0.0
        %v4428 = vmax.f32 %v2902, 0.0
        %v4429 = vmax.f32 %v2905, 0.0
        %v4430 = vmax.f32 %v2910, 0.0
        %v4431 = vmax.f32 %v2913, 0.0
        %v4432 = vmax.f32 %v2918, 0.0
        %v4433 = vmax.f32 %v2921, 0.0
        %v4434 = vmax.f32 %v2926, 0.0
        %v4435 = vmax.f32 %v2929, 0.0
        %v4436 = vmax.f32 %v2934, 0.0
        %v4437 = vmax.f32 %v2937, 0.0
        %v4438 = vmax.f32 %v2942, 0.0
        %v4439 = vmax.f32 %v2945, 0.0
        %v4440 = vmax.f32 %v2950, 0.0
        %v4441 = vmax.f32 %v2953, 0.0
        %v4442 = vmax.f32 %v2958, 0.0
        %v4443 = vmax.f32 %v2961, 0.0
        %v4444 = vmax.f32 %v2966, 0.0
        %v4445 = vmax.f32 %v2969, 0.0
        %v4446 = vmax.f32 %v2974, 0.0
        %v4447 = vmax.f32 %v2977, 0.0
        %v4448 = vmax.f32 %v2982, 0.0
        %v4449 = vmax.f32 %v2985, 0.0
        %v4450 = vmax.f32 %v2990, 0.0
        %v4451 = vmax.f32 %v2993, 0.0
        %v4452 = vmax.f32 %v2998, 0.0
        %v4453 = vmax.f32 %v3001, 0.0
        %v4454 = vmax.f32 %v3006, 0.0
        %v4455 = vmax.f32 %v3009, 0.0
        %v4456 = vmax.f32 %v3014, 0.0
        %v4457 = vmax.f32 %v3017, 0.0
        %v4458 = vmax.f32 %v3022, 0.0
        %v4459 = vmax.f32 %v3025, 0.0
        %v4460 = vmax.f32 %v3030, 0.0
        %v4461 = vmax.f32 %v3033, 0.0
        %v4462 = vmax.f32 %v3038, 0.0
        %v4463 = vmax.f32 %v3041, 0.0
        %v4464 = vmax.f32 %v3046, 0.0
        %v4465 = vmax.f32 %v3049, 0.0
        %v4466 = vmax.f32 %v3054, 0.0
        %v4467 = vmax.f32 %v3057, 0.0
        %v4468 = vmax.f32 %v3062, 0.0
        %v4469 = vmax.f32 %v3065, 0.0
        %v4470 = vmax.f32 %v3070, 0.0
        %v4471 = vmax.f32 %v3073, 0.0
        %v4472 = vmax.f32 %v3078, 0.0
        %v4473 = vmax.f32 %v3081, 0.0
        %v4474 = vmax.f32 %v3086, 0.0
        %v4475 = vmax.f32 %v3089, 0.0
        %v4476 = vmax.f32 %v3094, 0.0
        %v4477 = vmax.f32 %v3097, 0.0
        %v4478 = vmax.f32 %v3102, 0.0
        %v4479 = vmax.f32 %v3105, 0.0
        %v4480 = vmax.f32 %v3110, 0.0
        %v4481 = vmax.f32 %v3113, 0.0
        %v4482 = vmax.f32 %v3118, 0.0
        %v4483 = vmax.f32 %v3121, 0.0
        %v4484 = vmax.f32 %v3126, 0.0
        %v4485 = vmax.f32 %v3129, 0.0
        %v4486 = vmax.f32 %v3134, 0.0
        %v4487 = vmax.f32 %v3137, 0.0
        %v4488 = vmax.f32 %v3142, 0.0
        %v4489 = vmax.f32 %v3145, 0.0
        %v4490 = vmax.f32 %v3150, 0.0
        %v4491 = vmax.f32 %v3153, 0.0
        %v4492 = vmax.f32 %v3158, 0.0
        %v4493 = vmax.f32 %v3161, 0.0
        %v4494 = vmax.f32 %v3166, 0.0
        %v4495 = vmax.f32 %v3169, 0.0
        %v4496 = vmax.f32 %v3174, 0.0
        %v4497 = vmax.f32 %v3177, 0.0
        %v4498 = vmax.f32 %v3182, 0.0
        %v4499 = vmax.f32 %v3185, 0.0
        %v4500 = vmax.f32 %v3190, 0.0
        %v4501 = vmax.f32 %v3193, 0.0
        %v4502 = vmax.f32 %v3198, 0.0
        %v4503 = vmax.f32 %v3201, 0.0
        %v4504 = vmax.f32 %v3206, 0.0
        %v4505 = vmax.f32 %v3209, 0.0
        %v4506 = vmax.f32 %v3214, 0.0
        %v4507 = vmax.f32 %v3217, 0.0
        %v4508 = vmax.f32 %v3222, 0.0
        %v4509 = vmax.f32 %v3225, 0.0
        %v4510 = vmax.f32 %v3230, 0.0
        %v4511 = vmax.f32 %v3233, 0.0
        %v4512 = vmax.f32 %v3238, 0.0
        %v4513 = vmax.f32 %v3241, 0.0
        %v4514 = vmax.f32 %v3246, 0.0
        %v4515 = vmax.f32 %v3249, 0.0
        %v4516 = vmax.f32 %v3254, 0.0
        %v4517 = vmax.f32 %v3257, 0.0
        %v4518 = vmax.f32 %v3262, 0.0
        %v4519 = vmax.f32 %v3265, 0.0
        %v4520 = vmax.f32 %v3270, 0.0
        %v4521 = vmax.f32 %v3273, 0.0
        %v4522 = vmax.f32 %v3278, 0.0
        %v4523 = vmax.f32 %v3281, 0.0
        %v4524 = vmax.f32 %v3286, 0.0
        %v4525 = vmax.f32 %v3289, 0.0
        %v4526 = vmax.f32 %v3294, 0.0
        %v4527 = vmax.f32 %v3297, 0.0
        %v4528 = vmax.f32 %v3302, 0.0
        %v4529 = vmax.f32 %v3305, 0.0
        %v4530 = vmax.f32 %v3310, 0.0
        %v4531 = vmax.f32 %v3313, 0.0
        %v4532 = vmax.f32 %v3318, 0.0
        %v4533 = vmax.f32 %v3321, 0.0
        %v4534 = vmax.f32 %v3326, 0.0
        %v4535 = vmax.f32 %v3329, 0.0
        %v4536 = vmax.f32 %v3334, 0.0
        %v4537 = vmax.f32 %v3337, 0.0
        %v4538 = vmax.f32 %v3342, 0.0
        %v4539 = vmax.f32 %v3345, 0.0
        %v4540 = vmax.f32 %v3350, 0.0
        %v4541 = vmax.f32 %v3353, 0.0
        %v4542 = vmax.f32 %v3358, 0.0
        %v4543 = vmax.f32 %v3361, 0.0
        %v4544 = vmax.f32 %v3366, 0.0
        %v4545 = vmax.f32 %v3369, 0.0
        %v4546 = vmax.f32 %v3374, 0.0
        %v4547 = vmax.f32 %v3377, 0.0
        %v4548 = vmax.f32 %v3382, 0.0
        %v4549 = vmax.f32 %v3385, 0.0
        %v4550 = vmax.f32 %v3390, 0.0
        %v4551 = vmax.f32 %v3393, 0.0
        %v4552 = vmax.f32 %v3398, 0.0
        %v4553 = vmax.f32 %v3401, 0.0
        %v4554 = vmax.f32 %v3406, 0.0
        %v4555 = vmax.f32 %v3409, 0.0
        %v4556 = vmax.f32 %v3414, 0.0
        %v4557 = vmax.f32 %v3417, 0.0
        %v4558 = vmax.f32 %v3422, 0.0
        %v4559 = vmax.f32 %v3425, 0.0
        %v4560 = vmax.f32 %v3430, 0.0
        %v4561 = vmax.f32 %v3433, 0.0
        %v4562 = vmax.f32 %v3438, 0.0
        %v4563 = vmax.f32 %v3441, 0.0
        %v4564 = vmax.f32 %v3446, 0.0
        %v4565 = vmax.f32 %v3449, 0.0
        %v4566 = vmax.f32 %v3454, 0.0
        %v4567 = vmax.f32 %v3457, 0.0
        %v4568 = vmax.f32 %v3462, 0.0
        %v4569 = vmax.f32 %v3465, 0.0
        %v4570 = vmax.f32 %v3470, 0.0
        %v4571 = vmax.f32 %v3473, 0.0
        %v4572 = vmax.f32 %v3478, 0.0
        %v4573 = vmax.f32 %v3481, 0.0
        %v4574 = vmax.f32 %v3486, 0.0
        %v4575 = vmax.f32 %v3489, 0.0
        %v4576 = vmax.f32 %v3494, 0.0
        %v4577 = vmax.f32 %v3497, 0.0
        %v4578 = vmax.f32 %v3502, 0.0
        %v4579 = vmax.f32 %v3505, 0.0
        %v4580 = vmax.f32 %v3510, 0.0
        %v4581 = vmax.f32 %v3513, 0.0
        %v4582 = vmax.f32 %v3518, 0.0
        %v4583 = vmax.f32 %v3521, 0.0
        %v4584 = vmax.f32 %v3526, 0.0
        %v4585 = vmax.f32 %v3529, 0.0
        %v4586 = vmax.f32 %v3534, 0.0
        %v4587 = vmax.f32 %v3537, 0.0
        %v4588 = vmax.f32 %v3542, 0.0
        %v4589 = vmax.f32 %v3545, 0.0
        %v4590 = vmax.f32 %v3550, 0.0
        %v4591 = vmax.f32 %v3553, 0.0
        %v4592 = vmax.f32 %v3558, 0.0
        %v4593 = vmax.f32 %v3561, 0.0
        %v4594 = vmax.f32 %v3566, 0.0
        %v4595 = vmax.f32 %v3569, 0.0
        %v4596 = vmax.f32 %v3574, 0.0
        %v4597 = vmax.f32 %v3577, 0.0
        %v4598 = vmax.f32 %v3582, 0.0
        %v4599 = vmax.f32 %v3585, 0.0
        %v4600 = vmax.f32 %v3590, 0.0
        %v4601 = vmax.f32 %v3593, 0.0
        %v4602 = vmax.f32 %v3598, 0.0
        %v4603 = vmax.f32 %v3601, 0.0
        %v4604 = vmax.f32 %v3606, 0.0
        %v4605 = vmax.f32 %v3609, 0.0
        %v4606 = vmax.f32 %v3614, 0.0
        %v4607 = vmax.f32 %v3617, 0.0
        %v4608 = vmax.f32 %v3622, 0.0
        %v4609 = vmax.f32 %v3625, 0.0
        %v4610 = vmax.f32 %v3630, 0.0
        %v4611 = vmax.f32 %v3633, 0.0
        %v4612 = vmax.f32 %v3638, 0.0
        %v4613 = vmax.f32 %v3641, 0.0
        %v4614 = vmax.f32 %v3646, 0.0
        %v4615 = vmax.f32 %v3649, 0.0
        %v4616 = vmax.f32 %v3654, 0.0
        %v4617 = vmax.f32 %v3657, 0.0
        %v4618 = vmax.f32 %v3662, 0.0
        %v4619 = vmax.f32 %v3665, 0.0
        %v4620 = vmax.f32 %v3670, 0.0
        %v4621 = vmax.f32 %v3673, 0.0
        %v4622 = vmax.f32 %v3678, 0.0
        %v4623 = vmax.f32 %v3681, 0.0
        %v4624 = vmax.f32 %v3686, 0.0
        %v4625 = vmax.f32 %v3689, 0.0
        %v4626 = vmax.f32 %v3694, 0.0
        %v4627 = vmax.f32 %v3697, 0.0
        %v4628 = vmax.f32 %v3702, 0.0
        %v4629 = vmax.f32 %v3705, 0.0
        %v4630 = vmax.f32 %v3710, 0.0
        %v4631 = vmax.f32 %v3713, 0.0
        %v4632 = vmax.f32 %v3718, 0.0
        %v4633 = vmax.f32 %v3721, 0.0
        %v4634 = vmax.f32 %v3726, 0.0
        %v4635 = vmax.f32 %v3729, 0.0
        %v4636 = vmax.f32 %v3734, 0.0
        %v4637 = vmax.f32 %v3737, 0.0
        %v4638 = vmax.f32 %v3742, 0.0
        %v4639 = vmax.f32 %v3745, 0.0
        %v4640 = vmax.f32 %v3750, 0.0
        %v4641 = vmax.f32 %v3753, 0.0
        %v4642 = vmax.f32 %v3758, 0.0
        %v4643 = vmax.f32 %v3761, 0.0
        %v4644 = vmax.f32 %v3766, 0.0
        %v4645 = vmax.f32 %v3769, 0.0
        %v4646 = vmax.f32 %v3774, 0.0
        %v4647 = vmax.f32 %v3777, 0.0
        %v4648 = vmax.f32 %v3782, 0.0
        %v4649 = vmax.f32 %v3785, 0.0
        %v4650 = vmax.f32 %v3790, 0.0
        %v4651 = vmax.f32 %v3793, 0.0
        %v4652 = vmax.f32 %v3798, 0.0
        %v4653 = vmax.f32 %v3801, 0.0
        %v4654 = vmax.f32 %v3806, 0.0
        %v4655 = vmax.f32 %v3809, 0.0
        %v4656 = vmax.f32 %v3814, 0.0
        %v4657 = vmax.f32 %v3817, 0.0
        %v4658 = vmax.f32 %v3822, 0.0
        %v4659 = vmax.f32 %v3825, 0.0
        %v4660 = vmax.f32 %v3830, 0.0
        %v4661 = vmax.f32 %v3833, 0.0
        %v4662 = vmax.f32 %v3838, 0.0
        %v4663 = vmax.f32 %v3841, 0.0
        %v4664 = vmax.f32 %v3846, 0.0
        %v4665 = vmax.f32 %v3849, 0.0
        %v4666 = vmax.f32 %v3854, 0.0
        %v4667 = vmax.f32 %v3857, 0.0
        %v4668 = vmax.f32 %v3862, 0.0
        %v4669 = vmax.f32 %v3865, 0.0
        %v4670 = vmax.f32 %v3870, 0.0
        %v4671 = vmax.f32 %v3873, 0.0
        %v4672 = vmax.f32 %v3878, 0.0
        %v4673 = vmax.f32 %v3881, 0.0
        %v4674 = vmax.f32 %v3886, 0.0
        %v4675 = vmax.f32 %v3889, 0.0
        %v4676 = vmax.f32 %v3894, 0.0
        %v4677 = vmax.f32 %v3897, 0.0
        %v4678 = vmax.f32 %v3902, 0.0
        %v4679 = vmax.f32 %v3905, 0.0
        %v4680 = vmax.f32 %v3910, 0.0
        %v4681 = vmax.f32 %v3913, 0.0
        %v4682 = vmax.f32 %v3918, 0.0
        %v4683 = vmax.f32 %v3921, 0.0
        %v4684 = vmax.f32 %v3926, 0.0
        %v4685 = vmax.f32 %v3929, 0.0
        %v4686 = vmax.f32 %v3934, 0.0
        %v4687 = vmax.f32 %v3937, 0.0
        %v4688 = vmax.f32 %v3942, 0.0
        %v4689 = vmax.f32 %v3945, 0.0
        %v4690 = vmax.f32 %v3950, 0.0
        %v4691 = vmax.f32 %v3953, 0.0
        %v4692 = vmax.f32 %v3958, 0.0
        %v4693 = vmax.f32 %v3961, 0.0
        %v4694 = vmax.f32 %v3966, 0.0
        %v4695 = vmax.f32 %v3969, 0.0
        %v4696 = vmax.f32 %v3974, 0.0
        %v4697 = vmax.f32 %v3977, 0.0
        %v4698 = vmax.f32 %v3982, 0.0
        %v4699 = vmax.f32 %v3985, 0.0
        %v4700 = vmax.f32 %v3990, 0.0
        %v4701 = vmax.f32 %v3993, 0.0
        %v4702 = vmax.f32 %v3998, 0.0
        %v4703 = vmax.f32 %v4001, 0.0
        %v4704 = vmax.f32 %v4006, 0.0
        %v4705 = vmax.f32 %v4009, 0.0
        %v4706 = vmax.f32 %v4014, 0.0
        %v4707 = vmax.f32 %v4017, 0.0
        %v4708 = vmax.f32 %v4022, 0.0
        %v4709 = vmax.f32 %v4025, 0.0
        %v4710 = vmax.f32 %v4030, 0.0
        %v4711 = vmax.f32 %v4033, 0.0
        %v4712 = vmax.f32 %v4038, 0.0
        %v4713 = vmax.f32 %v4041, 0.0
        %v4714 = vmax.f32 %v4046, 0.0
        %v4715 = vmax.f32 %v4049, 0.0
        %v4716 = vmax.f32 %v4054, 0.0
        %v4717 = vmax.f32 %v4057, 0.0
        %v4718 = vmax.f32 %v4062, 0.0
        %v4719 = vmax.f32 %v4065, 0.0
        %v4720 = vmax.f32 %v4070, 0.0
        %v4721 = vmax.f32 %v4073, 0.0
        %v4722 = vmax.f32 %v4078, 0.0
        %v4723 = vmax.f32 %v4081, 0.0
        %v4724 = vmax.f32 %v4086, 0.0
        %v4725 = vmax.f32 %v4089, 0.0
        %v4726 = vmax.f32 %v4094, 0.0
        %v4727 = vmax.f32 %v4097, 0.0
        %v4728 = vmax.f32 %v4102, 0.0
        %v4729 = vmax.f32 %v4105, 0.0
        %v4730 = vmax.f32 %v4110, 0.0
        %v4731 = vmax.f32 %v4113, 0.0
        %v4732 = vmax.f32 %v4118, 0.0
        %v4733 = vmax.f32 %v4121, 0.0
        %v4734 = vmax.f32 %v4126, 0.0
        %v4735 = vmax.f32 %v4129, 0.0
        %v4736 = vmax.f32 %v4134, 0.0
        %v4737 = vmax.f32 %v4137, 0.0
        %v4738 = vmax.f32 %v4142, 0.0
        %v4739 = vmax.f32 %v4145, 0.0
        %v4740 = vmax.f32 %v4150, 0.0
        %v4741 = vmax.f32 %v4153, 0.0
        %v4742 = vmax.f32 %v4158, 0.0
        %v4743 = vmax.f32 %v4161, 0.0
        %v4744 = vmax.f32 %v4166, 0.0
        %v4745 = vmax.f32 %v4169, 0.0
        %v4746 = vmax.f32 %v4174, 0.0
        %v4747 = vmax.f32 %v4177, 0.0
        %v4748 = vmax.f32 %v4182, 0.0
        %v4749 = vmax.f32 %v4185, 0.0
        %v4750 = vmax.f32 %v4190, 0.0
        %v4751 = vmax.f32 %v4193, 0.0
        %v4752 = vmax.f32 %v4198, 0.0
        %v4753 = vmax.f32 %v4201, 0.0
        %v4754 = vmax.f32 %v4206, 0.0
        %v4755 = vmax.f32 %v4209, 0.0
        %v4756 = vmax.f32 %v4214, 0.0
        %v4757 = vmax.f32 %v4217, 0.0
        %v4758 = vmax.f32 %v4222, 0.0
        %v4759 = vmax.f32 %v4225, 0.0
        %v4760 = vmax.f32 %v4230, 0.0
        %v4761 = vmax.f32 %v4233, 0.0
        %v4762 = vmax.f32 %v4238, 0.0
        %v4763 = vmax.f32 %v4241, 0.0
        %v4764 = vmax.f32 %v4246, 0.0
        %v4765 = vmax.f32 %v4249, 0.0
        %v4766 = vmax.f32 %v4254, 0.0
        %v4767 = vmax.f32 %v4257, 0.0
        %v4768 = vmax.f32 %v4262, 0.0
        %v4769 = vmax.f32 %v4265, 0.0
        %v4770 = vmax.f32 %v4270, 0.0
        %v4771 = vmax.f32 %v4273, 0.0
        %v4772 = vmax.f32 %v4278, 0.0
        %v4773 = vmax.f32 %v4281, 0.0
        %v4774 = vmax.f32 %v4286, 0.0
        %v4775 = vmax.f32 %v4289, 0.0
        %v4776 = vmax.f32 %v4294, 0.0
        %v4777 = vmax.f32 %v4297, 0.0
        %v4778 = vmax.f32 %v4302, 0.0
        %v4779 = vmax.f32 %v4305, 0.0
        %v4780 = vmax.f32 %v4310, 0.0
        %v4781 = vmax.f32 %v4313, 0.0
        %v4782 = vmax.f32 %v4318, 0.0
        %v4783 = vmax.f32 %v4321, 0.0
        %v4784 = vmax.f32 %v4326, 0.0
        %v4785 = vmax.f32 %v4329, 0.0
        %v4786 = vmax.f32 %v4334, 0.0
        %v4787 = vmax.f32 %v4337, 0.0
        %v4788 = vpack.c.bf16 %v4341, %v4340
        %v4789 = vpack.c.bf16 %v4343, %v4342
        %v4790 = vpack.c.bf16 %v4345, %v4344
        %v4791 = vpack.c.bf16 %v4347, %v4346
        %v4792 = vpack.c.bf16 %v4349, %v4348
        %v4793 = vpack.c.bf16 %v4351, %v4350
        %v4794 = vpack.c.bf16 %v4353, %v4352
        %v4795 = vpack.c.bf16 %v4355, %v4354
        %v4796 = vpack.c.bf16 %v4357, %v4356
        %v4797 = vpack.c.bf16 %v4359, %v4358
        %v4798 = vpack.c.bf16 %v4361, %v4360
        %v4799 = vpack.c.bf16 %v4363, %v4362
        %v4800 = vpack.c.bf16 %v4365, %v4364
        %v4801 = vpack.c.bf16 %v4367, %v4366
        %v4802 = vpack.c.bf16 %v4369, %v4368
        %v4803 = vpack.c.bf16 %v4371, %v4370
        %v4804 = vpack.c.bf16 %v4373, %v4372
        %v4805 = vpack.c.bf16 %v4375, %v4374
        %v4806 = vpack.c.bf16 %v4377, %v4376
        %v4807 = vpack.c.bf16 %v4379, %v4378
        %v4808 = vpack.c.bf16 %v4381, %v4380
        %v4809 = vpack.c.bf16 %v4383, %v4382
        %v4810 = vpack.c.bf16 %v4385, %v4384
        %v4811 = vpack.c.bf16 %v4387, %v4386
        %v4812 = vpack.c.bf16 %v4389, %v4388
        %v4813 = vpack.c.bf16 %v4391, %v4390
        %v4814 = vpack.c.bf16 %v4393, %v4392
        %v4815 = vpack.c.bf16 %v4395, %v4394
        %v4816 = vpack.c.bf16 %v4397, %v4396
        %v4817 = vpack.c.bf16 %v4399, %v4398
        %v4818 = vpack.c.bf16 %v4401, %v4400
        %v4819 = vpack.c.bf16 %v4403, %v4402
        %v4820 = vpack.c.bf16 %v4405, %v4404
        %v4821 = vpack.c.bf16 %v4407, %v4406
        %v4822 = vpack.c.bf16 %v4409, %v4408
        %v4823 = vpack.c.bf16 %v4411, %v4410
        %v4824 = vpack.c.bf16 %v4413, %v4412
        %v4825 = vpack.c.bf16 %v4415, %v4414
        %v4826 = vpack.c.bf16 %v4417, %v4416
        %v4827 = vpack.c.bf16 %v4419, %v4418
        %v4828 = vpack.c.bf16 %v4421, %v4420
        %v4829 = vpack.c.bf16 %v4423, %v4422
        %v4830 = vpack.c.bf16 %v4425, %v4424
        %v4831 = vpack.c.bf16 %v4427, %v4426
        %v4832 = vpack.c.bf16 %v4429, %v4428
        %v4833 = vpack.c.bf16 %v4431, %v4430
        %v4834 = vpack.c.bf16 %v4433, %v4432
        %v4835 = vpack.c.bf16 %v4435, %v4434
        %v4836 = vpack.c.bf16 %v4437, %v4436
        %v4837 = vpack.c.bf16 %v4439, %v4438
        %v4838 = vpack.c.bf16 %v4441, %v4440
        %v4839 = vpack.c.bf16 %v4443, %v4442
        %v4840 = vpack.c.bf16 %v4445, %v4444
        %v4841 = vpack.c.bf16 %v4447, %v4446
        %v4842 = vpack.c.bf16 %v4449, %v4448
        %v4843 = vpack.c.bf16 %v4451, %v4450
        %v4844 = vpack.c.bf16 %v4453, %v4452
        %v4845 = vpack.c.bf16 %v4455, %v4454
        %v4846 = vpack.c.bf16 %v4457, %v4456
        %v4847 = vpack.c.bf16 %v4459, %v4458
        %v4848 = vpack.c.bf16 %v4461, %v4460
        %v4849 = vpack.c.bf16 %v4463, %v4462
        %v4850 = vpack.c.bf16 %v4465, %v4464
        %v4851 = vpack.c.bf16 %v4467, %v4466
        %v4852 = vpack.c.bf16 %v4469, %v4468
        %v4853 = vpack.c.bf16 %v4471, %v4470
        %v4854 = vpack.c.bf16 %v4473, %v4472
        %v4855 = vpack.c.bf16 %v4475, %v4474
        %v4856 = vpack.c.bf16 %v4477, %v4476
        %v4857 = vpack.c.bf16 %v4479, %v4478
        %v4858 = vpack.c.bf16 %v4481, %v4480
        %v4859 = vpack.c.bf16 %v4483, %v4482
        %v4860 = vpack.c.bf16 %v4485, %v4484
        %v4861 = vpack.c.bf16 %v4487, %v4486
        %v4862 = vpack.c.bf16 %v4489, %v4488
        %v4863 = vpack.c.bf16 %v4491, %v4490
        %v4864 = vpack.c.bf16 %v4493, %v4492
        %v4865 = vpack.c.bf16 %v4495, %v4494
        %v4866 = vpack.c.bf16 %v4497, %v4496
        %v4867 = vpack.c.bf16 %v4499, %v4498
        %v4868 = vpack.c.bf16 %v4501, %v4500
        %v4869 = vpack.c.bf16 %v4503, %v4502
        %v4870 = vpack.c.bf16 %v4505, %v4504
        %v4871 = vpack.c.bf16 %v4507, %v4506
        %v4872 = vpack.c.bf16 %v4509, %v4508
        %v4873 = vpack.c.bf16 %v4511, %v4510
        %v4874 = vpack.c.bf16 %v4513, %v4512
        %v4875 = vpack.c.bf16 %v4515, %v4514
        %v4876 = vpack.c.bf16 %v4517, %v4516
        %v4877 = vpack.c.bf16 %v4519, %v4518
        %v4878 = vpack.c.bf16 %v4521, %v4520
        %v4879 = vpack.c.bf16 %v4523, %v4522
        %v4880 = vpack.c.bf16 %v4525, %v4524
        %v4881 = vpack.c.bf16 %v4527, %v4526
        %v4882 = vpack.c.bf16 %v4529, %v4528
        %v4883 = vpack.c.bf16 %v4531, %v4530
        %v4884 = vpack.c.bf16 %v4533, %v4532
        %v4885 = vpack.c.bf16 %v4535, %v4534
        %v4886 = vpack.c.bf16 %v4537, %v4536
        %v4887 = vpack.c.bf16 %v4539, %v4538
        %v4888 = vpack.c.bf16 %v4541, %v4540
        %v4889 = vpack.c.bf16 %v4543, %v4542
        %v4890 = vpack.c.bf16 %v4545, %v4544
        %v4891 = vpack.c.bf16 %v4547, %v4546
        %v4892 = vpack.c.bf16 %v4549, %v4548
        %v4893 = vpack.c.bf16 %v4551, %v4550
        %v4894 = vpack.c.bf16 %v4553, %v4552
        %v4895 = vpack.c.bf16 %v4555, %v4554
        %v4896 = vpack.c.bf16 %v4557, %v4556
        %v4897 = vpack.c.bf16 %v4559, %v4558
        %v4898 = vpack.c.bf16 %v4561, %v4560
        %v4899 = vpack.c.bf16 %v4563, %v4562
        %v4900 = vpack.c.bf16 %v4565, %v4564
        %v4901 = vpack.c.bf16 %v4567, %v4566
        %v4902 = vpack.c.bf16 %v4569, %v4568
        %v4903 = vpack.c.bf16 %v4571, %v4570
        %v4904 = vpack.c.bf16 %v4573, %v4572
        %v4905 = vpack.c.bf16 %v4575, %v4574
        %v4906 = vpack.c.bf16 %v4577, %v4576
        %v4907 = vpack.c.bf16 %v4579, %v4578
        %v4908 = vpack.c.bf16 %v4581, %v4580
        %v4909 = vpack.c.bf16 %v4583, %v4582
        %v4910 = vpack.c.bf16 %v4585, %v4584
        %v4911 = vpack.c.bf16 %v4587, %v4586
        %v4912 = vpack.c.bf16 %v4589, %v4588
        %v4913 = vpack.c.bf16 %v4591, %v4590
        %v4914 = vpack.c.bf16 %v4593, %v4592
        %v4915 = vpack.c.bf16 %v4595, %v4594
        %v4916 = vpack.c.bf16 %v4597, %v4596
        %v4917 = vpack.c.bf16 %v4599, %v4598
        %v4918 = vpack.c.bf16 %v4601, %v4600
        %v4919 = vpack.c.bf16 %v4603, %v4602
        %v4920 = vpack.c.bf16 %v4605, %v4604
        %v4921 = vpack.c.bf16 %v4607, %v4606
        %v4922 = vpack.c.bf16 %v4609, %v4608
        %v4923 = vpack.c.bf16 %v4611, %v4610
        %v4924 = vpack.c.bf16 %v4613, %v4612
        %v4925 = vpack.c.bf16 %v4615, %v4614
        %v4926 = vpack.c.bf16 %v4617, %v4616
        %v4927 = vpack.c.bf16 %v4619, %v4618
        %v4928 = vpack.c.bf16 %v4621, %v4620
        %v4929 = vpack.c.bf16 %v4623, %v4622
        %v4930 = vpack.c.bf16 %v4625, %v4624
        %v4931 = vpack.c.bf16 %v4627, %v4626
        %v4932 = vpack.c.bf16 %v4629, %v4628
        %v4933 = vpack.c.bf16 %v4631, %v4630
        %v4934 = vpack.c.bf16 %v4633, %v4632
        %v4935 = vpack.c.bf16 %v4635, %v4634
        %v4936 = vpack.c.bf16 %v4637, %v4636
        %v4937 = vpack.c.bf16 %v4639, %v4638
        %v4938 = vpack.c.bf16 %v4641, %v4640
        %v4939 = vpack.c.bf16 %v4643, %v4642
        %v4940 = vpack.c.bf16 %v4645, %v4644
        %v4941 = vpack.c.bf16 %v4647, %v4646
        %v4942 = vpack.c.bf16 %v4649, %v4648
        %v4943 = vpack.c.bf16 %v4651, %v4650
        %v4944 = vpack.c.bf16 %v4653, %v4652
        %v4945 = vpack.c.bf16 %v4655, %v4654
        %v4946 = vpack.c.bf16 %v4657, %v4656
        %v4947 = vpack.c.bf16 %v4659, %v4658
        %v4948 = vpack.c.bf16 %v4661, %v4660
        %v4949 = vpack.c.bf16 %v4663, %v4662
        %v4950 = vpack.c.bf16 %v4665, %v4664
        %v4951 = vpack.c.bf16 %v4667, %v4666
        %v4952 = vpack.c.bf16 %v4669, %v4668
        %v4953 = vpack.c.bf16 %v4671, %v4670
        %v4954 = vpack.c.bf16 %v4673, %v4672
        %v4955 = vpack.c.bf16 %v4675, %v4674
        %v4956 = vpack.c.bf16 %v4677, %v4676
        %v4957 = vpack.c.bf16 %v4679, %v4678
        %v4958 = vpack.c.bf16 %v4681, %v4680
        %v4959 = vpack.c.bf16 %v4683, %v4682
        %v4960 = vpack.c.bf16 %v4685, %v4684
        %v4961 = vpack.c.bf16 %v4687, %v4686
        %v4962 = vpack.c.bf16 %v4689, %v4688
        %v4963 = vpack.c.bf16 %v4691, %v4690
        %v4964 = vpack.c.bf16 %v4693, %v4692
        %v4965 = vpack.c.bf16 %v4695, %v4694
        %v4966 = vpack.c.bf16 %v4697, %v4696
        %v4967 = vpack.c.bf16 %v4699, %v4698
        %v4968 = vpack.c.bf16 %v4701, %v4700
        %v4969 = vpack.c.bf16 %v4703, %v4702
        %v4970 = vpack.c.bf16 %v4705, %v4704
        %v4971 = vpack.c.bf16 %v4707, %v4706
        %v4972 = vpack.c.bf16 %v4709, %v4708
        %v4973 = vpack.c.bf16 %v4711, %v4710
        %v4974 = vpack.c.bf16 %v4713, %v4712
        %v4975 = vpack.c.bf16 %v4715, %v4714
        %v4976 = vpack.c.bf16 %v4717, %v4716
        %v4977 = vpack.c.bf16 %v4719, %v4718
        %v4978 = vpack.c.bf16 %v4721, %v4720
        %v4979 = vpack.c.bf16 %v4723, %v4722
        %v4980 = vpack.c.bf16 %v4725, %v4724
        %v4981 = vpack.c.bf16 %v4727, %v4726
        %v4982 = vpack.c.bf16 %v4729, %v4728
        %v4983 = vpack.c.bf16 %v4731, %v4730
        %v4984 = vpack.c.bf16 %v4733, %v4732
        %v4985 = vpack.c.bf16 %v4735, %v4734
        %v4986 = vpack.c.bf16 %v4737, %v4736
        %v4987 = vpack.c.bf16 %v4739, %v4738
        %v4988 = vpack.c.bf16 %v4741, %v4740
        %v4989 = vpack.c.bf16 %v4743, %v4742
        %v4990 = vpack.c.bf16 %v4745, %v4744
        %v4991 = vpack.c.bf16 %v4747, %v4746
        %v4992 = vpack.c.bf16 %v4749, %v4748
        %v4993 = vpack.c.bf16 %v4751, %v4750
        %v4994 = vpack.c.bf16 %v4753, %v4752
        %v4995 = vpack.c.bf16 %v4755, %v4754
        %v4996 = vpack.c.bf16 %v4757, %v4756
        %v4997 = vpack.c.bf16 %v4759, %v4758
        %v4998 = vpack.c.bf16 %v4761, %v4760
        %v4999 = vpack.c.bf16 %v4763, %v4762
        %v5000 = vpack.c.bf16 %v4765, %v4764
        %v5001 = vpack.c.bf16 %v4767, %v4766
        %v5002 = vpack.c.bf16 %v4769, %v4768
        %v5003 = vpack.c.bf16 %v4771, %v4770
        %v5004 = vpack.c.bf16 %v4773, %v4772
        %v5005 = vpack.c.bf16 %v4775, %v4774
        %v5006 = vpack.c.bf16 %v4777, %v4776
        %v5007 = vpack.c.bf16 %v4779, %v4778
        %v5008 = vpack.c.bf16 %v4781, %v4780
        %v5009 = vpack.c.bf16 %v4783, %v4782
        %v5010 = vpack.c.bf16 %v4785, %v4784
        %v5011 = vpack.c.bf16 %v4787, %v4786
        %v5236 = vunpack.c.l.b16 %v4788
        %v5237 = vunpack.c.h.b16 %v4788
        %v5238 = vunpack.c.l.b16 %v4789
        %v5239 = vunpack.c.h.b16 %v4789
        %v5240 = vunpack.c.l.b16 %v4790
        %v5241 = vunpack.c.h.b16 %v4790
        %v5242 = vunpack.c.l.b16 %v4791
        %v5243 = vunpack.c.h.b16 %v4791
        %v5244 = vunpack.c.l.b16 %v4792
        %v5245 = vunpack.c.h.b16 %v4792
        %v5246 = vunpack.c.l.b16 %v4793
        %v5247 = vunpack.c.h.b16 %v4793
        %v5248 = vunpack.c.l.b16 %v4794
        %v5249 = vunpack.c.h.b16 %v4794
        %v5250 = vunpack.c.l.b16 %v4795
        %v5251 = vunpack.c.h.b16 %v4795
        %v5252 = vunpack.c.l.b16 %v4796
        %v5253 = vunpack.c.h.b16 %v4796
        %v5254 = vunpack.c.l.b16 %v4797
        %v5255 = vunpack.c.h.b16 %v4797
        %v5256 = vunpack.c.l.b16 %v4798
        %v5257 = vunpack.c.h.b16 %v4798
        %v5258 = vunpack.c.l.b16 %v4799
        %v5259 = vunpack.c.h.b16 %v4799
        %v5260 = vunpack.c.l.b16 %v4800
        %v5261 = vunpack.c.h.b16 %v4800
        %v5262 = vunpack.c.l.b16 %v4801
        %v5263 = vunpack.c.h.b16 %v4801
        %v5264 = vunpack.c.l.b16 %v4802
        %v5265 = vunpack.c.h.b16 %v4802
        %v5266 = vunpack.c.l.b16 %v4803
        %v5267 = vunpack.c.h.b16 %v4803
        %v5268 = vunpack.c.l.b16 %v4804
        %v5269 = vunpack.c.h.b16 %v4804
        %v5270 = vunpack.c.l.b16 %v4805
        %v5271 = vunpack.c.h.b16 %v4805
        %v5272 = vunpack.c.l.b16 %v4806
        %v5273 = vunpack.c.h.b16 %v4806
        %v5274 = vunpack.c.l.b16 %v4807
        %v5275 = vunpack.c.h.b16 %v4807
        %v5276 = vunpack.c.l.b16 %v4808
        %v5277 = vunpack.c.h.b16 %v4808
        %v5278 = vunpack.c.l.b16 %v4809
        %v5279 = vunpack.c.h.b16 %v4809
        %v5280 = vunpack.c.l.b16 %v4810
        %v5281 = vunpack.c.h.b16 %v4810
        %v5282 = vunpack.c.l.b16 %v4811
        %v5283 = vunpack.c.h.b16 %v4811
        %v5284 = vunpack.c.l.b16 %v4812
        %v5285 = vunpack.c.h.b16 %v4812
        %v5286 = vunpack.c.l.b16 %v4813
        %v5287 = vunpack.c.h.b16 %v4813
        %v5288 = vunpack.c.l.b16 %v4814
        %v5289 = vunpack.c.h.b16 %v4814
        %v5290 = vunpack.c.l.b16 %v4815
        %v5291 = vunpack.c.h.b16 %v4815
        %v5292 = vunpack.c.l.b16 %v4816
        %v5293 = vunpack.c.h.b16 %v4816
        %v5294 = vunpack.c.l.b16 %v4817
        %v5295 = vunpack.c.h.b16 %v4817
        %v5296 = vunpack.c.l.b16 %v4818
        %v5297 = vunpack.c.h.b16 %v4818
        %v5298 = vunpack.c.l.b16 %v4819
        %v5299 = vunpack.c.h.b16 %v4819
        %v5300 = vunpack.c.l.b16 %v4820
        %v5301 = vunpack.c.h.b16 %v4820
        %v5302 = vunpack.c.l.b16 %v4821
        %v5303 = vunpack.c.h.b16 %v4821
        %v5304 = vunpack.c.l.b16 %v4822
        %v5305 = vunpack.c.h.b16 %v4822
        %v5306 = vunpack.c.l.b16 %v4823
        %v5307 = vunpack.c.h.b16 %v4823
        %v5308 = vunpack.c.l.b16 %v4824
        %v5309 = vunpack.c.h.b16 %v4824
        %v5310 = vunpack.c.l.b16 %v4825
        %v5311 = vunpack.c.h.b16 %v4825
        %v5312 = vunpack.c.l.b16 %v4826
        %v5313 = vunpack.c.h.b16 %v4826
        %v5314 = vunpack.c.l.b16 %v4827
        %v5315 = vunpack.c.h.b16 %v4827
        %v5316 = vunpack.c.l.b16 %v4828
        %v5317 = vunpack.c.h.b16 %v4828
        %v5318 = vunpack.c.l.b16 %v4829
        %v5319 = vunpack.c.h.b16 %v4829
        %v5320 = vunpack.c.l.b16 %v4830
        %v5321 = vunpack.c.h.b16 %v4830
        %v5322 = vunpack.c.l.b16 %v4831
        %v5323 = vunpack.c.h.b16 %v4831
        %v5324 = vunpack.c.l.b16 %v4832
        %v5325 = vunpack.c.h.b16 %v4832
        %v5326 = vunpack.c.l.b16 %v4833
        %v5327 = vunpack.c.h.b16 %v4833
        %v5328 = vunpack.c.l.b16 %v4834
        %v5329 = vunpack.c.h.b16 %v4834
        %v5330 = vunpack.c.l.b16 %v4835
        %v5331 = vunpack.c.h.b16 %v4835
        %v5332 = vunpack.c.l.b16 %v4836
        %v5333 = vunpack.c.h.b16 %v4836
        %v5334 = vunpack.c.l.b16 %v4837
        %v5335 = vunpack.c.h.b16 %v4837
        %v5336 = vunpack.c.l.b16 %v4838
        %v5337 = vunpack.c.h.b16 %v4838
        %v5338 = vunpack.c.l.b16 %v4839
        %v5339 = vunpack.c.h.b16 %v4839
        %v5340 = vunpack.c.l.b16 %v4840
        %v5341 = vunpack.c.h.b16 %v4840
        %v5342 = vunpack.c.l.b16 %v4841
        %v5343 = vunpack.c.h.b16 %v4841
        %v5344 = vunpack.c.l.b16 %v4842
        %v5345 = vunpack.c.h.b16 %v4842
        %v5346 = vunpack.c.l.b16 %v4843
        %v5347 = vunpack.c.h.b16 %v4843
        %v5348 = vunpack.c.l.b16 %v4844
        %v5349 = vunpack.c.h.b16 %v4844
        %v5350 = vunpack.c.l.b16 %v4845
        %v5351 = vunpack.c.h.b16 %v4845
        %v5352 = vunpack.c.l.b16 %v4846
        %v5353 = vunpack.c.h.b16 %v4846
        %v5354 = vunpack.c.l.b16 %v4847
        %v5355 = vunpack.c.h.b16 %v4847
        %v5356 = vunpack.c.l.b16 %v4848
        %v5357 = vunpack.c.h.b16 %v4848
        %v5358 = vunpack.c.l.b16 %v4849
        %v5359 = vunpack.c.h.b16 %v4849
        %v5360 = vunpack.c.l.b16 %v4850
        %v5361 = vunpack.c.h.b16 %v4850
        %v5362 = vunpack.c.l.b16 %v4851
        %v5363 = vunpack.c.h.b16 %v4851
        %v5364 = vunpack.c.l.b16 %v4852
        %v5365 = vunpack.c.h.b16 %v4852
        %v5366 = vunpack.c.l.b16 %v4853
        %v5367 = vunpack.c.h.b16 %v4853
        %v5368 = vunpack.c.l.b16 %v4854
        %v5369 = vunpack.c.h.b16 %v4854
        %v5370 = vunpack.c.l.b16 %v4855
        %v5371 = vunpack.c.h.b16 %v4855
        %v5372 = vunpack.c.l.b16 %v4856
        %v5373 = vunpack.c.h.b16 %v4856
        %v5374 = vunpack.c.l.b16 %v4857
        %v5375 = vunpack.c.h.b16 %v4857
        %v5376 = vunpack.c.l.b16 %v4858
        %v5377 = vunpack.c.h.b16 %v4858
        %v5378 = vunpack.c.l.b16 %v4859
        %v5379 = vunpack.c.h.b16 %v4859
        %v5380 = vunpack.c.l.b16 %v4860
        %v5381 = vunpack.c.h.b16 %v4860
        %v5382 = vunpack.c.l.b16 %v4861
        %v5383 = vunpack.c.h.b16 %v4861
        %v5384 = vunpack.c.l.b16 %v4862
        %v5385 = vunpack.c.h.b16 %v4862
        %v5386 = vunpack.c.l.b16 %v4863
        %v5387 = vunpack.c.h.b16 %v4863
        %v5388 = vunpack.c.l.b16 %v4864
        %v5389 = vunpack.c.h.b16 %v4864
        %v5390 = vunpack.c.l.b16 %v4865
        %v5391 = vunpack.c.h.b16 %v4865
        %v5392 = vunpack.c.l.b16 %v4866
        %v5393 = vunpack.c.h.b16 %v4866
        %v5394 = vunpack.c.l.b16 %v4867
        %v5395 = vunpack.c.h.b16 %v4867
        %v5396 = vunpack.c.l.b16 %v4868
        %v5397 = vunpack.c.h.b16 %v4868
        %v5398 = vunpack.c.l.b16 %v4869
        %v5399 = vunpack.c.h.b16 %v4869
        %v5400 = vunpack.c.l.b16 %v4870
        %v5401 = vunpack.c.h.b16 %v4870
        %v5402 = vunpack.c.l.b16 %v4871
        %v5403 = vunpack.c.h.b16 %v4871
        %v5404 = vunpack.c.l.b16 %v4872
        %v5405 = vunpack.c.h.b16 %v4872
        %v5406 = vunpack.c.l.b16 %v4873
        %v5407 = vunpack.c.h.b16 %v4873
        %v5408 = vunpack.c.l.b16 %v4874
        %v5409 = vunpack.c.h.b16 %v4874
        %v5410 = vunpack.c.l.b16 %v4875
        %v5411 = vunpack.c.h.b16 %v4875
        %v5412 = vunpack.c.l.b16 %v4876
        %v5413 = vunpack.c.h.b16 %v4876
        %v5414 = vunpack.c.l.b16 %v4877
        %v5415 = vunpack.c.h.b16 %v4877
        %v5416 = vunpack.c.l.b16 %v4878
        %v5417 = vunpack.c.h.b16 %v4878
        %v5418 = vunpack.c.l.b16 %v4879
        %v5419 = vunpack.c.h.b16 %v4879
        %v5420 = vunpack.c.l.b16 %v4880
        %v5421 = vunpack.c.h.b16 %v4880
        %v5422 = vunpack.c.l.b16 %v4881
        %v5423 = vunpack.c.h.b16 %v4881
        %v5424 = vunpack.c.l.b16 %v4882
        %v5425 = vunpack.c.h.b16 %v4882
        %v5426 = vunpack.c.l.b16 %v4883
        %v5427 = vunpack.c.h.b16 %v4883
        %v5428 = vunpack.c.l.b16 %v4884
        %v5429 = vunpack.c.h.b16 %v4884
        %v5430 = vunpack.c.l.b16 %v4885
        %v5431 = vunpack.c.h.b16 %v4885
        %v5432 = vunpack.c.l.b16 %v4886
        %v5433 = vunpack.c.h.b16 %v4886
        %v5434 = vunpack.c.l.b16 %v4887
        %v5435 = vunpack.c.h.b16 %v4887
        %v5436 = vunpack.c.l.b16 %v4888
        %v5437 = vunpack.c.h.b16 %v4888
        %v5438 = vunpack.c.l.b16 %v4889
        %v5439 = vunpack.c.h.b16 %v4889
        %v5440 = vunpack.c.l.b16 %v4890
        %v5441 = vunpack.c.h.b16 %v4890
        %v5442 = vunpack.c.l.b16 %v4891
        %v5443 = vunpack.c.h.b16 %v4891
        %v5444 = vunpack.c.l.b16 %v4892
        %v5445 = vunpack.c.h.b16 %v4892
        %v5446 = vunpack.c.l.b16 %v4893
        %v5447 = vunpack.c.h.b16 %v4893
        %v5448 = vunpack.c.l.b16 %v4894
        %v5449 = vunpack.c.h.b16 %v4894
        %v5450 = vunpack.c.l.b16 %v4895
        %v5451 = vunpack.c.h.b16 %v4895
        %v5452 = vunpack.c.l.b16 %v4896
        %v5453 = vunpack.c.h.b16 %v4896
        %v5454 = vunpack.c.l.b16 %v4897
        %v5455 = vunpack.c.h.b16 %v4897
        %v5456 = vunpack.c.l.b16 %v4898
        %v5457 = vunpack.c.h.b16 %v4898
        %v5458 = vunpack.c.l.b16 %v4899
        %v5459 = vunpack.c.h.b16 %v4899
        %v5460 = vunpack.c.l.b16 %v4900
        %v5461 = vunpack.c.h.b16 %v4900
        %v5462 = vunpack.c.l.b16 %v4901
        %v5463 = vunpack.c.h.b16 %v4901
        %v5464 = vunpack.c.l.b16 %v4902
        %v5465 = vunpack.c.h.b16 %v4902
        %v5466 = vunpack.c.l.b16 %v4903
        %v5467 = vunpack.c.h.b16 %v4903
        %v5468 = vunpack.c.l.b16 %v4904
        %v5469 = vunpack.c.h.b16 %v4904
        %v5470 = vunpack.c.l.b16 %v4905
        %v5471 = vunpack.c.h.b16 %v4905
        %v5472 = vunpack.c.l.b16 %v4906
        %v5473 = vunpack.c.h.b16 %v4906
        %v5474 = vunpack.c.l.b16 %v4907
        %v5475 = vunpack.c.h.b16 %v4907
        %v5476 = vunpack.c.l.b16 %v4908
        %v5477 = vunpack.c.h.b16 %v4908
        %v5478 = vunpack.c.l.b16 %v4909
        %v5479 = vunpack.c.h.b16 %v4909
        %v5480 = vunpack.c.l.b16 %v4910
        %v5481 = vunpack.c.h.b16 %v4910
        %v5482 = vunpack.c.l.b16 %v4911
        %v5483 = vunpack.c.h.b16 %v4911
        %v5484 = vunpack.c.l.b16 %v4912
        %v5485 = vunpack.c.h.b16 %v4912
        %v5486 = vunpack.c.l.b16 %v4913
        %v5487 = vunpack.c.h.b16 %v4913
        %v5488 = vunpack.c.l.b16 %v4914
        %v5489 = vunpack.c.h.b16 %v4914
        %v5490 = vunpack.c.l.b16 %v4915
        %v5491 = vunpack.c.h.b16 %v4915
        %v5492 = vunpack.c.l.b16 %v4916
        %v5493 = vunpack.c.h.b16 %v4916
        %v5494 = vunpack.c.l.b16 %v4917
        %v5495 = vunpack.c.h.b16 %v4917
        %v5496 = vunpack.c.l.b16 %v4918
        %v5497 = vunpack.c.h.b16 %v4918
        %v5498 = vunpack.c.l.b16 %v4919
        %v5499 = vunpack.c.h.b16 %v4919
        %v5500 = vunpack.c.l.b16 %v4920
        %v5501 = vunpack.c.h.b16 %v4920
        %v5502 = vunpack.c.l.b16 %v4921
        %v5503 = vunpack.c.h.b16 %v4921
        %v5504 = vunpack.c.l.b16 %v4922
        %v5505 = vunpack.c.h.b16 %v4922
        %v5506 = vunpack.c.l.b16 %v4923
        %v5507 = vunpack.c.h.b16 %v4923
        %v5508 = vunpack.c.l.b16 %v4924
        %v5509 = vunpack.c.h.b16 %v4924
        %v5510 = vunpack.c.l.b16 %v4925
        %v5511 = vunpack.c.h.b16 %v4925
        %v5512 = vunpack.c.l.b16 %v4926
        %v5513 = vunpack.c.h.b16 %v4926
        %v5514 = vunpack.c.l.b16 %v4927
        %v5515 = vunpack.c.h.b16 %v4927
        %v5516 = vunpack.c.l.b16 %v4928
        %v5517 = vunpack.c.h.b16 %v4928
        %v5518 = vunpack.c.l.b16 %v4929
        %v5519 = vunpack.c.h.b16 %v4929
        %v5520 = vunpack.c.l.b16 %v4930
        %v5521 = vunpack.c.h.b16 %v4930
        %v5522 = vunpack.c.l.b16 %v4931
        %v5523 = vunpack.c.h.b16 %v4931
        %v5524 = vunpack.c.l.b16 %v4932
        %v5525 = vunpack.c.h.b16 %v4932
        %v5526 = vunpack.c.l.b16 %v4933
        %v5527 = vunpack.c.h.b16 %v4933
        %v5528 = vunpack.c.l.b16 %v4934
        %v5529 = vunpack.c.h.b16 %v4934
        %v5530 = vunpack.c.l.b16 %v4935
        %v5531 = vunpack.c.h.b16 %v4935
        %v5532 = vunpack.c.l.b16 %v4936
        %v5533 = vunpack.c.h.b16 %v4936
        %v5534 = vunpack.c.l.b16 %v4937
        %v5535 = vunpack.c.h.b16 %v4937
        %v5536 = vunpack.c.l.b16 %v4938
        %v5537 = vunpack.c.h.b16 %v4938
        %v5538 = vunpack.c.l.b16 %v4939
        %v5539 = vunpack.c.h.b16 %v4939
        %v5540 = vunpack.c.l.b16 %v4940
        %v5541 = vunpack.c.h.b16 %v4940
        %v5542 = vunpack.c.l.b16 %v4941
        %v5543 = vunpack.c.h.b16 %v4941
        %v5544 = vunpack.c.l.b16 %v4942
        %v5545 = vunpack.c.h.b16 %v4942
        %v5546 = vunpack.c.l.b16 %v4943
        %v5547 = vunpack.c.h.b16 %v4943
        %v5548 = vunpack.c.l.b16 %v4944
        %v5549 = vunpack.c.h.b16 %v4944
        %v5550 = vunpack.c.l.b16 %v4945
        %v5551 = vunpack.c.h.b16 %v4945
        %v5552 = vunpack.c.l.b16 %v4946
        %v5553 = vunpack.c.h.b16 %v4946
        %v5554 = vunpack.c.l.b16 %v4947
        %v5555 = vunpack.c.h.b16 %v4947
        %v5556 = vunpack.c.l.b16 %v4948
        %v5557 = vunpack.c.h.b16 %v4948
        %v5558 = vunpack.c.l.b16 %v4949
        %v5559 = vunpack.c.h.b16 %v4949
        %v5560 = vunpack.c.l.b16 %v4950
        %v5561 = vunpack.c.h.b16 %v4950
        %v5562 = vunpack.c.l.b16 %v4951
        %v5563 = vunpack.c.h.b16 %v4951
        %v5564 = vunpack.c.l.b16 %v4952
        %v5565 = vunpack.c.h.b16 %v4952
        %v5566 = vunpack.c.l.b16 %v4953
        %v5567 = vunpack.c.h.b16 %v4953
        %v5568 = vunpack.c.l.b16 %v4954
        %v5569 = vunpack.c.h.b16 %v4954
        %v5570 = vunpack.c.l.b16 %v4955
        %v5571 = vunpack.c.h.b16 %v4955
        %v5572 = vunpack.c.l.b16 %v4956
        %v5573 = vunpack.c.h.b16 %v4956
        %v5574 = vunpack.c.l.b16 %v4957
        %v5575 = vunpack.c.h.b16 %v4957
        %v5576 = vunpack.c.l.b16 %v4958
        %v5577 = vunpack.c.h.b16 %v4958
        %v5578 = vunpack.c.l.b16 %v4959
        %v5579 = vunpack.c.h.b16 %v4959
        %v5580 = vunpack.c.l.b16 %v4960
        %v5581 = vunpack.c.h.b16 %v4960
        %v5582 = vunpack.c.l.b16 %v4961
        %v5583 = vunpack.c.h.b16 %v4961
        %v5584 = vunpack.c.l.b16 %v4962
        %v5585 = vunpack.c.h.b16 %v4962
        %v5586 = vunpack.c.l.b16 %v4963
        %v5587 = vunpack.c.h.b16 %v4963
        %v5588 = vunpack.c.l.b16 %v4964
        %v5589 = vunpack.c.h.b16 %v4964
        %v5590 = vunpack.c.l.b16 %v4965
        %v5591 = vunpack.c.h.b16 %v4965
        %v5592 = vunpack.c.l.b16 %v4966
        %v5593 = vunpack.c.h.b16 %v4966
        %v5594 = vunpack.c.l.b16 %v4967
        %v5595 = vunpack.c.h.b16 %v4967
        %v5596 = vunpack.c.l.b16 %v4968
        %v5597 = vunpack.c.h.b16 %v4968
        %v5598 = vunpack.c.l.b16 %v4969
        %v5599 = vunpack.c.h.b16 %v4969
        %v5600 = vunpack.c.l.b16 %v4970
        %v5601 = vunpack.c.h.b16 %v4970
        %v5602 = vunpack.c.l.b16 %v4971
        %v5603 = vunpack.c.h.b16 %v4971
        %v5604 = vunpack.c.l.b16 %v4972
        %v5605 = vunpack.c.h.b16 %v4972
        %v5606 = vunpack.c.l.b16 %v4973
        %v5607 = vunpack.c.h.b16 %v4973
        %v5608 = vunpack.c.l.b16 %v4974
        %v5609 = vunpack.c.h.b16 %v4974
        %v5610 = vunpack.c.l.b16 %v4975
        %v5611 = vunpack.c.h.b16 %v4975
        %v5612 = vunpack.c.l.b16 %v4976
        %v5613 = vunpack.c.h.b16 %v4976
        %v5614 = vunpack.c.l.b16 %v4977
        %v5615 = vunpack.c.h.b16 %v4977
        %v5616 = vunpack.c.l.b16 %v4978
        %v5617 = vunpack.c.h.b16 %v4978
        %v5618 = vunpack.c.l.b16 %v4979
        %v5619 = vunpack.c.h.b16 %v4979
        %v5620 = vunpack.c.l.b16 %v4980
        %v5621 = vunpack.c.h.b16 %v4980
        %v5622 = vunpack.c.l.b16 %v4981
        %v5623 = vunpack.c.h.b16 %v4981
        %v5624 = vunpack.c.l.b16 %v4982
        %v5625 = vunpack.c.h.b16 %v4982
        %v5626 = vunpack.c.l.b16 %v4983
        %v5627 = vunpack.c.h.b16 %v4983
        %v5628 = vunpack.c.l.b16 %v4984
        %v5629 = vunpack.c.h.b16 %v4984
        %v5630 = vunpack.c.l.b16 %v4985
        %v5631 = vunpack.c.h.b16 %v4985
        %v5632 = vunpack.c.l.b16 %v4986
        %v5633 = vunpack.c.h.b16 %v4986
        %v5634 = vunpack.c.l.b16 %v4987
        %v5635 = vunpack.c.h.b16 %v4987
        %v5636 = vunpack.c.l.b16 %v4988
        %v5637 = vunpack.c.h.b16 %v4988
        %v5638 = vunpack.c.l.b16 %v4989
        %v5639 = vunpack.c.h.b16 %v4989
        %v5640 = vunpack.c.l.b16 %v4990
        %v5641 = vunpack.c.h.b16 %v4990
        %v5642 = vunpack.c.l.b16 %v4991
        %v5643 = vunpack.c.h.b16 %v4991
        %v5644 = vunpack.c.l.b16 %v4992
        %v5645 = vunpack.c.h.b16 %v4992
        %v5646 = vunpack.c.l.b16 %v4993
        %v5647 = vunpack.c.h.b16 %v4993
        %v5648 = vunpack.c.l.b16 %v4994
        %v5649 = vunpack.c.h.b16 %v4994
        %v5650 = vunpack.c.l.b16 %v4995
        %v5651 = vunpack.c.h.b16 %v4995
        %v5652 = vunpack.c.l.b16 %v4996
        %v5653 = vunpack.c.h.b16 %v4996
        %v5654 = vunpack.c.l.b16 %v4997
        %v5655 = vunpack.c.h.b16 %v4997
        %v5656 = vunpack.c.l.b16 %v4998
        %v5657 = vunpack.c.h.b16 %v4998
        %v5658 = vunpack.c.l.b16 %v4999
        %v5659 = vunpack.c.h.b16 %v4999
        %v5660 = vunpack.c.l.b16 %v5000
        %v5661 = vunpack.c.h.b16 %v5000
        %v5662 = vunpack.c.l.b16 %v5001
        %v5663 = vunpack.c.h.b16 %v5001
        %v5664 = vunpack.c.l.b16 %v5002
        %v5665 = vunpack.c.h.b16 %v5002
        %v5666 = vunpack.c.l.b16 %v5003
        %v5667 = vunpack.c.h.b16 %v5003
        %v5668 = vunpack.c.l.b16 %v5004
        %v5669 = vunpack.c.h.b16 %v5004
        %v5670 = vunpack.c.l.b16 %v5005
        %v5671 = vunpack.c.h.b16 %v5005
        %v5672 = vunpack.c.l.b16 %v5006
        %v5673 = vunpack.c.h.b16 %v5006
        %v5674 = vunpack.c.l.b16 %v5007
        %v5675 = vunpack.c.h.b16 %v5007
        %v5676 = vunpack.c.l.b16 %v5008
        %v5677 = vunpack.c.h.b16 %v5008
        %v5678 = vunpack.c.l.b16 %v5009
        %v5679 = vunpack.c.h.b16 %v5009
        %v5680 = vunpack.c.l.b16 %v5010
        %v5681 = vunpack.c.h.b16 %v5010
        %v5682 = vunpack.c.l.b16 %v5011
        %v5683 = vunpack.c.h.b16 %v5011
        %v5684 = vpack.c.b16 %v5236, %v5236
        %v5685 = vpack.c.b16 %v5237, %v5237
        %v5686 = vpack.c.b16 %v5238, %v5238
        %v5687 = vpack.c.b16 %v5239, %v5239
        %v5688 = vpack.c.b16 %v5240, %v5240
        %v5689 = vpack.c.b16 %v5241, %v5241
        %v5690 = vpack.c.b16 %v5242, %v5242
        %v5691 = vpack.c.b16 %v5243, %v5243
        %v5692 = vpack.c.b16 %v5244, %v5244
        %v5693 = vpack.c.b16 %v5245, %v5245
        %v5694 = vpack.c.b16 %v5246, %v5246
        %v5695 = vpack.c.b16 %v5247, %v5247
        %v5696 = vpack.c.b16 %v5248, %v5248
        %v5697 = vpack.c.b16 %v5249, %v5249
        %v5698 = vpack.c.b16 %v5250, %v5250
        %v5699 = vpack.c.b16 %v5251, %v5251
        %v5700 = vpack.c.b16 %v5252, %v5252
        %v5701 = vpack.c.b16 %v5253, %v5253
        %v5702 = vpack.c.b16 %v5254, %v5254
        %v5703 = vpack.c.b16 %v5255, %v5255
        %v5704 = vpack.c.b16 %v5256, %v5256
        %v5705 = vpack.c.b16 %v5257, %v5257
        %v5706 = vpack.c.b16 %v5258, %v5258
        %v5707 = vpack.c.b16 %v5259, %v5259
        %v5708 = vpack.c.b16 %v5260, %v5260
        %v5709 = vpack.c.b16 %v5261, %v5261
        %v5710 = vpack.c.b16 %v5262, %v5262
        %v5711 = vpack.c.b16 %v5263, %v5263
        %v5712 = vpack.c.b16 %v5264, %v5264
        %v5713 = vpack.c.b16 %v5265, %v5265
        %v5714 = vpack.c.b16 %v5266, %v5266
        %v5715 = vpack.c.b16 %v5267, %v5267
        %v5716 = vpack.c.b16 %v5268, %v5268
        %v5717 = vpack.c.b16 %v5269, %v5269
        %v5718 = vpack.c.b16 %v5270, %v5270
        %v5719 = vpack.c.b16 %v5271, %v5271
        %v5720 = vpack.c.b16 %v5272, %v5272
        %v5721 = vpack.c.b16 %v5273, %v5273
        %v5722 = vpack.c.b16 %v5274, %v5274
        %v5723 = vpack.c.b16 %v5275, %v5275
        %v5724 = vpack.c.b16 %v5276, %v5276
        %v5725 = vpack.c.b16 %v5277, %v5277
        %v5726 = vpack.c.b16 %v5278, %v5278
        %v5727 = vpack.c.b16 %v5279, %v5279
        %v5728 = vpack.c.b16 %v5280, %v5280
        %v5729 = vpack.c.b16 %v5281, %v5281
        %v5730 = vpack.c.b16 %v5282, %v5282
        %v5731 = vpack.c.b16 %v5283, %v5283
        %v5732 = vpack.c.b16 %v5284, %v5284
        %v5733 = vpack.c.b16 %v5285, %v5285
        %v5734 = vpack.c.b16 %v5286, %v5286
        %v5735 = vpack.c.b16 %v5287, %v5287
        %v5736 = vpack.c.b16 %v5288, %v5288
        %v5737 = vpack.c.b16 %v5289, %v5289
        %v5738 = vpack.c.b16 %v5290, %v5290
        %v5739 = vpack.c.b16 %v5291, %v5291
        %v5740 = vpack.c.b16 %v5292, %v5292
        %v5741 = vpack.c.b16 %v5293, %v5293
        %v5742 = vpack.c.b16 %v5294, %v5294
        %v5743 = vpack.c.b16 %v5295, %v5295
        %v5744 = vpack.c.b16 %v5296, %v5296
        %v5745 = vpack.c.b16 %v5297, %v5297
        %v5746 = vpack.c.b16 %v5298, %v5298
        %v5747 = vpack.c.b16 %v5299, %v5299
        %v5748 = vpack.c.b16 %v5300, %v5300
        %v5749 = vpack.c.b16 %v5301, %v5301
        %v5750 = vpack.c.b16 %v5302, %v5302
        %v5751 = vpack.c.b16 %v5303, %v5303
        %v5752 = vpack.c.b16 %v5304, %v5304
        %v5753 = vpack.c.b16 %v5305, %v5305
        %v5754 = vpack.c.b16 %v5306, %v5306
        %v5755 = vpack.c.b16 %v5307, %v5307
        %v5756 = vpack.c.b16 %v5308, %v5308
        %v5757 = vpack.c.b16 %v5309, %v5309
        %v5758 = vpack.c.b16 %v5310, %v5310
        %v5759 = vpack.c.b16 %v5311, %v5311
        %v5760 = vpack.c.b16 %v5312, %v5312
        %v5761 = vpack.c.b16 %v5313, %v5313
        %v5762 = vpack.c.b16 %v5314, %v5314
        %v5763 = vpack.c.b16 %v5315, %v5315
        %v5764 = vpack.c.b16 %v5316, %v5316
        %v5765 = vpack.c.b16 %v5317, %v5317
        %v5766 = vpack.c.b16 %v5318, %v5318
        %v5767 = vpack.c.b16 %v5319, %v5319
        %v5768 = vpack.c.b16 %v5320, %v5320
        %v5769 = vpack.c.b16 %v5321, %v5321
        %v5770 = vpack.c.b16 %v5322, %v5322
        %v5771 = vpack.c.b16 %v5323, %v5323
        %v5772 = vpack.c.b16 %v5324, %v5324
        %v5773 = vpack.c.b16 %v5325, %v5325
        %v5774 = vpack.c.b16 %v5326, %v5326
        %v5775 = vpack.c.b16 %v5327, %v5327
        %v5776 = vpack.c.b16 %v5328, %v5328
        %v5777 = vpack.c.b16 %v5329, %v5329
        %v5778 = vpack.c.b16 %v5330, %v5330
        %v5779 = vpack.c.b16 %v5331, %v5331
        %v5780 = vpack.c.b16 %v5332, %v5332
        %v5781 = vpack.c.b16 %v5333, %v5333
        %v5782 = vpack.c.b16 %v5334, %v5334
        %v5783 = vpack.c.b16 %v5335, %v5335
        %v5784 = vpack.c.b16 %v5336, %v5336
        %v5785 = vpack.c.b16 %v5337, %v5337
        %v5786 = vpack.c.b16 %v5338, %v5338
        %v5787 = vpack.c.b16 %v5339, %v5339
        %v5788 = vpack.c.b16 %v5340, %v5340
        %v5789 = vpack.c.b16 %v5341, %v5341
        %v5790 = vpack.c.b16 %v5342, %v5342
        %v5791 = vpack.c.b16 %v5343, %v5343
        %v5792 = vpack.c.b16 %v5344, %v5344
        %v5793 = vpack.c.b16 %v5345, %v5345
        %v5794 = vpack.c.b16 %v5346, %v5346
        %v5795 = vpack.c.b16 %v5347, %v5347
        %v5796 = vpack.c.b16 %v5348, %v5348
        %v5797 = vpack.c.b16 %v5349, %v5349
        %v5798 = vpack.c.b16 %v5350, %v5350
        %v5799 = vpack.c.b16 %v5351, %v5351
        %v5800 = vpack.c.b16 %v5352, %v5352
        %v5801 = vpack.c.b16 %v5353, %v5353
        %v5802 = vpack.c.b16 %v5354, %v5354
        %v5803 = vpack.c.b16 %v5355, %v5355
        %v5804 = vpack.c.b16 %v5356, %v5356
        %v5805 = vpack.c.b16 %v5357, %v5357
        %v5806 = vpack.c.b16 %v5358, %v5358
        %v5807 = vpack.c.b16 %v5359, %v5359
        %v5808 = vpack.c.b16 %v5360, %v5360
        %v5809 = vpack.c.b16 %v5361, %v5361
        %v5810 = vpack.c.b16 %v5362, %v5362
        %v5811 = vpack.c.b16 %v5363, %v5363
        %v5812 = vpack.c.b16 %v5364, %v5364
        %v5813 = vpack.c.b16 %v5365, %v5365
        %v5814 = vpack.c.b16 %v5366, %v5366
        %v5815 = vpack.c.b16 %v5367, %v5367
        %v5816 = vpack.c.b16 %v5368, %v5368
        %v5817 = vpack.c.b16 %v5369, %v5369
        %v5818 = vpack.c.b16 %v5370, %v5370
        %v5819 = vpack.c.b16 %v5371, %v5371
        %v5820 = vpack.c.b16 %v5372, %v5372
        %v5821 = vpack.c.b16 %v5373, %v5373
        %v5822 = vpack.c.b16 %v5374, %v5374
        %v5823 = vpack.c.b16 %v5375, %v5375
        %v5824 = vpack.c.b16 %v5376, %v5376
        %v5825 = vpack.c.b16 %v5377, %v5377
        %v5826 = vpack.c.b16 %v5378, %v5378
        %v5827 = vpack.c.b16 %v5379, %v5379
        %v5828 = vpack.c.b16 %v5380, %v5380
        %v5829 = vpack.c.b16 %v5381, %v5381
        %v5830 = vpack.c.b16 %v5382, %v5382
        %v5831 = vpack.c.b16 %v5383, %v5383
        %v5832 = vpack.c.b16 %v5384, %v5384
        %v5833 = vpack.c.b16 %v5385, %v5385
        %v5834 = vpack.c.b16 %v5386, %v5386
        %v5835 = vpack.c.b16 %v5387, %v5387
        %v5836 = vpack.c.b16 %v5388, %v5388
        %v5837 = vpack.c.b16 %v5389, %v5389
        %v5838 = vpack.c.b16 %v5390, %v5390
        %v5839 = vpack.c.b16 %v5391, %v5391
        %v5840 = vpack.c.b16 %v5392, %v5392
        %v5841 = vpack.c.b16 %v5393, %v5393
        %v5842 = vpack.c.b16 %v5394, %v5394
        %v5843 = vpack.c.b16 %v5395, %v5395
        %v5844 = vpack.c.b16 %v5396, %v5396
        %v5845 = vpack.c.b16 %v5397, %v5397
        %v5846 = vpack.c.b16 %v5398, %v5398
        %v5847 = vpack.c.b16 %v5399, %v5399
        %v5848 = vpack.c.b16 %v5400, %v5400
        %v5849 = vpack.c.b16 %v5401, %v5401
        %v5850 = vpack.c.b16 %v5402, %v5402
        %v5851 = vpack.c.b16 %v5403, %v5403
        %v5852 = vpack.c.b16 %v5404, %v5404
        %v5853 = vpack.c.b16 %v5405, %v5405
        %v5854 = vpack.c.b16 %v5406, %v5406
        %v5855 = vpack.c.b16 %v5407, %v5407
        %v5856 = vpack.c.b16 %v5408, %v5408
        %v5857 = vpack.c.b16 %v5409, %v5409
        %v5858 = vpack.c.b16 %v5410, %v5410
        %v5859 = vpack.c.b16 %v5411, %v5411
        %v5860 = vpack.c.b16 %v5412, %v5412
        %v5861 = vpack.c.b16 %v5413, %v5413
        %v5862 = vpack.c.b16 %v5414, %v5414
        %v5863 = vpack.c.b16 %v5415, %v5415
        %v5864 = vpack.c.b16 %v5416, %v5416
        %v5865 = vpack.c.b16 %v5417, %v5417
        %v5866 = vpack.c.b16 %v5418, %v5418
        %v5867 = vpack.c.b16 %v5419, %v5419
        %v5868 = vpack.c.b16 %v5420, %v5420
        %v5869 = vpack.c.b16 %v5421, %v5421
        %v5870 = vpack.c.b16 %v5422, %v5422
        %v5871 = vpack.c.b16 %v5423, %v5423
        %v5872 = vpack.c.b16 %v5424, %v5424
        %v5873 = vpack.c.b16 %v5425, %v5425
        %v5874 = vpack.c.b16 %v5426, %v5426
        %v5875 = vpack.c.b16 %v5427, %v5427
        %v5876 = vpack.c.b16 %v5428, %v5428
        %v5877 = vpack.c.b16 %v5429, %v5429
        %v5878 = vpack.c.b16 %v5430, %v5430
        %v5879 = vpack.c.b16 %v5431, %v5431
        %v5880 = vpack.c.b16 %v5432, %v5432
        %v5881 = vpack.c.b16 %v5433, %v5433
        %v5882 = vpack.c.b16 %v5434, %v5434
        %v5883 = vpack.c.b16 %v5435, %v5435
        %v5884 = vpack.c.b16 %v5436, %v5436
        %v5885 = vpack.c.b16 %v5437, %v5437
        %v5886 = vpack.c.b16 %v5438, %v5438
        %v5887 = vpack.c.b16 %v5439, %v5439
        %v5888 = vpack.c.b16 %v5440, %v5440
        %v5889 = vpack.c.b16 %v5441, %v5441
        %v5890 = vpack.c.b16 %v5442, %v5442
        %v5891 = vpack.c.b16 %v5443, %v5443
        %v5892 = vpack.c.b16 %v5444, %v5444
        %v5893 = vpack.c.b16 %v5445, %v5445
        %v5894 = vpack.c.b16 %v5446, %v5446
        %v5895 = vpack.c.b16 %v5447, %v5447
        %v5896 = vpack.c.b16 %v5448, %v5448
        %v5897 = vpack.c.b16 %v5449, %v5449
        %v5898 = vpack.c.b16 %v5450, %v5450
        %v5899 = vpack.c.b16 %v5451, %v5451
        %v5900 = vpack.c.b16 %v5452, %v5452
        %v5901 = vpack.c.b16 %v5453, %v5453
        %v5902 = vpack.c.b16 %v5454, %v5454
        %v5903 = vpack.c.b16 %v5455, %v5455
        %v5904 = vpack.c.b16 %v5456, %v5456
        %v5905 = vpack.c.b16 %v5457, %v5457
        %v5906 = vpack.c.b16 %v5458, %v5458
        %v5907 = vpack.c.b16 %v5459, %v5459
        %v5908 = vpack.c.b16 %v5460, %v5460
        %v5909 = vpack.c.b16 %v5461, %v5461
        %v5910 = vpack.c.b16 %v5462, %v5462
        %v5911 = vpack.c.b16 %v5463, %v5463
        %v5912 = vpack.c.b16 %v5464, %v5464
        %v5913 = vpack.c.b16 %v5465, %v5465
        %v5914 = vpack.c.b16 %v5466, %v5466
        %v5915 = vpack.c.b16 %v5467, %v5467
        %v5916 = vpack.c.b16 %v5468, %v5468
        %v5917 = vpack.c.b16 %v5469, %v5469
        %v5918 = vpack.c.b16 %v5470, %v5470
        %v5919 = vpack.c.b16 %v5471, %v5471
        %v5920 = vpack.c.b16 %v5472, %v5472
        %v5921 = vpack.c.b16 %v5473, %v5473
        %v5922 = vpack.c.b16 %v5474, %v5474
        %v5923 = vpack.c.b16 %v5475, %v5475
        %v5924 = vpack.c.b16 %v5476, %v5476
        %v5925 = vpack.c.b16 %v5477, %v5477
        %v5926 = vpack.c.b16 %v5478, %v5478
        %v5927 = vpack.c.b16 %v5479, %v5479
        %v5928 = vpack.c.b16 %v5480, %v5480
        %v5929 = vpack.c.b16 %v5481, %v5481
        %v5930 = vpack.c.b16 %v5482, %v5482
        %v5931 = vpack.c.b16 %v5483, %v5483
        %v5932 = vpack.c.b16 %v5484, %v5484
        %v5933 = vpack.c.b16 %v5485, %v5485
        %v5934 = vpack.c.b16 %v5486, %v5486
        %v5935 = vpack.c.b16 %v5487, %v5487
        %v5936 = vpack.c.b16 %v5488, %v5488
        %v5937 = vpack.c.b16 %v5489, %v5489
        %v5938 = vpack.c.b16 %v5490, %v5490
        %v5939 = vpack.c.b16 %v5491, %v5491
        %v5940 = vpack.c.b16 %v5492, %v5492
        %v5941 = vpack.c.b16 %v5493, %v5493
        %v5942 = vpack.c.b16 %v5494, %v5494
        %v5943 = vpack.c.b16 %v5495, %v5495
        %v5944 = vpack.c.b16 %v5496, %v5496
        %v5945 = vpack.c.b16 %v5497, %v5497
        %v5946 = vpack.c.b16 %v5498, %v5498
        %v5947 = vpack.c.b16 %v5499, %v5499
        %v5948 = vpack.c.b16 %v5500, %v5500
        %v5949 = vpack.c.b16 %v5501, %v5501
        %v5950 = vpack.c.b16 %v5502, %v5502
        %v5951 = vpack.c.b16 %v5503, %v5503
        %v5952 = vpack.c.b16 %v5504, %v5504
        %v5953 = vpack.c.b16 %v5505, %v5505
        %v5954 = vpack.c.b16 %v5506, %v5506
        %v5955 = vpack.c.b16 %v5507, %v5507
        %v5956 = vpack.c.b16 %v5508, %v5508
        %v5957 = vpack.c.b16 %v5509, %v5509
        %v5958 = vpack.c.b16 %v5510, %v5510
        %v5959 = vpack.c.b16 %v5511, %v5511
        %v5960 = vpack.c.b16 %v5512, %v5512
        %v5961 = vpack.c.b16 %v5513, %v5513
        %v5962 = vpack.c.b16 %v5514, %v5514
        %v5963 = vpack.c.b16 %v5515, %v5515
        %v5964 = vpack.c.b16 %v5516, %v5516
        %v5965 = vpack.c.b16 %v5517, %v5517
        %v5966 = vpack.c.b16 %v5518, %v5518
        %v5967 = vpack.c.b16 %v5519, %v5519
        %v5968 = vpack.c.b16 %v5520, %v5520
        %v5969 = vpack.c.b16 %v5521, %v5521
        %v5970 = vpack.c.b16 %v5522, %v5522
        %v5971 = vpack.c.b16 %v5523, %v5523
        %v5972 = vpack.c.b16 %v5524, %v5524
        %v5973 = vpack.c.b16 %v5525, %v5525
        %v5974 = vpack.c.b16 %v5526, %v5526
        %v5975 = vpack.c.b16 %v5527, %v5527
        %v5976 = vpack.c.b16 %v5528, %v5528
        %v5977 = vpack.c.b16 %v5529, %v5529
        %v5978 = vpack.c.b16 %v5530, %v5530
        %v5979 = vpack.c.b16 %v5531, %v5531
        %v5980 = vpack.c.b16 %v5532, %v5532
        %v5981 = vpack.c.b16 %v5533, %v5533
        %v5982 = vpack.c.b16 %v5534, %v5534
        %v5983 = vpack.c.b16 %v5535, %v5535
        %v5984 = vpack.c.b16 %v5536, %v5536
        %v5985 = vpack.c.b16 %v5537, %v5537
        %v5986 = vpack.c.b16 %v5538, %v5538
        %v5987 = vpack.c.b16 %v5539, %v5539
        %v5988 = vpack.c.b16 %v5540, %v5540
        %v5989 = vpack.c.b16 %v5541, %v5541
        %v5990 = vpack.c.b16 %v5542, %v5542
        %v5991 = vpack.c.b16 %v5543, %v5543
        %v5992 = vpack.c.b16 %v5544, %v5544
        %v5993 = vpack.c.b16 %v5545, %v5545
        %v5994 = vpack.c.b16 %v5546, %v5546
        %v5995 = vpack.c.b16 %v5547, %v5547
        %v5996 = vpack.c.b16 %v5548, %v5548
        %v5997 = vpack.c.b16 %v5549, %v5549
        %v5998 = vpack.c.b16 %v5550, %v5550
        %v5999 = vpack.c.b16 %v5551, %v5551
        %v6000 = vpack.c.b16 %v5552, %v5552
        %v6001 = vpack.c.b16 %v5553, %v5553
        %v6002 = vpack.c.b16 %v5554, %v5554
        %v6003 = vpack.c.b16 %v5555, %v5555
        %v6004 = vpack.c.b16 %v5556, %v5556
        %v6005 = vpack.c.b16 %v5557, %v5557
        %v6006 = vpack.c.b16 %v5558, %v5558
        %v6007 = vpack.c.b16 %v5559, %v5559
        %v6008 = vpack.c.b16 %v5560, %v5560
        %v6009 = vpack.c.b16 %v5561, %v5561
        %v6010 = vpack.c.b16 %v5562, %v5562
        %v6011 = vpack.c.b16 %v5563, %v5563
        %v6012 = vpack.c.b16 %v5564, %v5564
        %v6013 = vpack.c.b16 %v5565, %v5565
        %v6014 = vpack.c.b16 %v5566, %v5566
        %v6015 = vpack.c.b16 %v5567, %v5567
        %v6016 = vpack.c.b16 %v5568, %v5568
        %v6017 = vpack.c.b16 %v5569, %v5569
        %v6018 = vpack.c.b16 %v5570, %v5570
        %v6019 = vpack.c.b16 %v5571, %v5571
        %v6020 = vpack.c.b16 %v5572, %v5572
        %v6021 = vpack.c.b16 %v5573, %v5573
        %v6022 = vpack.c.b16 %v5574, %v5574
        %v6023 = vpack.c.b16 %v5575, %v5575
        %v6024 = vpack.c.b16 %v5576, %v5576
        %v6025 = vpack.c.b16 %v5577, %v5577
        %v6026 = vpack.c.b16 %v5578, %v5578
        %v6027 = vpack.c.b16 %v5579, %v5579
        %v6028 = vpack.c.b16 %v5580, %v5580
        %v6029 = vpack.c.b16 %v5581, %v5581
        %v6030 = vpack.c.b16 %v5582, %v5582
        %v6031 = vpack.c.b16 %v5583, %v5583
        %v6032 = vpack.c.b16 %v5584, %v5584
        %v6033 = vpack.c.b16 %v5585, %v5585
        %v6034 = vpack.c.b16 %v5586, %v5586
        %v6035 = vpack.c.b16 %v5587, %v5587
        %v6036 = vpack.c.b16 %v5588, %v5588
        %v6037 = vpack.c.b16 %v5589, %v5589
        %v6038 = vpack.c.b16 %v5590, %v5590
        %v6039 = vpack.c.b16 %v5591, %v5591
        %v6040 = vpack.c.b16 %v5592, %v5592
        %v6041 = vpack.c.b16 %v5593, %v5593
        %v6042 = vpack.c.b16 %v5594, %v5594
        %v6043 = vpack.c.b16 %v5595, %v5595
        %v6044 = vpack.c.b16 %v5596, %v5596
        %v6045 = vpack.c.b16 %v5597, %v5597
        %v6046 = vpack.c.b16 %v5598, %v5598
        %v6047 = vpack.c.b16 %v5599, %v5599
        %v6048 = vpack.c.b16 %v5600, %v5600
        %v6049 = vpack.c.b16 %v5601, %v5601
        %v6050 = vpack.c.b16 %v5602, %v5602
        %v6051 = vpack.c.b16 %v5603, %v5603
        %v6052 = vpack.c.b16 %v5604, %v5604
        %v6053 = vpack.c.b16 %v5605, %v5605
        %v6054 = vpack.c.b16 %v5606, %v5606
        %v6055 = vpack.c.b16 %v5607, %v5607
        %v6056 = vpack.c.b16 %v5608, %v5608
        %v6057 = vpack.c.b16 %v5609, %v5609
        %v6058 = vpack.c.b16 %v5610, %v5610
        %v6059 = vpack.c.b16 %v5611, %v5611
        %v6060 = vpack.c.b16 %v5612, %v5612
        %v6061 = vpack.c.b16 %v5613, %v5613
        %v6062 = vpack.c.b16 %v5614, %v5614
        %v6063 = vpack.c.b16 %v5615, %v5615
        %v6064 = vpack.c.b16 %v5616, %v5616
        %v6065 = vpack.c.b16 %v5617, %v5617
        %v6066 = vpack.c.b16 %v5618, %v5618
        %v6067 = vpack.c.b16 %v5619, %v5619
        %v6068 = vpack.c.b16 %v5620, %v5620
        %v6069 = vpack.c.b16 %v5621, %v5621
        %v6070 = vpack.c.b16 %v5622, %v5622
        %v6071 = vpack.c.b16 %v5623, %v5623
        %v6072 = vpack.c.b16 %v5624, %v5624
        %v6073 = vpack.c.b16 %v5625, %v5625
        %v6074 = vpack.c.b16 %v5626, %v5626
        %v6075 = vpack.c.b16 %v5627, %v5627
        %v6076 = vpack.c.b16 %v5628, %v5628
        %v6077 = vpack.c.b16 %v5629, %v5629
        %v6078 = vpack.c.b16 %v5630, %v5630
        %v6079 = vpack.c.b16 %v5631, %v5631
        %v6080 = vpack.c.b16 %v5632, %v5632
        %v6081 = vpack.c.b16 %v5633, %v5633
        %v6082 = vpack.c.b16 %v5634, %v5634
        %v6083 = vpack.c.b16 %v5635, %v5635
        %v6084 = vpack.c.b16 %v5636, %v5636
        %v6085 = vpack.c.b16 %v5637, %v5637
        %v6086 = vpack.c.b16 %v5638, %v5638
        %v6087 = vpack.c.b16 %v5639, %v5639
        %v6088 = vpack.c.b16 %v5640, %v5640
        %v6089 = vpack.c.b16 %v5641, %v5641
        %v6090 = vpack.c.b16 %v5642, %v5642
        %v6091 = vpack.c.b16 %v5643, %v5643
        %v6092 = vpack.c.b16 %v5644, %v5644
        %v6093 = vpack.c.b16 %v5645, %v5645
        %v6094 = vpack.c.b16 %v5646, %v5646
        %v6095 = vpack.c.b16 %v5647, %v5647
        %v6096 = vpack.c.b16 %v5648, %v5648
        %v6097 = vpack.c.b16 %v5649, %v5649
        %v6098 = vpack.c.b16 %v5650, %v5650
        %v6099 = vpack.c.b16 %v5651, %v5651
        %v6100 = vpack.c.b16 %v5652, %v5652
        %v6101 = vpack.c.b16 %v5653, %v5653
        %v6102 = vpack.c.b16 %v5654, %v5654
        %v6103 = vpack.c.b16 %v5655, %v5655
        %v6104 = vpack.c.b16 %v5656, %v5656
        %v6105 = vpack.c.b16 %v5657, %v5657
        %v6106 = vpack.c.b16 %v5658, %v5658
        %v6107 = vpack.c.b16 %v5659, %v5659
        %v6108 = vpack.c.b16 %v5660, %v5660
        %v6109 = vpack.c.b16 %v5661, %v5661
        %v6110 = vpack.c.b16 %v5662, %v5662
        %v6111 = vpack.c.b16 %v5663, %v5663
        %v6112 = vpack.c.b16 %v5664, %v5664
        %v6113 = vpack.c.b16 %v5665, %v5665
        %v6114 = vpack.c.b16 %v5666, %v5666
        %v6115 = vpack.c.b16 %v5667, %v5667
        %v6116 = vpack.c.b16 %v5668, %v5668
        %v6117 = vpack.c.b16 %v5669, %v5669
        %v6118 = vpack.c.b16 %v5670, %v5670
        %v6119 = vpack.c.b16 %v5671, %v5671
        %v6120 = vpack.c.b16 %v5672, %v5672
        %v6121 = vpack.c.b16 %v5673, %v5673
        %v6122 = vpack.c.b16 %v5674, %v5674
        %v6123 = vpack.c.b16 %v5675, %v5675
        %v6124 = vpack.c.b16 %v5676, %v5676
        %v6125 = vpack.c.b16 %v5677, %v5677
        %v6126 = vpack.c.b16 %v5678, %v5678
        %v6127 = vpack.c.b16 %v5679, %v5679
        %v6128 = vpack.c.b16 %v5680, %v5680
        %v6129 = vpack.c.b16 %v5681, %v5681
        %v6130 = vpack.c.b16 %v5682, %v5682
        %v6131 = vpack.c.b16 %v5683, %v5683
        %vm6580 = vcmask 519168
        %6581 = vst.msk [vmem:[%s242] sm:$0xf] %vm6580, %v5684
        %6582 = vst.msk [vmem:[%s242 + $0x4] sm:$0xf] %vm6580, %v5685
        %6583 = vst.msk [vmem:[%s242 + $0x8] sm:$0xf] %vm6580, %v5686
        %6584 = vst.msk [vmem:[%s242 + $0xc] sm:$0xf] %vm6580, %v5687
        %6585 = vst.msk [vmem:[%s242 + $0x10] sm:$0xf] %vm6580, %v5688
        %6586 = vst.msk [vmem:[%s242 + $0x14] sm:$0xf] %vm6580, %v5689
        %6587 = vst.msk [vmem:[%s242 + $0x18] sm:$0xf] %vm6580, %v5690
        %6588 = vst.msk [vmem:[%s242 + $0x1c] sm:$0xf] %vm6580, %v5691
        %6589 = vst.msk [vmem:[%s242 + $0x20] sm:$0xf] %vm6580, %v5692
        %6590 = vst.msk [vmem:[%s242 + $0x24] sm:$0xf] %vm6580, %v5693
        %6591 = vst.msk [vmem:[%s242 + $0x28] sm:$0xf] %vm6580, %v5694
        %6592 = vst.msk [vmem:[%s242 + $0x2c] sm:$0xf] %vm6580, %v5695
        %6593 = vst.msk [vmem:[%s242 + $0x30] sm:$0xf] %vm6580, %v5696
        %6594 = vst.msk [vmem:[%s242 + $0x34] sm:$0xf] %vm6580, %v5697
        %6595 = vst.msk [vmem:[%s242 + $0x38] sm:$0xf] %vm6580, %v5698
        %6596 = vst.msk [vmem:[%s242 + $0x3c] sm:$0xf] %vm6580, %v5699
        %6597 = vst.msk [vmem:[%s242 + $0x40] sm:$0xf] %vm6580, %v5700
        %6598 = vst.msk [vmem:[%s242 + $0x44] sm:$0xf] %vm6580, %v5701
        %6599 = vst.msk [vmem:[%s242 + $0x48] sm:$0xf] %vm6580, %v5702
        %6600 = vst.msk [vmem:[%s242 + $0x4c] sm:$0xf] %vm6580, %v5703
        %6601 = vst.msk [vmem:[%s242 + $0x50] sm:$0xf] %vm6580, %v5704
        %6602 = vst.msk [vmem:[%s242 + $0x54] sm:$0xf] %vm6580, %v5705
        %6603 = vst.msk [vmem:[%s242 + $0x58] sm:$0xf] %vm6580, %v5706
        %6604 = vst.msk [vmem:[%s242 + $0x5c] sm:$0xf] %vm6580, %v5707
        %6605 = vst.msk [vmem:[%s242 + $0x60] sm:$0xf] %vm6580, %v5708
        %6606 = vst.msk [vmem:[%s242 + $0x64] sm:$0xf] %vm6580, %v5709
        %6607 = vst.msk [vmem:[%s242 + $0x68] sm:$0xf] %vm6580, %v5710
        %6608 = vst.msk [vmem:[%s242 + $0x6c] sm:$0xf] %vm6580, %v5711
        %6609 = vst.msk [vmem:[%s242 + $0x70] sm:$0xf] %vm6580, %v5712
        %6610 = vst.msk [vmem:[%s242 + $0x74] sm:$0xf] %vm6580, %v5713
        %6611 = vst.msk [vmem:[%s242 + $0x78] sm:$0xf] %vm6580, %v5714
        %6612 = vst.msk [vmem:[%s242 + $0x7c] sm:$0xf] %vm6580, %v5715
        %6613 = vst.msk [vmem:[%s242 + $0x80] sm:$0xf] %vm6580, %v5716
        %6614 = vst.msk [vmem:[%s242 + $0x84] sm:$0xf] %vm6580, %v5717
        %6615 = vst.msk [vmem:[%s242 + $0x88] sm:$0xf] %vm6580, %v5718
        %6616 = vst.msk [vmem:[%s242 + $0x8c] sm:$0xf] %vm6580, %v5719
        %6617 = vst.msk [vmem:[%s242 + $0x90] sm:$0xf] %vm6580, %v5720
        %6618 = vst.msk [vmem:[%s242 + $0x94] sm:$0xf] %vm6580, %v5721
        %6619 = vst.msk [vmem:[%s242 + $0x98] sm:$0xf] %vm6580, %v5722
        %6620 = vst.msk [vmem:[%s242 + $0x9c] sm:$0xf] %vm6580, %v5723
        %6621 = vst.msk [vmem:[%s242 + $0xa0] sm:$0xf] %vm6580, %v5724
        %6622 = vst.msk [vmem:[%s242 + $0xa4] sm:$0xf] %vm6580, %v5725
        %6623 = vst.msk [vmem:[%s242 + $0xa8] sm:$0xf] %vm6580, %v5726
        %6624 = vst.msk [vmem:[%s242 + $0xac] sm:$0xf] %vm6580, %v5727
        %6625 = vst.msk [vmem:[%s242 + $0xb0] sm:$0xf] %vm6580, %v5728
        %6626 = vst.msk [vmem:[%s242 + $0xb4] sm:$0xf] %vm6580, %v5729
        %6627 = vst.msk [vmem:[%s242 + $0xb8] sm:$0xf] %vm6580, %v5730
        %6628 = vst.msk [vmem:[%s242 + $0xbc] sm:$0xf] %vm6580, %v5731
        %6629 = vst.msk [vmem:[%s242 + $0xc0] sm:$0xf] %vm6580, %v5732
        %6630 = vst.msk [vmem:[%s242 + $0xc4] sm:$0xf] %vm6580, %v5733
        %6631 = vst.msk [vmem:[%s242 + $0xc8] sm:$0xf] %vm6580, %v5734
        %6632 = vst.msk [vmem:[%s242 + $0xcc] sm:$0xf] %vm6580, %v5735
        %6633 = vst.msk [vmem:[%s242 + $0xd0] sm:$0xf] %vm6580, %v5736
        %6634 = vst.msk [vmem:[%s242 + $0xd4] sm:$0xf] %vm6580, %v5737
        %6635 = vst.msk [vmem:[%s242 + $0xd8] sm:$0xf] %vm6580, %v5738
        %6636 = vst.msk [vmem:[%s242 + $0xdc] sm:$0xf] %vm6580, %v5739
        %6637 = vst.msk [vmem:[%s242 + $0xe0] sm:$0xf] %vm6580, %v5740
        %6638 = vst.msk [vmem:[%s242 + $0xe4] sm:$0xf] %vm6580, %v5741
        %6639 = vst.msk [vmem:[%s242 + $0xe8] sm:$0xf] %vm6580, %v5742
        %6640 = vst.msk [vmem:[%s242 + $0xec] sm:$0xf] %vm6580, %v5743
        %6641 = vst.msk [vmem:[%s242 + $0xf0] sm:$0xf] %vm6580, %v5744
        %6642 = vst.msk [vmem:[%s242 + $0xf4] sm:$0xf] %vm6580, %v5745
        %6643 = vst.msk [vmem:[%s242 + $0xf8] sm:$0xf] %vm6580, %v5746
        %6644 = vst.msk [vmem:[%s242 + $0xfc] sm:$0xf] %vm6580, %v5747
        %6645 = vst.msk [vmem:[%s242 + $0x100] sm:$0xf] %vm6580, %v5748
        %6646 = vst.msk [vmem:[%s242 + $0x104] sm:$0xf] %vm6580, %v5749
        %6647 = vst.msk [vmem:[%s242 + $0x108] sm:$0xf] %vm6580, %v5750
        %6648 = vst.msk [vmem:[%s242 + $0x10c] sm:$0xf] %vm6580, %v5751
        %6649 = vst.msk [vmem:[%s242 + $0x110] sm:$0xf] %vm6580, %v5752
        %6650 = vst.msk [vmem:[%s242 + $0x114] sm:$0xf] %vm6580, %v5753
        %6651 = vst.msk [vmem:[%s242 + $0x118] sm:$0xf] %vm6580, %v5754
        %6652 = vst.msk [vmem:[%s242 + $0x11c] sm:$0xf] %vm6580, %v5755
        %6653 = vst.msk [vmem:[%s242 + $0x120] sm:$0xf] %vm6580, %v5756
        %6654 = vst.msk [vmem:[%s242 + $0x124] sm:$0xf] %vm6580, %v5757
        %6655 = vst.msk [vmem:[%s242 + $0x128] sm:$0xf] %vm6580, %v5758
        %6656 = vst.msk [vmem:[%s242 + $0x12c] sm:$0xf] %vm6580, %v5759
        %6657 = vst.msk [vmem:[%s242 + $0x130] sm:$0xf] %vm6580, %v5760
        %6658 = vst.msk [vmem:[%s242 + $0x134] sm:$0xf] %vm6580, %v5761
        %6659 = vst.msk [vmem:[%s242 + $0x138] sm:$0xf] %vm6580, %v5762
        %6660 = vst.msk [vmem:[%s242 + $0x13c] sm:$0xf] %vm6580, %v5763
        %6661 = vst.msk [vmem:[%s242 + $0x140] sm:$0xf] %vm6580, %v5764
        %6662 = vst.msk [vmem:[%s242 + $0x144] sm:$0xf] %vm6580, %v5765
        %6663 = vst.msk [vmem:[%s242 + $0x148] sm:$0xf] %vm6580, %v5766
        %6664 = vst.msk [vmem:[%s242 + $0x14c] sm:$0xf] %vm6580, %v5767
        %6665 = vst.msk [vmem:[%s242 + $0x150] sm:$0xf] %vm6580, %v5768
        %6666 = vst.msk [vmem:[%s242 + $0x154] sm:$0xf] %vm6580, %v5769
        %6667 = vst.msk [vmem:[%s242 + $0x158] sm:$0xf] %vm6580, %v5770
        %6668 = vst.msk [vmem:[%s242 + $0x15c] sm:$0xf] %vm6580, %v5771
        %6669 = vst.msk [vmem:[%s242 + $0x160] sm:$0xf] %vm6580, %v5772
        %6670 = vst.msk [vmem:[%s242 + $0x164] sm:$0xf] %vm6580, %v5773
        %6671 = vst.msk [vmem:[%s242 + $0x168] sm:$0xf] %vm6580, %v5774
        %6672 = vst.msk [vmem:[%s242 + $0x16c] sm:$0xf] %vm6580, %v5775
        %6673 = vst.msk [vmem:[%s242 + $0x170] sm:$0xf] %vm6580, %v5776
        %6674 = vst.msk [vmem:[%s242 + $0x174] sm:$0xf] %vm6580, %v5777
        %6675 = vst.msk [vmem:[%s242 + $0x178] sm:$0xf] %vm6580, %v5778
        %6676 = vst.msk [vmem:[%s242 + $0x17c] sm:$0xf] %vm6580, %v5779
        %6677 = vst.msk [vmem:[%s242 + $0x180] sm:$0xf] %vm6580, %v5780
        %6678 = vst.msk [vmem:[%s242 + $0x184] sm:$0xf] %vm6580, %v5781
        %6679 = vst.msk [vmem:[%s242 + $0x188] sm:$0xf] %vm6580, %v5782
        %6680 = vst.msk [vmem:[%s242 + $0x18c] sm:$0xf] %vm6580, %v5783
        %6681 = vst.msk [vmem:[%s242 + $0x190] sm:$0xf] %vm6580, %v5784
        %6682 = vst.msk [vmem:[%s242 + $0x194] sm:$0xf] %vm6580, %v5785
        %6683 = vst.msk [vmem:[%s242 + $0x198] sm:$0xf] %vm6580, %v5786
        %6684 = vst.msk [vmem:[%s242 + $0x19c] sm:$0xf] %vm6580, %v5787
        %6685 = vst.msk [vmem:[%s242 + $0x1a0] sm:$0xf] %vm6580, %v5788
        %6686 = vst.msk [vmem:[%s242 + $0x1a4] sm:$0xf] %vm6580, %v5789
        %6687 = vst.msk [vmem:[%s242 + $0x1a8] sm:$0xf] %vm6580, %v5790
        %6688 = vst.msk [vmem:[%s242 + $0x1ac] sm:$0xf] %vm6580, %v5791
        %6689 = vst.msk [vmem:[%s242 + $0x1b0] sm:$0xf] %vm6580, %v5792
        %6690 = vst.msk [vmem:[%s242 + $0x1b4] sm:$0xf] %vm6580, %v5793
        %6691 = vst.msk [vmem:[%s242 + $0x1b8] sm:$0xf] %vm6580, %v5794
        %6692 = vst.msk [vmem:[%s242 + $0x1bc] sm:$0xf] %vm6580, %v5795
        %6693 = vst.msk [vmem:[%s242 + $0x1c0] sm:$0xf] %vm6580, %v5796
        %6694 = vst.msk [vmem:[%s242 + $0x1c4] sm:$0xf] %vm6580, %v5797
        %6695 = vst.msk [vmem:[%s242 + $0x1c8] sm:$0xf] %vm6580, %v5798
        %6696 = vst.msk [vmem:[%s242 + $0x1cc] sm:$0xf] %vm6580, %v5799
        %6697 = vst.msk [vmem:[%s242 + $0x1d0] sm:$0xf] %vm6580, %v5800
        %6698 = vst.msk [vmem:[%s242 + $0x1d4] sm:$0xf] %vm6580, %v5801
        %6699 = vst.msk [vmem:[%s242 + $0x1d8] sm:$0xf] %vm6580, %v5802
        %6700 = vst.msk [vmem:[%s242 + $0x1dc] sm:$0xf] %vm6580, %v5803
        %6701 = vst.msk [vmem:[%s242 + $0x1e0] sm:$0xf] %vm6580, %v5804
        %6702 = vst.msk [vmem:[%s242 + $0x1e4] sm:$0xf] %vm6580, %v5805
        %6703 = vst.msk [vmem:[%s242 + $0x1e8] sm:$0xf] %vm6580, %v5806
        %6704 = vst.msk [vmem:[%s242 + $0x1ec] sm:$0xf] %vm6580, %v5807
        %6705 = vst.msk [vmem:[%s242 + $0x1f0] sm:$0xf] %vm6580, %v5808
        %6706 = vst.msk [vmem:[%s242 + $0x1f4] sm:$0xf] %vm6580, %v5809
        %6707 = vst.msk [vmem:[%s242 + $0x1f8] sm:$0xf] %vm6580, %v5810
        %6708 = vst.msk [vmem:[%s242 + $0x1fc] sm:$0xf] %vm6580, %v5811
        %6709 = vst.msk [vmem:[%s242 + $0x200] sm:$0xf] %vm6580, %v5812
        %6710 = vst.msk [vmem:[%s242 + $0x204] sm:$0xf] %vm6580, %v5813
        %6711 = vst.msk [vmem:[%s242 + $0x208] sm:$0xf] %vm6580, %v5814
        %6712 = vst.msk [vmem:[%s242 + $0x20c] sm:$0xf] %vm6580, %v5815
        %6713 = vst.msk [vmem:[%s242 + $0x210] sm:$0xf] %vm6580, %v5816
        %6714 = vst.msk [vmem:[%s242 + $0x214] sm:$0xf] %vm6580, %v5817
        %6715 = vst.msk [vmem:[%s242 + $0x218] sm:$0xf] %vm6580, %v5818
        %6716 = vst.msk [vmem:[%s242 + $0x21c] sm:$0xf] %vm6580, %v5819
        %6717 = vst.msk [vmem:[%s242 + $0x220] sm:$0xf] %vm6580, %v5820
        %6718 = vst.msk [vmem:[%s242 + $0x224] sm:$0xf] %vm6580, %v5821
        %6719 = vst.msk [vmem:[%s242 + $0x228] sm:$0xf] %vm6580, %v5822
        %6720 = vst.msk [vmem:[%s242 + $0x22c] sm:$0xf] %vm6580, %v5823
        %6721 = vst.msk [vmem:[%s242 + $0x230] sm:$0xf] %vm6580, %v5824
        %6722 = vst.msk [vmem:[%s242 + $0x234] sm:$0xf] %vm6580, %v5825
        %6723 = vst.msk [vmem:[%s242 + $0x238] sm:$0xf] %vm6580, %v5826
        %6724 = vst.msk [vmem:[%s242 + $0x23c] sm:$0xf] %vm6580, %v5827
        %6725 = vst.msk [vmem:[%s242 + $0x240] sm:$0xf] %vm6580, %v5828
        %6726 = vst.msk [vmem:[%s242 + $0x244] sm:$0xf] %vm6580, %v5829
        %6727 = vst.msk [vmem:[%s242 + $0x248] sm:$0xf] %vm6580, %v5830
        %6728 = vst.msk [vmem:[%s242 + $0x24c] sm:$0xf] %vm6580, %v5831
        %6729 = vst.msk [vmem:[%s242 + $0x250] sm:$0xf] %vm6580, %v5832
        %6730 = vst.msk [vmem:[%s242 + $0x254] sm:$0xf] %vm6580, %v5833
        %6731 = vst.msk [vmem:[%s242 + $0x258] sm:$0xf] %vm6580, %v5834
        %6732 = vst.msk [vmem:[%s242 + $0x25c] sm:$0xf] %vm6580, %v5835
        %6733 = vst.msk [vmem:[%s242 + $0x260] sm:$0xf] %vm6580, %v5836
        %6734 = vst.msk [vmem:[%s242 + $0x264] sm:$0xf] %vm6580, %v5837
        %6735 = vst.msk [vmem:[%s242 + $0x268] sm:$0xf] %vm6580, %v5838
        %6736 = vst.msk [vmem:[%s242 + $0x26c] sm:$0xf] %vm6580, %v5839
        %6737 = vst.msk [vmem:[%s242 + $0x270] sm:$0xf] %vm6580, %v5840
        %6738 = vst.msk [vmem:[%s242 + $0x274] sm:$0xf] %vm6580, %v5841
        %6739 = vst.msk [vmem:[%s242 + $0x278] sm:$0xf] %vm6580, %v5842
        %6740 = vst.msk [vmem:[%s242 + $0x27c] sm:$0xf] %vm6580, %v5843
        %6741 = vst.msk [vmem:[%s242 + $0x280] sm:$0xf] %vm6580, %v5844
        %6742 = vst.msk [vmem:[%s242 + $0x284] sm:$0xf] %vm6580, %v5845
        %6743 = vst.msk [vmem:[%s242 + $0x288] sm:$0xf] %vm6580, %v5846
        %6744 = vst.msk [vmem:[%s242 + $0x28c] sm:$0xf] %vm6580, %v5847
        %6745 = vst.msk [vmem:[%s242 + $0x290] sm:$0xf] %vm6580, %v5848
        %6746 = vst.msk [vmem:[%s242 + $0x294] sm:$0xf] %vm6580, %v5849
        %6747 = vst.msk [vmem:[%s242 + $0x298] sm:$0xf] %vm6580, %v5850
        %6748 = vst.msk [vmem:[%s242 + $0x29c] sm:$0xf] %vm6580, %v5851
        %6749 = vst.msk [vmem:[%s242 + $0x2a0] sm:$0xf] %vm6580, %v5852
        %6750 = vst.msk [vmem:[%s242 + $0x2a4] sm:$0xf] %vm6580, %v5853
        %6751 = vst.msk [vmem:[%s242 + $0x2a8] sm:$0xf] %vm6580, %v5854
        %6752 = vst.msk [vmem:[%s242 + $0x2ac] sm:$0xf] %vm6580, %v5855
        %6753 = vst.msk [vmem:[%s242 + $0x2b0] sm:$0xf] %vm6580, %v5856
        %6754 = vst.msk [vmem:[%s242 + $0x2b4] sm:$0xf] %vm6580, %v5857
        %6755 = vst.msk [vmem:[%s242 + $0x2b8] sm:$0xf] %vm6580, %v5858
        %6756 = vst.msk [vmem:[%s242 + $0x2bc] sm:$0xf] %vm6580, %v5859
        %6757 = vst.msk [vmem:[%s242 + $0x2c0] sm:$0xf] %vm6580, %v5860
        %6758 = vst.msk [vmem:[%s242 + $0x2c4] sm:$0xf] %vm6580, %v5861
        %6759 = vst.msk [vmem:[%s242 + $0x2c8] sm:$0xf] %vm6580, %v5862
        %6760 = vst.msk [vmem:[%s242 + $0x2cc] sm:$0xf] %vm6580, %v5863
        %6761 = vst.msk [vmem:[%s242 + $0x2d0] sm:$0xf] %vm6580, %v5864
        %6762 = vst.msk [vmem:[%s242 + $0x2d4] sm:$0xf] %vm6580, %v5865
        %6763 = vst.msk [vmem:[%s242 + $0x2d8] sm:$0xf] %vm6580, %v5866
        %6764 = vst.msk [vmem:[%s242 + $0x2dc] sm:$0xf] %vm6580, %v5867
        %6765 = vst.msk [vmem:[%s242 + $0x2e0] sm:$0xf] %vm6580, %v5868
        %6766 = vst.msk [vmem:[%s242 + $0x2e4] sm:$0xf] %vm6580, %v5869
        %6767 = vst.msk [vmem:[%s242 + $0x2e8] sm:$0xf] %vm6580, %v5870
        %6768 = vst.msk [vmem:[%s242 + $0x2ec] sm:$0xf] %vm6580, %v5871
        %6769 = vst.msk [vmem:[%s242 + $0x2f0] sm:$0xf] %vm6580, %v5872
        %6770 = vst.msk [vmem:[%s242 + $0x2f4] sm:$0xf] %vm6580, %v5873
        %6771 = vst.msk [vmem:[%s242 + $0x2f8] sm:$0xf] %vm6580, %v5874
        %6772 = vst.msk [vmem:[%s242 + $0x2fc] sm:$0xf] %vm6580, %v5875
        %6773 = vst.msk [vmem:[%s242 + $0x300] sm:$0xf] %vm6580, %v5876
        %6774 = vst.msk [vmem:[%s242 + $0x304] sm:$0xf] %vm6580, %v5877
        %6775 = vst.msk [vmem:[%s242 + $0x308] sm:$0xf] %vm6580, %v5878
        %6776 = vst.msk [vmem:[%s242 + $0x30c] sm:$0xf] %vm6580, %v5879
        %6777 = vst.msk [vmem:[%s242 + $0x310] sm:$0xf] %vm6580, %v5880
        %6778 = vst.msk [vmem:[%s242 + $0x314] sm:$0xf] %vm6580, %v5881
        %6779 = vst.msk [vmem:[%s242 + $0x318] sm:$0xf] %vm6580, %v5882
        %6780 = vst.msk [vmem:[%s242 + $0x31c] sm:$0xf] %vm6580, %v5883
        %6781 = vst.msk [vmem:[%s242 + $0x320] sm:$0xf] %vm6580, %v5884
        %6782 = vst.msk [vmem:[%s242 + $0x324] sm:$0xf] %vm6580, %v5885
        %6783 = vst.msk [vmem:[%s242 + $0x328] sm:$0xf] %vm6580, %v5886
        %6784 = vst.msk [vmem:[%s242 + $0x32c] sm:$0xf] %vm6580, %v5887
        %6785 = vst.msk [vmem:[%s242 + $0x330] sm:$0xf] %vm6580, %v5888
        %6786 = vst.msk [vmem:[%s242 + $0x334] sm:$0xf] %vm6580, %v5889
        %6787 = vst.msk [vmem:[%s242 + $0x338] sm:$0xf] %vm6580, %v5890
        %6788 = vst.msk [vmem:[%s242 + $0x33c] sm:$0xf] %vm6580, %v5891
        %6789 = vst.msk [vmem:[%s242 + $0x340] sm:$0xf] %vm6580, %v5892
        %6790 = vst.msk [vmem:[%s242 + $0x344] sm:$0xf] %vm6580, %v5893
        %6791 = vst.msk [vmem:[%s242 + $0x348] sm:$0xf] %vm6580, %v5894
        %6792 = vst.msk [vmem:[%s242 + $0x34c] sm:$0xf] %vm6580, %v5895
        %6793 = vst.msk [vmem:[%s242 + $0x350] sm:$0xf] %vm6580, %v5896
        %6794 = vst.msk [vmem:[%s242 + $0x354] sm:$0xf] %vm6580, %v5897
        %6795 = vst.msk [vmem:[%s242 + $0x358] sm:$0xf] %vm6580, %v5898
        %6796 = vst.msk [vmem:[%s242 + $0x35c] sm:$0xf] %vm6580, %v5899
        %6797 = vst.msk [vmem:[%s242 + $0x360] sm:$0xf] %vm6580, %v5900
        %6798 = vst.msk [vmem:[%s242 + $0x364] sm:$0xf] %vm6580, %v5901
        %6799 = vst.msk [vmem:[%s242 + $0x368] sm:$0xf] %vm6580, %v5902
        %6800 = vst.msk [vmem:[%s242 + $0x36c] sm:$0xf] %vm6580, %v5903
        %6801 = vst.msk [vmem:[%s242 + $0x370] sm:$0xf] %vm6580, %v5904
        %6802 = vst.msk [vmem:[%s242 + $0x374] sm:$0xf] %vm6580, %v5905
        %6803 = vst.msk [vmem:[%s242 + $0x378] sm:$0xf] %vm6580, %v5906
        %6804 = vst.msk [vmem:[%s242 + $0x37c] sm:$0xf] %vm6580, %v5907
        %6805 = vst.msk [vmem:[%s242 + $0x380] sm:$0xf] %vm6580, %v5908
        %6806 = vst.msk [vmem:[%s242 + $0x384] sm:$0xf] %vm6580, %v5909
        %6807 = vst.msk [vmem:[%s242 + $0x388] sm:$0xf] %vm6580, %v5910
        %6808 = vst.msk [vmem:[%s242 + $0x38c] sm:$0xf] %vm6580, %v5911
        %6809 = vst.msk [vmem:[%s242 + $0x390] sm:$0xf] %vm6580, %v5912
        %6810 = vst.msk [vmem:[%s242 + $0x394] sm:$0xf] %vm6580, %v5913
        %6811 = vst.msk [vmem:[%s242 + $0x398] sm:$0xf] %vm6580, %v5914
        %6812 = vst.msk [vmem:[%s242 + $0x39c] sm:$0xf] %vm6580, %v5915
        %6813 = vst.msk [vmem:[%s242 + $0x3a0] sm:$0xf] %vm6580, %v5916
        %6814 = vst.msk [vmem:[%s242 + $0x3a4] sm:$0xf] %vm6580, %v5917
        %6815 = vst.msk [vmem:[%s242 + $0x3a8] sm:$0xf] %vm6580, %v5918
        %6816 = vst.msk [vmem:[%s242 + $0x3ac] sm:$0xf] %vm6580, %v5919
        %6817 = vst.msk [vmem:[%s242 + $0x3b0] sm:$0xf] %vm6580, %v5920
        %6818 = vst.msk [vmem:[%s242 + $0x3b4] sm:$0xf] %vm6580, %v5921
        %6819 = vst.msk [vmem:[%s242 + $0x3b8] sm:$0xf] %vm6580, %v5922
        %6820 = vst.msk [vmem:[%s242 + $0x3bc] sm:$0xf] %vm6580, %v5923
        %6821 = vst.msk [vmem:[%s242 + $0x3c0] sm:$0xf] %vm6580, %v5924
        %6822 = vst.msk [vmem:[%s242 + $0x3c4] sm:$0xf] %vm6580, %v5925
        %6823 = vst.msk [vmem:[%s242 + $0x3c8] sm:$0xf] %vm6580, %v5926
        %6824 = vst.msk [vmem:[%s242 + $0x3cc] sm:$0xf] %vm6580, %v5927
        %6825 = vst.msk [vmem:[%s242 + $0x3d0] sm:$0xf] %vm6580, %v5928
        %6826 = vst.msk [vmem:[%s242 + $0x3d4] sm:$0xf] %vm6580, %v5929
        %6827 = vst.msk [vmem:[%s242 + $0x3d8] sm:$0xf] %vm6580, %v5930
        %6828 = vst.msk [vmem:[%s242 + $0x3dc] sm:$0xf] %vm6580, %v5931
        %6829 = vst.msk [vmem:[%s242 + $0x3e0] sm:$0xf] %vm6580, %v5932
        %6830 = vst.msk [vmem:[%s242 + $0x3e4] sm:$0xf] %vm6580, %v5933
        %6831 = vst.msk [vmem:[%s242 + $0x3e8] sm:$0xf] %vm6580, %v5934
        %6832 = vst.msk [vmem:[%s242 + $0x3ec] sm:$0xf] %vm6580, %v5935
        %6833 = vst.msk [vmem:[%s242 + $0x3f0] sm:$0xf] %vm6580, %v5936
        %6834 = vst.msk [vmem:[%s242 + $0x3f4] sm:$0xf] %vm6580, %v5937
        %6835 = vst.msk [vmem:[%s242 + $0x3f8] sm:$0xf] %vm6580, %v5938
        %6836 = vst.msk [vmem:[%s242 + $0x3fc] sm:$0xf] %vm6580, %v5939
        %6837 = vst.msk [vmem:[%s242 + $0x400] sm:$0xf] %vm6580, %v5940
        %6838 = vst.msk [vmem:[%s242 + $0x404] sm:$0xf] %vm6580, %v5941
        %6839 = vst.msk [vmem:[%s242 + $0x408] sm:$0xf] %vm6580, %v5942
        %6840 = vst.msk [vmem:[%s242 + $0x40c] sm:$0xf] %vm6580, %v5943
        %6841 = vst.msk [vmem:[%s242 + $0x410] sm:$0xf] %vm6580, %v5944
        %6842 = vst.msk [vmem:[%s242 + $0x414] sm:$0xf] %vm6580, %v5945
        %6843 = vst.msk [vmem:[%s242 + $0x418] sm:$0xf] %vm6580, %v5946
        %6844 = vst.msk [vmem:[%s242 + $0x41c] sm:$0xf] %vm6580, %v5947
        %6845 = vst.msk [vmem:[%s242 + $0x420] sm:$0xf] %vm6580, %v5948
        %6846 = vst.msk [vmem:[%s242 + $0x424] sm:$0xf] %vm6580, %v5949
        %6847 = vst.msk [vmem:[%s242 + $0x428] sm:$0xf] %vm6580, %v5950
        %6848 = vst.msk [vmem:[%s242 + $0x42c] sm:$0xf] %vm6580, %v5951
        %6849 = vst.msk [vmem:[%s242 + $0x430] sm:$0xf] %vm6580, %v5952
        %6850 = vst.msk [vmem:[%s242 + $0x434] sm:$0xf] %vm6580, %v5953
        %6851 = vst.msk [vmem:[%s242 + $0x438] sm:$0xf] %vm6580, %v5954
        %6852 = vst.msk [vmem:[%s242 + $0x43c] sm:$0xf] %vm6580, %v5955
        %6853 = vst.msk [vmem:[%s242 + $0x440] sm:$0xf] %vm6580, %v5956
        %6854 = vst.msk [vmem:[%s242 + $0x444] sm:$0xf] %vm6580, %v5957
        %6855 = vst.msk [vmem:[%s242 + $0x448] sm:$0xf] %vm6580, %v5958
        %6856 = vst.msk [vmem:[%s242 + $0x44c] sm:$0xf] %vm6580, %v5959
        %6857 = vst.msk [vmem:[%s242 + $0x450] sm:$0xf] %vm6580, %v5960
        %6858 = vst.msk [vmem:[%s242 + $0x454] sm:$0xf] %vm6580, %v5961
        %6859 = vst.msk [vmem:[%s242 + $0x458] sm:$0xf] %vm6580, %v5962
        %6860 = vst.msk [vmem:[%s242 + $0x45c] sm:$0xf] %vm6580, %v5963
        %6861 = vst.msk [vmem:[%s242 + $0x460] sm:$0xf] %vm6580, %v5964
        %6862 = vst.msk [vmem:[%s242 + $0x464] sm:$0xf] %vm6580, %v5965
        %6863 = vst.msk [vmem:[%s242 + $0x468] sm:$0xf] %vm6580, %v5966
        %6864 = vst.msk [vmem:[%s242 + $0x46c] sm:$0xf] %vm6580, %v5967
        %6865 = vst.msk [vmem:[%s242 + $0x470] sm:$0xf] %vm6580, %v5968
        %6866 = vst.msk [vmem:[%s242 + $0x474] sm:$0xf] %vm6580, %v5969
        %6867 = vst.msk [vmem:[%s242 + $0x478] sm:$0xf] %vm6580, %v5970
        %6868 = vst.msk [vmem:[%s242 + $0x47c] sm:$0xf] %vm6580, %v5971
        %6869 = vst.msk [vmem:[%s242 + $0x480] sm:$0xf] %vm6580, %v5972
        %6870 = vst.msk [vmem:[%s242 + $0x484] sm:$0xf] %vm6580, %v5973
        %6871 = vst.msk [vmem:[%s242 + $0x488] sm:$0xf] %vm6580, %v5974
        %6872 = vst.msk [vmem:[%s242 + $0x48c] sm:$0xf] %vm6580, %v5975
        %6873 = vst.msk [vmem:[%s242 + $0x490] sm:$0xf] %vm6580, %v5976
        %6874 = vst.msk [vmem:[%s242 + $0x494] sm:$0xf] %vm6580, %v5977
        %6875 = vst.msk [vmem:[%s242 + $0x498] sm:$0xf] %vm6580, %v5978
        %6876 = vst.msk [vmem:[%s242 + $0x49c] sm:$0xf] %vm6580, %v5979
        %6877 = vst.msk [vmem:[%s242 + $0x4a0] sm:$0xf] %vm6580, %v5980
        %6878 = vst.msk [vmem:[%s242 + $0x4a4] sm:$0xf] %vm6580, %v5981
        %6879 = vst.msk [vmem:[%s242 + $0x4a8] sm:$0xf] %vm6580, %v5982
        %6880 = vst.msk [vmem:[%s242 + $0x4ac] sm:$0xf] %vm6580, %v5983
        %6881 = vst.msk [vmem:[%s242 + $0x4b0] sm:$0xf] %vm6580, %v5984
        %6882 = vst.msk [vmem:[%s242 + $0x4b4] sm:$0xf] %vm6580, %v5985
        %6883 = vst.msk [vmem:[%s242 + $0x4b8] sm:$0xf] %vm6580, %v5986
        %6884 = vst.msk [vmem:[%s242 + $0x4bc] sm:$0xf] %vm6580, %v5987
        %6885 = vst.msk [vmem:[%s242 + $0x4c0] sm:$0xf] %vm6580, %v5988
        %6886 = vst.msk [vmem:[%s242 + $0x4c4] sm:$0xf] %vm6580, %v5989
        %6887 = vst.msk [vmem:[%s242 + $0x4c8] sm:$0xf] %vm6580, %v5990
        %6888 = vst.msk [vmem:[%s242 + $0x4cc] sm:$0xf] %vm6580, %v5991
        %6889 = vst.msk [vmem:[%s242 + $0x4d0] sm:$0xf] %vm6580, %v5992
        %6890 = vst.msk [vmem:[%s242 + $0x4d4] sm:$0xf] %vm6580, %v5993
        %6891 = vst.msk [vmem:[%s242 + $0x4d8] sm:$0xf] %vm6580, %v5994
        %6892 = vst.msk [vmem:[%s242 + $0x4dc] sm:$0xf] %vm6580, %v5995
        %6893 = vst.msk [vmem:[%s242 + $0x4e0] sm:$0xf] %vm6580, %v5996
        %6894 = vst.msk [vmem:[%s242 + $0x4e4] sm:$0xf] %vm6580, %v5997
        %6895 = vst.msk [vmem:[%s242 + $0x4e8] sm:$0xf] %vm6580, %v5998
        %6896 = vst.msk [vmem:[%s242 + $0x4ec] sm:$0xf] %vm6580, %v5999
        %6897 = vst.msk [vmem:[%s242 + $0x4f0] sm:$0xf] %vm6580, %v6000
        %6898 = vst.msk [vmem:[%s242 + $0x4f4] sm:$0xf] %vm6580, %v6001
        %6899 = vst.msk [vmem:[%s242 + $0x4f8] sm:$0xf] %vm6580, %v6002
        %6900 = vst.msk [vmem:[%s242 + $0x4fc] sm:$0xf] %vm6580, %v6003
        %6901 = vst.msk [vmem:[%s242 + $0x500] sm:$0xf] %vm6580, %v6004
        %6902 = vst.msk [vmem:[%s242 + $0x504] sm:$0xf] %vm6580, %v6005
        %6903 = vst.msk [vmem:[%s242 + $0x508] sm:$0xf] %vm6580, %v6006
        %6904 = vst.msk [vmem:[%s242 + $0x50c] sm:$0xf] %vm6580, %v6007
        %6905 = vst.msk [vmem:[%s242 + $0x510] sm:$0xf] %vm6580, %v6008
        %6906 = vst.msk [vmem:[%s242 + $0x514] sm:$0xf] %vm6580, %v6009
        %6907 = vst.msk [vmem:[%s242 + $0x518] sm:$0xf] %vm6580, %v6010
        %6908 = vst.msk [vmem:[%s242 + $0x51c] sm:$0xf] %vm6580, %v6011
        %6909 = vst.msk [vmem:[%s242 + $0x520] sm:$0xf] %vm6580, %v6012
        %6910 = vst.msk [vmem:[%s242 + $0x524] sm:$0xf] %vm6580, %v6013
        %6911 = vst.msk [vmem:[%s242 + $0x528] sm:$0xf] %vm6580, %v6014
        %6912 = vst.msk [vmem:[%s242 + $0x52c] sm:$0xf] %vm6580, %v6015
        %6913 = vst.msk [vmem:[%s242 + $0x530] sm:$0xf] %vm6580, %v6016
        %6914 = vst.msk [vmem:[%s242 + $0x534] sm:$0xf] %vm6580, %v6017
        %6915 = vst.msk [vmem:[%s242 + $0x538] sm:$0xf] %vm6580, %v6018
        %6916 = vst.msk [vmem:[%s242 + $0x53c] sm:$0xf] %vm6580, %v6019
        %6917 = vst.msk [vmem:[%s242 + $0x540] sm:$0xf] %vm6580, %v6020
        %6918 = vst.msk [vmem:[%s242 + $0x544] sm:$0xf] %vm6580, %v6021
        %6919 = vst.msk [vmem:[%s242 + $0x548] sm:$0xf] %vm6580, %v6022
        %6920 = vst.msk [vmem:[%s242 + $0x54c] sm:$0xf] %vm6580, %v6023
        %6921 = vst.msk [vmem:[%s242 + $0x550] sm:$0xf] %vm6580, %v6024
        %6922 = vst.msk [vmem:[%s242 + $0x554] sm:$0xf] %vm6580, %v6025
        %6923 = vst.msk [vmem:[%s242 + $0x558] sm:$0xf] %vm6580, %v6026
        %6924 = vst.msk [vmem:[%s242 + $0x55c] sm:$0xf] %vm6580, %v6027
        %6925 = vst.msk [vmem:[%s242 + $0x560] sm:$0xf] %vm6580, %v6028
        %6926 = vst.msk [vmem:[%s242 + $0x564] sm:$0xf] %vm6580, %v6029
        %6927 = vst.msk [vmem:[%s242 + $0x568] sm:$0xf] %vm6580, %v6030
        %6928 = vst.msk [vmem:[%s242 + $0x56c] sm:$0xf] %vm6580, %v6031
        %6929 = vst.msk [vmem:[%s242 + $0x570] sm:$0xf] %vm6580, %v6032
        %6930 = vst.msk [vmem:[%s242 + $0x574] sm:$0xf] %vm6580, %v6033
        %6931 = vst.msk [vmem:[%s242 + $0x578] sm:$0xf] %vm6580, %v6034
        %6932 = vst.msk [vmem:[%s242 + $0x57c] sm:$0xf] %vm6580, %v6035
        %6933 = vst.msk [vmem:[%s242 + $0x580] sm:$0xf] %vm6580, %v6036
        %6934 = vst.msk [vmem:[%s242 + $0x584] sm:$0xf] %vm6580, %v6037
        %6935 = vst.msk [vmem:[%s242 + $0x588] sm:$0xf] %vm6580, %v6038
        %6936 = vst.msk [vmem:[%s242 + $0x58c] sm:$0xf] %vm6580, %v6039
        %6937 = vst.msk [vmem:[%s242 + $0x590] sm:$0xf] %vm6580, %v6040
        %6938 = vst.msk [vmem:[%s242 + $0x594] sm:$0xf] %vm6580, %v6041
        %6939 = vst.msk [vmem:[%s242 + $0x598] sm:$0xf] %vm6580, %v6042
        %6940 = vst.msk [vmem:[%s242 + $0x59c] sm:$0xf] %vm6580, %v6043
        %6941 = vst.msk [vmem:[%s242 + $0x5a0] sm:$0xf] %vm6580, %v6044
        %6942 = vst.msk [vmem:[%s242 + $0x5a4] sm:$0xf] %vm6580, %v6045
        %6943 = vst.msk [vmem:[%s242 + $0x5a8] sm:$0xf] %vm6580, %v6046
        %6944 = vst.msk [vmem:[%s242 + $0x5ac] sm:$0xf] %vm6580, %v6047
        %6945 = vst.msk [vmem:[%s242 + $0x5b0] sm:$0xf] %vm6580, %v6048
        %6946 = vst.msk [vmem:[%s242 + $0x5b4] sm:$0xf] %vm6580, %v6049
        %6947 = vst.msk [vmem:[%s242 + $0x5b8] sm:$0xf] %vm6580, %v6050
        %6948 = vst.msk [vmem:[%s242 + $0x5bc] sm:$0xf] %vm6580, %v6051
        %6949 = vst.msk [vmem:[%s242 + $0x5c0] sm:$0xf] %vm6580, %v6052
        %6950 = vst.msk [vmem:[%s242 + $0x5c4] sm:$0xf] %vm6580, %v6053
        %6951 = vst.msk [vmem:[%s242 + $0x5c8] sm:$0xf] %vm6580, %v6054
        %6952 = vst.msk [vmem:[%s242 + $0x5cc] sm:$0xf] %vm6580, %v6055
        %6953 = vst.msk [vmem:[%s242 + $0x5d0] sm:$0xf] %vm6580, %v6056
        %6954 = vst.msk [vmem:[%s242 + $0x5d4] sm:$0xf] %vm6580, %v6057
        %6955 = vst.msk [vmem:[%s242 + $0x5d8] sm:$0xf] %vm6580, %v6058
        %6956 = vst.msk [vmem:[%s242 + $0x5dc] sm:$0xf] %vm6580, %v6059
        %6957 = vst.msk [vmem:[%s242 + $0x5e0] sm:$0xf] %vm6580, %v6060
        %6958 = vst.msk [vmem:[%s242 + $0x5e4] sm:$0xf] %vm6580, %v6061
        %6959 = vst.msk [vmem:[%s242 + $0x5e8] sm:$0xf] %vm6580, %v6062
        %6960 = vst.msk [vmem:[%s242 + $0x5ec] sm:$0xf] %vm6580, %v6063
        %6961 = vst.msk [vmem:[%s242 + $0x5f0] sm:$0xf] %vm6580, %v6064
        %6962 = vst.msk [vmem:[%s242 + $0x5f4] sm:$0xf] %vm6580, %v6065
        %6963 = vst.msk [vmem:[%s242 + $0x5f8] sm:$0xf] %vm6580, %v6066
        %6964 = vst.msk [vmem:[%s242 + $0x5fc] sm:$0xf] %vm6580, %v6067
        %6965 = vst.msk [vmem:[%s242 + $0x600] sm:$0xf] %vm6580, %v6068
        %6966 = vst.msk [vmem:[%s242 + $0x604] sm:$0xf] %vm6580, %v6069
        %6967 = vst.msk [vmem:[%s242 + $0x608] sm:$0xf] %vm6580, %v6070
        %6968 = vst.msk [vmem:[%s242 + $0x60c] sm:$0xf] %vm6580, %v6071
        %6969 = vst.msk [vmem:[%s242 + $0x610] sm:$0xf] %vm6580, %v6072
        %6970 = vst.msk [vmem:[%s242 + $0x614] sm:$0xf] %vm6580, %v6073
        %6971 = vst.msk [vmem:[%s242 + $0x618] sm:$0xf] %vm6580, %v6074
        %6972 = vst.msk [vmem:[%s242 + $0x61c] sm:$0xf] %vm6580, %v6075
        %6973 = vst.msk [vmem:[%s242 + $0x620] sm:$0xf] %vm6580, %v6076
        %6974 = vst.msk [vmem:[%s242 + $0x624] sm:$0xf] %vm6580, %v6077
        %6975 = vst.msk [vmem:[%s242 + $0x628] sm:$0xf] %vm6580, %v6078
        %6976 = vst.msk [vmem:[%s242 + $0x62c] sm:$0xf] %vm6580, %v6079
        %6977 = vst.msk [vmem:[%s242 + $0x630] sm:$0xf] %vm6580, %v6080
        %6978 = vst.msk [vmem:[%s242 + $0x634] sm:$0xf] %vm6580, %v6081
        %6979 = vst.msk [vmem:[%s242 + $0x638] sm:$0xf] %vm6580, %v6082
        %6980 = vst.msk [vmem:[%s242 + $0x63c] sm:$0xf] %vm6580, %v6083
        %6981 = vst.msk [vmem:[%s242 + $0x640] sm:$0xf] %vm6580, %v6084
        %6982 = vst.msk [vmem:[%s242 + $0x644] sm:$0xf] %vm6580, %v6085
        %6983 = vst.msk [vmem:[%s242 + $0x648] sm:$0xf] %vm6580, %v6086
        %6984 = vst.msk [vmem:[%s242 + $0x64c] sm:$0xf] %vm6580, %v6087
        %6985 = vst.msk [vmem:[%s242 + $0x650] sm:$0xf] %vm6580, %v6088
        %6986 = vst.msk [vmem:[%s242 + $0x654] sm:$0xf] %vm6580, %v6089
        %6987 = vst.msk [vmem:[%s242 + $0x658] sm:$0xf] %vm6580, %v6090
        %6988 = vst.msk [vmem:[%s242 + $0x65c] sm:$0xf] %vm6580, %v6091
        %6989 = vst.msk [vmem:[%s242 + $0x660] sm:$0xf] %vm6580, %v6092
        %6990 = vst.msk [vmem:[%s242 + $0x664] sm:$0xf] %vm6580, %v6093
        %6991 = vst.msk [vmem:[%s242 + $0x668] sm:$0xf] %vm6580, %v6094
        %6992 = vst.msk [vmem:[%s242 + $0x66c] sm:$0xf] %vm6580, %v6095
        %6993 = vst.msk [vmem:[%s242 + $0x670] sm:$0xf] %vm6580, %v6096
        %6994 = vst.msk [vmem:[%s242 + $0x674] sm:$0xf] %vm6580, %v6097
        %6995 = vst.msk [vmem:[%s242 + $0x678] sm:$0xf] %vm6580, %v6098
        %6996 = vst.msk [vmem:[%s242 + $0x67c] sm:$0xf] %vm6580, %v6099
        %6997 = vst.msk [vmem:[%s242 + $0x680] sm:$0xf] %vm6580, %v6100
        %6998 = vst.msk [vmem:[%s242 + $0x684] sm:$0xf] %vm6580, %v6101
        %6999 = vst.msk [vmem:[%s242 + $0x688] sm:$0xf] %vm6580, %v6102
        %7000 = vst.msk [vmem:[%s242 + $0x68c] sm:$0xf] %vm6580, %v6103
        %7001 = vst.msk [vmem:[%s242 + $0x690] sm:$0xf] %vm6580, %v6104
        %7002 = vst.msk [vmem:[%s242 + $0x694] sm:$0xf] %vm6580, %v6105
        %7003 = vst.msk [vmem:[%s242 + $0x698] sm:$0xf] %vm6580, %v6106
        %7004 = vst.msk [vmem:[%s242 + $0x69c] sm:$0xf] %vm6580, %v6107
        %7005 = vst.msk [vmem:[%s242 + $0x6a0] sm:$0xf] %vm6580, %v6108
        %7006 = vst.msk [vmem:[%s242 + $0x6a4] sm:$0xf] %vm6580, %v6109
        %7007 = vst.msk [vmem:[%s242 + $0x6a8] sm:$0xf] %vm6580, %v6110
        %7008 = vst.msk [vmem:[%s242 + $0x6ac] sm:$0xf] %vm6580, %v6111
        %7009 = vst.msk [vmem:[%s242 + $0x6b0] sm:$0xf] %vm6580, %v6112
        %7010 = vst.msk [vmem:[%s242 + $0x6b4] sm:$0xf] %vm6580, %v6113
        %7011 = vst.msk [vmem:[%s242 + $0x6b8] sm:$0xf] %vm6580, %v6114
        %7012 = vst.msk [vmem:[%s242 + $0x6bc] sm:$0xf] %vm6580, %v6115
        %7013 = vst.msk [vmem:[%s242 + $0x6c0] sm:$0xf] %vm6580, %v6116
        %7014 = vst.msk [vmem:[%s242 + $0x6c4] sm:$0xf] %vm6580, %v6117
        %7015 = vst.msk [vmem:[%s242 + $0x6c8] sm:$0xf] %vm6580, %v6118
        %7016 = vst.msk [vmem:[%s242 + $0x6cc] sm:$0xf] %vm6580, %v6119
        %7017 = vst.msk [vmem:[%s242 + $0x6d0] sm:$0xf] %vm6580, %v6120
        %7018 = vst.msk [vmem:[%s242 + $0x6d4] sm:$0xf] %vm6580, %v6121
        %7019 = vst.msk [vmem:[%s242 + $0x6d8] sm:$0xf] %vm6580, %v6122
        %7020 = vst.msk [vmem:[%s242 + $0x6dc] sm:$0xf] %vm6580, %v6123
        %7021 = vst.msk [vmem:[%s242 + $0x6e0] sm:$0xf] %vm6580, %v6124
        %7022 = vst.msk [vmem:[%s242 + $0x6e4] sm:$0xf] %vm6580, %v6125
        %7023 = vst.msk [vmem:[%s242 + $0x6e8] sm:$0xf] %vm6580, %v6126
        %7024 = vst.msk [vmem:[%s242 + $0x6ec] sm:$0xf] %vm6580, %v6127
        %7025 = vst.msk [vmem:[%s242 + $0x6f0] sm:$0xf] %vm6580, %v6128
        %7026 = vst.msk [vmem:[%s242 + $0x6f4] sm:$0xf] %vm6580, %v6129
        %7027 = vst.msk [vmem:[%s242 + $0x6f8] sm:$0xf] %vm6580, %v6130
        %7028 = vst.msk [vmem:[%s242 + $0x6fc] sm:$0xf] %vm6580, %v6131
        %s7029 = smul.u32 448, %s21
        %p7030 = scmp.lt.s32.totalorder %s7029, 12543
        %s7031 = scalar_select %p7030, %s7029, 12543
        %p7032 = scmp.lt.s32.totalorder %s22, 0
        %s7033 = scalar_select %p7032, %s22, 0
        %s7034 = sadd.s32 %s7033, %s7031
        %s7035 = smul.addr %s7034, 4
        %s7036 = scalar_lea.vmem %s3, %s7035
        // Predicated region
        $region37: #{tpu_custom_call.1} parent=31 // pred_check
          %p7037 = pneg %p127
        $region38: #{tpu_custom_call.1} parent=31 // pred_check_branch
          %7039 = sbr.rel (%p7037) target = $region40
        $region39: #{tpu_custom_call.1} parent=31 // pred_region
          %s7040 = smul.u32 448, %s21
        $region40: #{tpu_custom_call.1} parent=31 // pred_fallthru
          _
      $region32: #{tpu_custom_call.1} parent=5 // pred_fallthru
        _
      %p7041 = scmp.le.s32.totalorder 2, %s12
      // Predicated region
      $region41: #{tpu_custom_call.1} parent=5 // pred_check
        %p7042 = pneg %p7041
      $region42: #{tpu_custom_call.1} parent=5 // pred_check_branch
        %7044 = sbr.rel (%p7042) target = $region44
      $region43: #{tpu_custom_call.1} parent=5 // pred_region
        %s7045 = ssub.s32 %s12, 2
        // Predicated region
        $region45: #{tpu_custom_call.1} parent=43 // pred_check
          %p7046 = pneg %p133
        $region46: #{tpu_custom_call.1} parent=43 // pred_check_branch
          %7048 = sbr.rel (%p7046) target = $region48
        $region47: #{tpu_custom_call.1} parent=43 // pred_region
          %s7049 = smul.u32 448, %s23
          %p7050 = scmp.lt.s32.totalorder %s7049, 12543
          %s7051 = scalar_select %p7050, %s7049, 12543
          %p7052 = scmp.lt.s32.totalorder %s24, 0
          %s7053 = scalar_select %p7052, %s24, 0
          %s7054 = sadd.s32 %s7053, %s7051
          %s7055 = smul.addr %s7054, 4
          %s7056 = scalar_lea.vmem %s3, %s7055
        $region48: #{tpu_custom_call.1} parent=43 // pred_fallthru
          _
      $region44: #{tpu_custom_call.1} parent=5 // pred_fallthru
        _
    $region6: #{tpu_custom_call.1} parent=1 // loop_footer
      %s16 = sadd.s32 1, %s12
    $region7: #{tpu_custom_call.1} parent=1 // loop_footer_branch
      %11 = sbr.rel target = $region3
    $region8: #{tpu_custom_call.1} parent=1 // loop_exit
      _
    %7057 = vsyncpa [#allocation3], 1
    %s7058 = scalar_lea.sflag [#allocation3], 1
    %7059 = vsyncpa %s7058, 1

</llo_original>
